<compile_context>
chip_gen: v5e
topology: v5e:2x2
jax: 0.10.0
libtpu: 0.0.40
codegen_flags: <defaults>
</compile_context>

<pallas_src>
import functools

import jax
import jax.numpy as jnp
from jax.experimental import pallas as pl
from jax.experimental.pallas import tpu as pltpu

_DELTA = 2.5
_BN_EPS = 1e-5
_STD_EPS = 1e-5
_LRELU_SLOPE = 0.01
_BIG = 1e30


def _graph_spec(per_graph_shape):
    """Per-graph block: leading batch dim squeezed, full extent elsewhere."""
    nd = len(per_graph_shape)
    return pl.BlockSpec((None,) + tuple(per_graph_shape),
                        lambda b: (b,) + (0,) * nd)


def _weight_spec(shape):
    """Shared weight: same full-array block for every grid step."""
    nd = len(shape)
    return pl.BlockSpec(tuple(shape), lambda b: (0,) * nd)


# ---------------------------------------------------------------------------
# Fused per-graph kernel: embeddings -> PNAConv layers -> mean readout -> MLP
# ---------------------------------------------------------------------------
def _pna_forward_kernel(*refs, layer_cfgs):
    n_layers = len(layer_cfgs)
    (h_in_ref, e_in_ref, src_ref, dst_ref, dstT_ref,
     weh_ref, beh_ref, wee_ref, bee_ref) = refs[:9]
    layer_refs = [refs[9 + 10 * li: 9 + 10 * (li + 1)] for li in range(n_layers)]
    m0 = 9 + 10 * n_layers
    (w1_ref, b1_ref, w2_ref, b2_ref, w3_ref, b3_ref) = refs[m0:m0 + 6]
    o_ref = refs[m0 + 6]

    # ---- embeddings (in_feat_dropout / dropout = identity in eval) ---------
    h = jnp.dot(h_in_ref[...], weh_ref[...],
                preferred_element_type=jnp.float32) + beh_ref[...]        # (N,H)
    e = jnp.dot(e_in_ref[...], wee_ref[...],
                preferred_element_type=jnp.float32) + bee_ref[...]        # (E,H)

    src_oh = src_ref[...]                                                 # (E,N)
    dst_oh = dst_ref[...]                                                 # (E,N)
    dstT = dstT_ref[...]                                                  # (N,E)
    n_edges = src_oh.shape[0]
    n_nodes = dstT.shape[0]

    # ---- graph-structure quantities (hoisted out of the layer loop) --------
    ones_e = jnp.ones((n_edges, 1), jnp.float32)
    deg = jnp.dot(dstT, ones_e, preferred_element_type=jnp.float32)       # (N,1)
    has_in = deg > 0.0
    inv_deg = 1.0 / jnp.maximum(deg, 1.0)                                  # exact
    logd = jnp.log(deg + 1.0)
    fac_amp = logd * (1.0 / _DELTA)
    fac_att = jnp.where(has_in, _DELTA / jnp.maximum(logd, 1e-12), 0.0)
    scaler_fac = {"identity": None, "amplification": fac_amp,
                  "attenuation": fac_att}

    # additive masks for per-destination max/min (hoisted): (E,N,1)
    mask_max = ((dst_oh - 1.0) * _BIG)[:, :, None]
    mask_min = ((1.0 - dst_oh) * _BIG)[:, :, None]

    # ---- PNA layers ----------------------------------------------------------
    for li, (aggregators, scalers, residual, in_dim) in enumerate(layer_cfgs):
        (wms_ref, wmd_ref, wme_ref, bm_ref, wu_ref, bu_ref,
         bns_ref, bnb_ref, wx_ref, bx_ref) = layer_refs[li]

        # gather h onto edge endpoints (one-hot matmul, f32 throughout)
        h_src = jnp.dot(src_oh, h, preferred_element_type=jnp.float32)    # (E,H)
        h_dst = jnp.dot(dst_oh, h, preferred_element_type=jnp.float32)    # (E,H)

        # message M([h_src ; h_dst ; e]) via three accumulated dots (no concat)
        msg = (jnp.dot(h_src, wms_ref[...], preferred_element_type=jnp.float32)
               + jnp.dot(h_dst, wmd_ref[...], preferred_element_type=jnp.float32)
               + jnp.dot(e, wme_ref[...], preferred_element_type=jnp.float32)
               + bm_ref[...])                                              # (E,H)

        # per-destination aggregations
        aggs = {}
        msum = jnp.dot(dstT, msg, preferred_element_type=jnp.float32)     # (N,H)
        mmean = msum * inv_deg
        if "sum" in aggregators:
            aggs["sum"] = msum
        if "mean" in aggregators:
            aggs["mean"] = mmean
        if "std" in aggregators:
            msumsq = jnp.dot(dstT, msg * msg,
                             preferred_element_type=jnp.float32)           # (N,H)
            mvar = jnp.maximum(msumsq * inv_deg - mmean * mmean, 0.0)
            aggs["std"] = jnp.where(has_in, jnp.sqrt(mvar + _STD_EPS), 0.0)
        if "max" in aggregators:
            # (E,1,H) + (E,N,1) -> (E,N,H); reduce over the leading (edge) axis
            mmax = jnp.max(msg[:, None, :] + mask_max, axis=0)             # (N,H)
            aggs["max"] = jnp.where(has_in, mmax, 0.0)
        if "min" in aggregators:
            mmin = jnp.min(msg[:, None, :] + mask_min, axis=0)             # (N,H)
            aggs["min"] = jnp.where(has_in, mmin, 0.0)

        # U([h ; scaler x aggregator blocks]) as accumulated per-slice dots
        out = (jnp.dot(h, wu_ref[0:in_dim, :],
                       preferred_element_type=jnp.float32) + bu_ref[...])  # (N,O)
        blk = 1
        for sc in scalers:
            partial = None
            for ag in aggregators:
                w_blk = wu_ref[blk * in_dim:(blk + 1) * in_dim, :]
                d = jnp.dot(aggs[ag], w_blk, preferred_element_type=jnp.float32)
                partial = d if partial is None else partial + d
                blk += 1
            fac = scaler_fac[sc]
            if fac is not None:        # identity scaler: skip all-ones multiply
                partial = partial * fac
            out = out + partial

        # eval BatchNorm (running stats folded into scale/shift); no graph-size
        # norm: forward() passes no snorm_n to the conv layers.
        out = out * bns_ref[...] + bnb_ref[...]

        # mixing Linear + LeakyReLU (+ residual when dims match)
        mixed = jnp.dot(out, wx_ref[...],
                        preferred_element_type=jnp.float32) + bx_ref[...]
        mixed = jnp.where(mixed >= 0.0, mixed, _LRELU_SLOPE * mixed)
        if residual:
            mixed = mixed + h
        h = mixed

    # ---- mean readout + MLPReadout (D -> D/2 -> D/4 -> 2) --------------------
    hg = jnp.sum(h, axis=0, keepdims=True) * (1.0 / n_nodes)               # (1,D)
    y = jnp.maximum(
        jnp.dot(hg, w1_ref[...], preferred_element_type=jnp.float32) + b1_ref[...],
        0.0)
    y = jnp.maximum(
        jnp.dot(y, w2_ref[...], preferred_element_type=jnp.float32) + b2_ref[...],
        0.0)
    o_ref[...] = (jnp.dot(y, w3_ref[...], preferred_element_type=jnp.float32)
                  + b3_ref[...])


# ---------------------------------------------------------------------------
# Wrapper: one pallas_call, grid over graphs (parallel axis)
# ---------------------------------------------------------------------------
def pna_net_forward(params, h_in, e_in, src_oh, dst_oh):
    """Batched PNANet forward.

    h_in: (B,N,Fa), e_in: (B,E,Fb), src_oh/dst_oh: (B,E,N) one-hot (f32).
    Returns (B, num_classes) logits.
    """
    B = h_in.shape[0]
    dstT_oh = jnp.swapaxes(dst_oh, 1, 2)           # (B,N,E): transpose once, host-side

    weh, beh = params["emb_h"]
    wee, bee = params["emb_e"]
    hidden = weh.shape[1]

    graph_args = [h_in, e_in, src_oh, dst_oh, dstT_oh]
    weight_args = [weh, beh.reshape(1, -1), wee, bee.reshape(1, -1)]

    layer_cfgs = []
    in_dim = hidden
    for lp in params["layers"]:
        out_dim = lp["wu"].shape[1]
        layer_cfgs.append((tuple(lp["aggregators"]), tuple(lp["scalers"]),
                           in_dim == out_dim, in_dim))
        wm = lp["wm"]                               # (3*in, in) -> split host-side
        weight_args += [wm[0:in_dim], wm[in_dim:2 * in_dim], wm[2 * in_dim:3 * in_dim],
                        lp["bm"].reshape(1, -1),
                        lp["wu"], lp["bu"].reshape(1, -1),
                        lp["bn_scale"].reshape(1, -1), lp["bn_shift"].reshape(1, -1),
                        lp["wmix"], lp["bmix"].reshape(1, -1)]
        in_dim = out_dim

    mlp = params["mlp"]
    weight_args += [mlp["w1"], mlp["b1"].reshape(1, -1),
                    mlp["w2"], mlp["b2"].reshape(1, -1),
                    mlp["w3"], mlp["b3"].reshape(1, -1)]
    out_classes = mlp["w3"].shape[1]

    args = graph_args + weight_args
    in_specs = ([_graph_spec(a.shape[1:]) for a in graph_args]
                + [_weight_spec(a.shape) for a in weight_args])

    kernel = functools.partial(_pna_forward_kernel, layer_cfgs=tuple(layer_cfgs))
    out = pl.pallas_call(
        kernel,
        out_shape=jax.ShapeDtypeStruct((B, 1, out_classes), jnp.float32),
        grid=(B,),
        in_specs=in_specs,
        out_specs=pl.BlockSpec((None, 1, out_classes), lambda b: (b, 0, 0)),
        compiler_params=pltpu.CompilerParams(
            dimension_semantics=("parallel",)),
    )(*args)
    return out.reshape(B, out_classes)


# ---------------------------------------------------------------------------
# Parameter init (deterministic, PyTorch-style U(-1/sqrt(fan_in), 1/sqrt(fan_in)))
# ---------------------------------------------------------------------------
def _linear_init(key, fan_in, fan_out):
    k = 1.0 / (fan_in ** 0.5)
    kw, kb = jax.random.split(key)
    w = jax.random.uniform(kw, (fan_in, fan_out), jnp.float32, -k, k)
    b = jax.random.uniform(kb, (fan_out,), jnp.float32, -k, k)
    return w, b


def init_pna_net_params(key, in_atom_dim, in_bond_dim, hidden, out_dim, n_layers):
    keys = jax.random.split(key, 4 + n_layers)
    params = {"emb_h": _linear_init(keys[0], in_atom_dim, hidden),
              "emb_e": _linear_init(keys[1], in_bond_dim, hidden)}

    layer_cfgs = []
    for _ in range(n_layers - 1):
        layer_cfgs.append((hidden, hidden,
                           ("mean", "max", "min", "std"),
                           ("identity", "amplification", "attenuation")))
    layer_cfgs.append((hidden, out_dim,
                       ("mean", "max", "sum"),
                       ("identity", "amplification")))

    bn_scale_val = 1.0 / (1.0 + _BN_EPS) ** 0.5   # eval BN, running stats (0, 1)
    layers = []
    for li, (ins, outs, aggs, scs) in enumerate(layer_cfgs):
        kk = jax.random.split(keys[2 + li], 3)
        wm, bm = _linear_init(kk[0], 3 * ins, ins)   # M: [h_src;h_dst;e] -> in
        wu, bu = _linear_init(kk[1], (1 + len(aggs) * len(scs)) * ins, outs)
        wmix, bmix = _linear_init(kk[2], outs, outs)
        layers.append(dict(
            wm=wm, bm=bm, wu=wu, bu=bu, wmix=wmix, bmix=bmix,
            bn_scale=jnp.full((outs,), bn_scale_val, jnp.float32),
            bn_shift=jnp.zeros((outs,), jnp.float32),
            aggregators=aggs, scalers=scs))
    params["layers"] = layers

    # MLPReadout(out_dim, 2) with L=2 hidden halvings
    km = jax.random.split(keys[-1], 3)
    w1, b1 = _linear_init(km[0], out_dim, out_dim // 2)
    w2, b2 = _linear_init(km[1], out_dim // 2, out_dim // 4)
    w3, b3 = _linear_init(km[2], out_dim // 4, 2)
    params["mlp"] = dict(w1=w1, b1=b1, w2=w2, b2=b2, w3=w3, b3=b3)
    return params


if __name__ == "__main__":
    key = jax.random.PRNGKey(0)
    k_param, k_h, k_e, k_src, k_dst = jax.random.split(key, 5)

    B = 4                       # graphs per batch (parallel grid axis)
    N_NODES, N_EDGES = 16, 48
    IN_ATOM, IN_BOND = 12, 6
    HIDDEN = OUT = 32
    N_LAYERS = 2

    params = init_pna_net_params(k_param, IN_ATOM, IN_BOND, HIDDEN, OUT, N_LAYERS)

    # Synthetic batch of graphs: random node/edge features, random directed edges.
    h_in = jax.random.normal(k_h, (B, N_NODES, IN_ATOM), jnp.float32)
    e_in = jax.random.normal(k_e, (B, N_EDGES, IN_BOND), jnp.float32)
    src = jax.random.randint(k_src, (B, N_EDGES), 0, N_NODES)
    dst = jax.random.randint(k_dst, (B, N_EDGES), 0, N_NODES)
    src_oh = jax.nn.one_hot(src, N_NODES, dtype=jnp.float32)   # (B, E, N)
    dst_oh = jax.nn.one_hot(dst, N_NODES, dtype=jnp.float32)   # (B, E, N)

    fwd = jax.jit(lambda hh, ee, ss, dd: pna_net_forward(params, hh, ee, ss, dd))
    out = jax.block_until_ready(fwd(h_in, e_in, src_oh, dst_oh))
    assert out.shape == (B, 2)
    assert bool(jnp.all(jnp.isfinite(out)))
    print("KERNEL_OK")
</pallas_src>

<mosaic_0001>
module attributes {stable_mosaic.version = 11 : i64} {
  func.func @_pna_forward_kernel(%arg0: i32, %arg1: memref<1x16x12xf32, #tpu.memory_space<vmem>>, %arg2: memref<1x48x6xf32, #tpu.memory_space<vmem>>, %arg3: memref<1x48x16xf32, #tpu.memory_space<vmem>>, %arg4: memref<1x48x16xf32, #tpu.memory_space<vmem>>, %arg5: memref<1x16x48xf32, #tpu.memory_space<vmem>>, %arg6: memref<12x32xf32, #tpu.memory_space<vmem>>, %arg7: memref<1x32xf32, #tpu.memory_space<vmem>>, %arg8: memref<6x32xf32, #tpu.memory_space<vmem>>, %arg9: memref<1x32xf32, #tpu.memory_space<vmem>>, %arg10: memref<32x32xf32, #tpu.memory_space<vmem>>, %arg11: memref<32x32xf32, #tpu.memory_space<vmem>>, %arg12: memref<32x32xf32, #tpu.memory_space<vmem>>, %arg13: memref<1x32xf32, #tpu.memory_space<vmem>>, %arg14: memref<416x32xf32, #tpu.memory_space<vmem>>, %arg15: memref<1x32xf32, #tpu.memory_space<vmem>>, %arg16: memref<1x32xf32, #tpu.memory_space<vmem>>, %arg17: memref<1x32xf32, #tpu.memory_space<vmem>>, %arg18: memref<32x32xf32, #tpu.memory_space<vmem>>, %arg19: memref<1x32xf32, #tpu.memory_space<vmem>>, %arg20: memref<32x32xf32, #tpu.memory_space<vmem>>, %arg21: memref<32x32xf32, #tpu.memory_space<vmem>>, %arg22: memref<32x32xf32, #tpu.memory_space<vmem>>, %arg23: memref<1x32xf32, #tpu.memory_space<vmem>>, %arg24: memref<224x32xf32, #tpu.memory_space<vmem>>, %arg25: memref<1x32xf32, #tpu.memory_space<vmem>>, %arg26: memref<1x32xf32, #tpu.memory_space<vmem>>, %arg27: memref<1x32xf32, #tpu.memory_space<vmem>>, %arg28: memref<32x32xf32, #tpu.memory_space<vmem>>, %arg29: memref<1x32xf32, #tpu.memory_space<vmem>>, %arg30: memref<32x16xf32, #tpu.memory_space<vmem>>, %arg31: memref<1x16xf32, #tpu.memory_space<vmem>>, %arg32: memref<16x8xf32, #tpu.memory_space<vmem>>, %arg33: memref<1x8xf32, #tpu.memory_space<vmem>>, %arg34: memref<8x2xf32, #tpu.memory_space<vmem>>, %arg35: memref<1x2xf32, #tpu.memory_space<vmem>>, %arg36: memref<1x1x2xf32, #tpu.memory_space<vmem>>) attributes {dimension_semantics = [#tpu.dimension_semantics<parallel>], iteration_bounds = array<i64: 4>, scalar_prefetch = 0 : i64, scratch_operands = 0 : i64, tpu.core_type = #tpu.core_type<tc>, window_params = [{transform_indices = @transform_0, window_bounds = array<i64: 1, 16, 12>}, {transform_indices = @transform_1, window_bounds = array<i64: 1, 48, 6>}, {transform_indices = @transform_2, window_bounds = array<i64: 1, 48, 16>}, {transform_indices = @transform_3, window_bounds = array<i64: 1, 48, 16>}, {transform_indices = @transform_4, window_bounds = array<i64: 1, 16, 48>}, {pipeline_mode = #tpu.pipeline_mode<synchronous>, transform_indices = @transform_5, window_bounds = array<i64: 12, 32>}, {pipeline_mode = #tpu.pipeline_mode<synchronous>, transform_indices = @transform_6, window_bounds = array<i64: 1, 32>}, {pipeline_mode = #tpu.pipeline_mode<synchronous>, transform_indices = @transform_7, window_bounds = array<i64: 6, 32>}, {pipeline_mode = #tpu.pipeline_mode<synchronous>, transform_indices = @transform_8, window_bounds = array<i64: 1, 32>}, {pipeline_mode = #tpu.pipeline_mode<synchronous>, transform_indices = @transform_9, window_bounds = array<i64: 32, 32>}, {pipeline_mode = #tpu.pipeline_mode<synchronous>, transform_indices = @transform_10, window_bounds = array<i64: 32, 32>}, {pipeline_mode = #tpu.pipeline_mode<synchronous>, transform_indices = @transform_11, window_bounds = array<i64: 32, 32>}, {pipeline_mode = #tpu.pipeline_mode<synchronous>, transform_indices = @transform_12, window_bounds = array<i64: 1, 32>}, {pipeline_mode = #tpu.pipeline_mode<synchronous>, transform_indices = @transform_13, window_bounds = array<i64: 416, 32>}, {pipeline_mode = #tpu.pipeline_mode<synchronous>, transform_indices = @transform_14, window_bounds = array<i64: 1, 32>}, {pipeline_mode = #tpu.pipeline_mode<synchronous>, transform_indices = @transform_15, window_bounds = array<i64: 1, 32>}, {pipeline_mode = #tpu.pipeline_mode<synchronous>, transform_indices = @transform_16, window_bounds = array<i64: 1, 32>}, {pipeline_mode = #tpu.pipeline_mode<synchronous>, transform_indices = @transform_17, window_bounds = array<i64: 32, 32>}, {pipeline_mode = #tpu.pipeline_mode<synchronous>, transform_indices = @transform_18, window_bounds = array<i64: 1, 32>}, {pipeline_mode = #tpu.pipeline_mode<synchronous>, transform_indices = @transform_19, window_bounds = array<i64: 32, 32>}, {pipeline_mode = #tpu.pipeline_mode<synchronous>, transform_indices = @transform_20, window_bounds = array<i64: 32, 32>}, {pipeline_mode = #tpu.pipeline_mode<synchronous>, transform_indices = @transform_21, window_bounds = array<i64: 32, 32>}, {pipeline_mode = #tpu.pipeline_mode<synchronous>, transform_indices = @transform_22, window_bounds = array<i64: 1, 32>}, {pipeline_mode = #tpu.pipeline_mode<synchronous>, transform_indices = @transform_23, window_bounds = array<i64: 224, 32>}, {pipeline_mode = #tpu.pipeline_mode<synchronous>, transform_indices = @transform_24, window_bounds = array<i64: 1, 32>}, {pipeline_mode = #tpu.pipeline_mode<synchronous>, transform_indices = @transform_25, window_bounds = array<i64: 1, 32>}, {pipeline_mode = #tpu.pipeline_mode<synchronous>, transform_indices = @transform_26, window_bounds = array<i64: 1, 32>}, {pipeline_mode = #tpu.pipeline_mode<synchronous>, transform_indices = @transform_27, window_bounds = array<i64: 32, 32>}, {pipeline_mode = #tpu.pipeline_mode<synchronous>, transform_indices = @transform_28, window_bounds = array<i64: 1, 32>}, {pipeline_mode = #tpu.pipeline_mode<synchronous>, transform_indices = @transform_29, window_bounds = array<i64: 32, 16>}, {pipeline_mode = #tpu.pipeline_mode<synchronous>, transform_indices = @transform_30, window_bounds = array<i64: 1, 16>}, {pipeline_mode = #tpu.pipeline_mode<synchronous>, transform_indices = @transform_31, window_bounds = array<i64: 16, 8>}, {pipeline_mode = #tpu.pipeline_mode<synchronous>, transform_indices = @transform_32, window_bounds = array<i64: 1, 8>}, {pipeline_mode = #tpu.pipeline_mode<synchronous>, transform_indices = @transform_33, window_bounds = array<i64: 8, 2>}, {pipeline_mode = #tpu.pipeline_mode<synchronous>, transform_indices = @transform_34, window_bounds = array<i64: 1, 2>}, {transform_indices = @transform_35, window_bounds = array<i64: 1, 1, 2>}]} {
    %c0 = arith.constant 0 : index
    %c0_0 = arith.constant 0 : index
    %c0_1 = arith.constant 0 : index
    %0 = vector.load %arg1[%c0, %c0_0, %c0_1] : memref<1x16x12xf32, #tpu.memory_space<vmem>>, vector<1x16x12xf32>
    %1 = vector.shape_cast %0 : vector<1x16x12xf32> to vector<16x12xf32>
    %c0_2 = arith.constant 0 : index
    %c0_3 = arith.constant 0 : index
    %2 = vector.load %arg6[%c0_2, %c0_3] : memref<12x32xf32, #tpu.memory_space<vmem>>, vector<12x32xf32>
    %cst = arith.constant dense<0.000000e+00> : vector<16x32xf32>
    %3 = tpu.matmul %1, %2, %cst {dimension_numbers = #tpu.dot_dimension_numbers<[1], [0], [0], [1], [0, 0, 1, 1], [], []>} : vector<16x12xf32>, vector<12x32xf32>, vector<16x32xf32> -> vector<16x32xf32>
    %c0_4 = arith.constant 0 : index
    %c0_5 = arith.constant 0 : index
    %4 = vector.load %arg7[%c0_4, %c0_5] : memref<1x32xf32, #tpu.memory_space<vmem>>, vector<1x32xf32>
    %5 = vector.broadcast %4 : vector<1x32xf32> to vector<16x32xf32>
    %6 = arith.addf %3, %5 : vector<16x32xf32>
    %c0_6 = arith.constant 0 : index
    %c0_7 = arith.constant 0 : index
    %c0_8 = arith.constant 0 : index
    %7 = vector.load %arg2[%c0_6, %c0_7, %c0_8] : memref<1x48x6xf32, #tpu.memory_space<vmem>>, vector<1x48x6xf32>
    %8 = vector.shape_cast %7 : vector<1x48x6xf32> to vector<48x6xf32>
    %c0_9 = arith.constant 0 : index
    %c0_10 = arith.constant 0 : index
    %9 = vector.load %arg8[%c0_9, %c0_10] : memref<6x32xf32, #tpu.memory_space<vmem>>, vector<6x32xf32>
    %cst_11 = arith.constant dense<0.000000e+00> : vector<48x32xf32>
    %10 = tpu.matmul %8, %9, %cst_11 {dimension_numbers = #tpu.dot_dimension_numbers<[1], [0], [0], [1], [0, 0, 1, 1], [], []>} : vector<48x6xf32>, vector<6x32xf32>, vector<48x32xf32> -> vector<48x32xf32>
    %c0_12 = arith.constant 0 : index
    %c0_13 = arith.constant 0 : index
    %11 = vector.load %arg9[%c0_12, %c0_13] : memref<1x32xf32, #tpu.memory_space<vmem>>, vector<1x32xf32>
    %12 = vector.broadcast %11 : vector<1x32xf32> to vector<48x32xf32>
    %13 = arith.addf %10, %12 : vector<48x32xf32>
    %c0_14 = arith.constant 0 : index
    %c0_15 = arith.constant 0 : index
    %c0_16 = arith.constant 0 : index
    %14 = vector.load %arg3[%c0_14, %c0_15, %c0_16] : memref<1x48x16xf32, #tpu.memory_space<vmem>>, vector<1x48x16xf32>
    %15 = vector.shape_cast %14 : vector<1x48x16xf32> to vector<48x16xf32>
    %c0_17 = arith.constant 0 : index
    %c0_18 = arith.constant 0 : index
    %c0_19 = arith.constant 0 : index
    %16 = vector.load %arg4[%c0_17, %c0_18, %c0_19] : memref<1x48x16xf32, #tpu.memory_space<vmem>>, vector<1x48x16xf32>
    %17 = vector.shape_cast %16 : vector<1x48x16xf32> to vector<48x16xf32>
    %c0_20 = arith.constant 0 : index
    %c0_21 = arith.constant 0 : index
    %c0_22 = arith.constant 0 : index
    %18 = vector.load %arg5[%c0_20, %c0_21, %c0_22] : memref<1x16x48xf32, #tpu.memory_space<vmem>>, vector<1x16x48xf32>
    %19 = vector.shape_cast %18 : vector<1x16x48xf32> to vector<16x48xf32>
    %cst_23 = arith.constant 1.000000e+00 : f32
    %20 = vector.broadcast %cst_23 : f32 to vector<48x1xf32>
    %cst_24 = arith.constant dense<0.000000e+00> : vector<16x1xf32>
    %21 = tpu.matmul %19, %20, %cst_24 {dimension_numbers = #tpu.dot_dimension_numbers<[1], [0], [0], [1], [0, 0, 1, 1], [], []>} : vector<16x48xf32>, vector<48x1xf32>, vector<16x1xf32> -> vector<16x1xf32>
    %cst_25 = arith.constant 0.000000e+00 : f32
    %22 = vector.broadcast %cst_25 : f32 to vector<16x1xf32>
    %23 = arith.cmpf ogt, %21, %22 : vector<16x1xf32>
    %cst_26 = arith.constant 1.000000e+00 : f32
    %24 = vector.broadcast %cst_26 : f32 to vector<16x1xf32>
    %25 = arith.maximumf %21, %24 : vector<16x1xf32>
    %cst_27 = arith.constant 1.000000e+00 : f32
    %26 = vector.broadcast %cst_27 : f32 to vector<16x1xf32>
    %27 = arith.divf %26, %25 : vector<16x1xf32>
    %cst_28 = arith.constant 1.000000e+00 : f32
    %28 = vector.broadcast %cst_28 : f32 to vector<16x1xf32>
    %29 = arith.addf %21, %28 : vector<16x1xf32>
    %30 = math.log %29 : vector<16x1xf32>
    %cst_29 = arith.constant 4.000000e-01 : f32
    %31 = vector.broadcast %cst_29 : f32 to vector<16x1xf32>
    %32 = arith.mulf %30, %31 : vector<16x1xf32>
    %cst_30 = arith.constant 9.99999996E-13 : f32
    %33 = vector.broadcast %cst_30 : f32 to vector<16x1xf32>
    %34 = arith.maximumf %30, %33 : vector<16x1xf32>
    %cst_31 = arith.constant 2.500000e+00 : f32
    %35 = vector.broadcast %cst_31 : f32 to vector<16x1xf32>
    %36 = arith.divf %35, %34 : vector<16x1xf32>
    %cst_32 = arith.constant 0.000000e+00 : f32
    %37 = vector.broadcast %cst_32 : f32 to vector<16x1xf32>
    %38 = arith.select %23, %36, %37 : vector<16x1xi1>, vector<16x1xf32>
    %cst_33 = arith.constant 1.000000e+00 : f32
    %39 = vector.broadcast %cst_33 : f32 to vector<48x16xf32>
    %40 = arith.subf %17, %39 : vector<48x16xf32>
    %cst_34 = arith.constant 1.000000e+30 : f32
    %41 = vector.broadcast %cst_34 : f32 to vector<48x16xf32>
    %42 = arith.mulf %40, %41 : vector<48x16xf32>
    %43 = vector.shape_cast %42 : vector<48x16xf32> to vector<48x16x1xf32>
    %cst_35 = arith.constant 1.000000e+00 : f32
    %44 = vector.broadcast %cst_35 : f32 to vector<48x16xf32>
    %45 = arith.subf %44, %17 : vector<48x16xf32>
    %cst_36 = arith.constant 1.000000e+30 : f32
    %46 = vector.broadcast %cst_36 : f32 to vector<48x16xf32>
    %47 = arith.mulf %45, %46 : vector<48x16xf32>
    %48 = vector.shape_cast %47 : vector<48x16xf32> to vector<48x16x1xf32>
    %cst_37 = arith.constant dense<0.000000e+00> : vector<48x32xf32>
    %49 = tpu.matmul %15, %6, %cst_37 {dimension_numbers = #tpu.dot_dimension_numbers<[1], [0], [0], [1], [0, 0, 1, 1], [], []>} : vector<48x16xf32>, vector<16x32xf32>, vector<48x32xf32> -> vector<48x32xf32>
    %cst_38 = arith.constant dense<0.000000e+00> : vector<48x32xf32>
    %50 = tpu.matmul %17, %6, %cst_38 {dimension_numbers = #tpu.dot_dimension_numbers<[1], [0], [0], [1], [0, 0, 1, 1], [], []>} : vector<48x16xf32>, vector<16x32xf32>, vector<48x32xf32> -> vector<48x32xf32>
    %c0_39 = arith.constant 0 : index
    %c0_40 = arith.constant 0 : index
    %51 = vector.load %arg10[%c0_39, %c0_40] : memref<32x32xf32, #tpu.memory_space<vmem>>, vector<32x32xf32>
    %cst_41 = arith.constant dense<0.000000e+00> : vector<48x32xf32>
    %52 = tpu.matmul %49, %51, %cst_41 {dimension_numbers = #tpu.dot_dimension_numbers<[1], [0], [0], [1], [0, 0, 1, 1], [], []>} : vector<48x32xf32>, vector<32x32xf32>, vector<48x32xf32> -> vector<48x32xf32>
    %c0_42 = arith.constant 0 : index
    %c0_43 = arith.constant 0 : index
    %53 = vector.load %arg11[%c0_42, %c0_43] : memref<32x32xf32, #tpu.memory_space<vmem>>, vector<32x32xf32>
    %cst_44 = arith.constant dense<0.000000e+00> : vector<48x32xf32>
    %54 = tpu.matmul %50, %53, %cst_44 {dimension_numbers = #tpu.dot_dimension_numbers<[1], [0], [0], [1], [0, 0, 1, 1], [], []>} : vector<48x32xf32>, vector<32x32xf32>, vector<48x32xf32> -> vector<48x32xf32>
    %55 = arith.addf %52, %54 : vector<48x32xf32>
    %c0_45 = arith.constant 0 : index
    %c0_46 = arith.constant 0 : index
    %56 = vector.load %arg12[%c0_45, %c0_46] : memref<32x32xf32, #tpu.memory_space<vmem>>, vector<32x32xf32>
    %cst_47 = arith.constant dense<0.000000e+00> : vector<48x32xf32>
    %57 = tpu.matmul %13, %56, %cst_47 {dimension_numbers = #tpu.dot_dimension_numbers<[1], [0], [0], [1], [0, 0, 1, 1], [], []>} : vector<48x32xf32>, vector<32x32xf32>, vector<48x32xf32> -> vector<48x32xf32>
    %58 = arith.addf %55, %57 : vector<48x32xf32>
    %c0_48 = arith.constant 0 : index
    %c0_49 = arith.constant 0 : index
    %59 = vector.load %arg13[%c0_48, %c0_49] : memref<1x32xf32, #tpu.memory_space<vmem>>, vector<1x32xf32>
    %60 = vector.broadcast %59 : vector<1x32xf32> to vector<48x32xf32>
    %61 = arith.addf %58, %60 : vector<48x32xf32>
    %cst_50 = arith.constant dense<0.000000e+00> : vector<16x32xf32>
    %62 = tpu.matmul %19, %61, %cst_50 {dimension_numbers = #tpu.dot_dimension_numbers<[1], [0], [0], [1], [0, 0, 1, 1], [], []>} : vector<16x48xf32>, vector<48x32xf32>, vector<16x32xf32> -> vector<16x32xf32>
    %63 = vector.broadcast %27 : vector<16x1xf32> to vector<16x32xf32>
    %64 = arith.mulf %62, %63 : vector<16x32xf32>
    %65 = arith.mulf %61, %61 : vector<48x32xf32>
    %cst_51 = arith.constant dense<0.000000e+00> : vector<16x32xf32>
    %66 = tpu.matmul %19, %65, %cst_51 {dimension_numbers = #tpu.dot_dimension_numbers<[1], [0], [0], [1], [0, 0, 1, 1], [], []>} : vector<16x48xf32>, vector<48x32xf32>, vector<16x32xf32> -> vector<16x32xf32>
    %67 = vector.broadcast %27 : vector<16x1xf32> to vector<16x32xf32>
    %68 = arith.mulf %66, %67 : vector<16x32xf32>
    %69 = arith.mulf %64, %64 : vector<16x32xf32>
    %70 = arith.subf %68, %69 : vector<16x32xf32>
    %cst_52 = arith.constant 0.000000e+00 : f32
    %71 = vector.broadcast %cst_52 : f32 to vector<16x32xf32>
    %72 = arith.maximumf %70, %71 : vector<16x32xf32>
    %cst_53 = arith.constant 9.99999974E-6 : f32
    %73 = vector.broadcast %cst_53 : f32 to vector<16x32xf32>
    %74 = arith.addf %72, %73 : vector<16x32xf32>
    %75 = math.sqrt %74 : vector<16x32xf32>
    %cst_54 = arith.constant 0.000000e+00 : f32
    %76 = vector.shape_cast %23 : vector<16x1xi1> to vector<16x1xi1>
    %77 = vector.broadcast %76 : vector<16x1xi1> to vector<16x32xi1>
    %78 = vector.broadcast %cst_54 : f32 to vector<16x32xf32>
    %79 = arith.select %77, %75, %78 : vector<16x32xi1>, vector<16x32xf32>
    %80 = vector.shape_cast %61 : vector<48x32xf32> to vector<48x1x32xf32>
    %81 = vector.broadcast %80 : vector<48x1x32xf32> to vector<48x16x32xf32>
    %82 = vector.broadcast %43 : vector<48x16x1xf32> to vector<48x16x32xf32>
    %83 = arith.addf %81, %82 : vector<48x16x32xf32>
    %cst_55 = arith.constant dense<0xFF800000> : vector<16x32xf32>
    %84 = vector.multi_reduction <maximumf>, %83, %cst_55 [0] : vector<48x16x32xf32> to vector<16x32xf32>
    %cst_56 = arith.constant 0.000000e+00 : f32
    %85 = vector.shape_cast %23 : vector<16x1xi1> to vector<16x1xi1>
    %86 = vector.broadcast %85 : vector<16x1xi1> to vector<16x32xi1>
    %87 = vector.broadcast %cst_56 : f32 to vector<16x32xf32>
    %88 = arith.select %86, %84, %87 : vector<16x32xi1>, vector<16x32xf32>
    %89 = vector.shape_cast %61 : vector<48x32xf32> to vector<48x1x32xf32>
    %90 = vector.broadcast %89 : vector<48x1x32xf32> to vector<48x16x32xf32>
    %91 = vector.broadcast %48 : vector<48x16x1xf32> to vector<48x16x32xf32>
    %92 = arith.addf %90, %91 : vector<48x16x32xf32>
    %cst_57 = arith.constant dense<0x7F800000> : vector<16x32xf32>
    %93 = vector.multi_reduction <minimumf>, %92, %cst_57 [0] : vector<48x16x32xf32> to vector<16x32xf32>
    %cst_58 = arith.constant 0.000000e+00 : f32
    %94 = vector.shape_cast %23 : vector<16x1xi1> to vector<16x1xi1>
    %95 = vector.broadcast %94 : vector<16x1xi1> to vector<16x32xi1>
    %96 = vector.broadcast %cst_58 : f32 to vector<16x32xf32>
    %97 = arith.select %95, %93, %96 : vector<16x32xi1>, vector<16x32xf32>
    %c0_59 = arith.constant 0 : index
    %c0_60 = arith.constant 0 : index
    %98 = vector.load %arg14[%c0_59, %c0_60] : memref<416x32xf32, #tpu.memory_space<vmem>>, vector<32x32xf32>
    %cst_61 = arith.constant dense<0.000000e+00> : vector<16x32xf32>
    %99 = tpu.matmul %6, %98, %cst_61 {dimension_numbers = #tpu.dot_dimension_numbers<[1], [0], [0], [1], [0, 0, 1, 1], [], []>} : vector<16x32xf32>, vector<32x32xf32>, vector<16x32xf32> -> vector<16x32xf32>
    %c0_62 = arith.constant 0 : index
    %c0_63 = arith.constant 0 : index
    %100 = vector.load %arg15[%c0_62, %c0_63] : memref<1x32xf32, #tpu.memory_space<vmem>>, vector<1x32xf32>
    %101 = vector.broadcast %100 : vector<1x32xf32> to vector<16x32xf32>
    %102 = arith.addf %99, %101 : vector<16x32xf32>
    %c32 = arith.constant 32 : index
    %c0_64 = arith.constant 0 : index
    %103 = vector.load %arg14[%c32, %c0_64] : memref<416x32xf32, #tpu.memory_space<vmem>>, vector<32x32xf32>
    %cst_65 = arith.constant dense<0.000000e+00> : vector<16x32xf32>
    %104 = tpu.matmul %64, %103, %cst_65 {dimension_numbers = #tpu.dot_dimension_numbers<[1], [0], [0], [1], [0, 0, 1, 1], [], []>} : vector<16x32xf32>, vector<32x32xf32>, vector<16x32xf32> -> vector<16x32xf32>
    %c64 = arith.constant 64 : index
    %c0_66 = arith.constant 0 : index
    %105 = vector.load %arg14[%c64, %c0_66] : memref<416x32xf32, #tpu.memory_space<vmem>>, vector<32x32xf32>
    %cst_67 = arith.constant dense<0.000000e+00> : vector<16x32xf32>
    %106 = tpu.matmul %88, %105, %cst_67 {dimension_numbers = #tpu.dot_dimension_numbers<[1], [0], [0], [1], [0, 0, 1, 1], [], []>} : vector<16x32xf32>, vector<32x32xf32>, vector<16x32xf32> -> vector<16x32xf32>
    %107 = arith.addf %104, %106 : vector<16x32xf32>
    %c96 = arith.constant 96 : index
    %c0_68 = arith.constant 0 : index
    %108 = vector.load %arg14[%c96, %c0_68] : memref<416x32xf32, #tpu.memory_space<vmem>>, vector<32x32xf32>
    %cst_69 = arith.constant dense<0.000000e+00> : vector<16x32xf32>
    %109 = tpu.matmul %97, %108, %cst_69 {dimension_numbers = #tpu.dot_dimension_numbers<[1], [0], [0], [1], [0, 0, 1, 1], [], []>} : vector<16x32xf32>, vector<32x32xf32>, vector<16x32xf32> -> vector<16x32xf32>
    %110 = arith.addf %107, %109 : vector<16x32xf32>
    %c128 = arith.constant 128 : index
    %c0_70 = arith.constant 0 : index
    %111 = vector.load %arg14[%c128, %c0_70] : memref<416x32xf32, #tpu.memory_space<vmem>>, vector<32x32xf32>
    %cst_71 = arith.constant dense<0.000000e+00> : vector<16x32xf32>
    %112 = tpu.matmul %79, %111, %cst_71 {dimension_numbers = #tpu.dot_dimension_numbers<[1], [0], [0], [1], [0, 0, 1, 1], [], []>} : vector<16x32xf32>, vector<32x32xf32>, vector<16x32xf32> -> vector<16x32xf32>
    %113 = arith.addf %110, %112 : vector<16x32xf32>
    %114 = arith.addf %102, %113 : vector<16x32xf32>
    %c160 = arith.constant 160 : index
    %c0_72 = arith.constant 0 : index
    %115 = vector.load %arg14[%c160, %c0_72] : memref<416x32xf32, #tpu.memory_space<vmem>>, vector<32x32xf32>
    %cst_73 = arith.constant dense<0.000000e+00> : vector<16x32xf32>
    %116 = tpu.matmul %64, %115, %cst_73 {dimension_numbers = #tpu.dot_dimension_numbers<[1], [0], [0], [1], [0, 0, 1, 1], [], []>} : vector<16x32xf32>, vector<32x32xf32>, vector<16x32xf32> -> vector<16x32xf32>
    %c192 = arith.constant 192 : index
    %c0_74 = arith.constant 0 : index
    %117 = vector.load %arg14[%c192, %c0_74] : memref<416x32xf32, #tpu.memory_space<vmem>>, vector<32x32xf32>
    %cst_75 = arith.constant dense<0.000000e+00> : vector<16x32xf32>
    %118 = tpu.matmul %88, %117, %cst_75 {dimension_numbers = #tpu.dot_dimension_numbers<[1], [0], [0], [1], [0, 0, 1, 1], [], []>} : vector<16x32xf32>, vector<32x32xf32>, vector<16x32xf32> -> vector<16x32xf32>
    %119 = arith.addf %116, %118 : vector<16x32xf32>
    %c224 = arith.constant 224 : index
    %c0_76 = arith.constant 0 : index
    %120 = vector.load %arg14[%c224, %c0_76] : memref<416x32xf32, #tpu.memory_space<vmem>>, vector<32x32xf32>
    %cst_77 = arith.constant dense<0.000000e+00> : vector<16x32xf32>
    %121 = tpu.matmul %97, %120, %cst_77 {dimension_numbers = #tpu.dot_dimension_numbers<[1], [0], [0], [1], [0, 0, 1, 1], [], []>} : vector<16x32xf32>, vector<32x32xf32>, vector<16x32xf32> -> vector<16x32xf32>
    %122 = arith.addf %119, %121 : vector<16x32xf32>
    %c256 = arith.constant 256 : index
    %c0_78 = arith.constant 0 : index
    %123 = vector.load %arg14[%c256, %c0_78] : memref<416x32xf32, #tpu.memory_space<vmem>>, vector<32x32xf32>
    %cst_79 = arith.constant dense<0.000000e+00> : vector<16x32xf32>
    %124 = tpu.matmul %79, %123, %cst_79 {dimension_numbers = #tpu.dot_dimension_numbers<[1], [0], [0], [1], [0, 0, 1, 1], [], []>} : vector<16x32xf32>, vector<32x32xf32>, vector<16x32xf32> -> vector<16x32xf32>
    %125 = arith.addf %122, %124 : vector<16x32xf32>
    %126 = vector.broadcast %32 : vector<16x1xf32> to vector<16x32xf32>
    %127 = arith.mulf %125, %126 : vector<16x32xf32>
    %128 = arith.addf %114, %127 : vector<16x32xf32>
    %c288 = arith.constant 288 : index
    %c0_80 = arith.constant 0 : index
    %129 = vector.load %arg14[%c288, %c0_80] : memref<416x32xf32, #tpu.memory_space<vmem>>, vector<32x32xf32>
    %cst_81 = arith.constant dense<0.000000e+00> : vector<16x32xf32>
    %130 = tpu.matmul %64, %129, %cst_81 {dimension_numbers = #tpu.dot_dimension_numbers<[1], [0], [0], [1], [0, 0, 1, 1], [], []>} : vector<16x32xf32>, vector<32x32xf32>, vector<16x32xf32> -> vector<16x32xf32>
    %c320 = arith.constant 320 : index
    %c0_82 = arith.constant 0 : index
    %131 = vector.load %arg14[%c320, %c0_82] : memref<416x32xf32, #tpu.memory_space<vmem>>, vector<32x32xf32>
    %cst_83 = arith.constant dense<0.000000e+00> : vector<16x32xf32>
    %132 = tpu.matmul %88, %131, %cst_83 {dimension_numbers = #tpu.dot_dimension_numbers<[1], [0], [0], [1], [0, 0, 1, 1], [], []>} : vector<16x32xf32>, vector<32x32xf32>, vector<16x32xf32> -> vector<16x32xf32>
    %133 = arith.addf %130, %132 : vector<16x32xf32>
    %c352 = arith.constant 352 : index
    %c0_84 = arith.constant 0 : index
    %134 = vector.load %arg14[%c352, %c0_84] : memref<416x32xf32, #tpu.memory_space<vmem>>, vector<32x32xf32>
    %cst_85 = arith.constant dense<0.000000e+00> : vector<16x32xf32>
    %135 = tpu.matmul %97, %134, %cst_85 {dimension_numbers = #tpu.dot_dimension_numbers<[1], [0], [0], [1], [0, 0, 1, 1], [], []>} : vector<16x32xf32>, vector<32x32xf32>, vector<16x32xf32> -> vector<16x32xf32>
    %136 = arith.addf %133, %135 : vector<16x32xf32>
    %c384 = arith.constant 384 : index
    %c0_86 = arith.constant 0 : index
    %137 = vector.load %arg14[%c384, %c0_86] : memref<416x32xf32, #tpu.memory_space<vmem>>, vector<32x32xf32>
    %cst_87 = arith.constant dense<0.000000e+00> : vector<16x32xf32>
    %138 = tpu.matmul %79, %137, %cst_87 {dimension_numbers = #tpu.dot_dimension_numbers<[1], [0], [0], [1], [0, 0, 1, 1], [], []>} : vector<16x32xf32>, vector<32x32xf32>, vector<16x32xf32> -> vector<16x32xf32>
    %139 = arith.addf %136, %138 : vector<16x32xf32>
    %140 = vector.broadcast %38 : vector<16x1xf32> to vector<16x32xf32>
    %141 = arith.mulf %139, %140 : vector<16x32xf32>
    %142 = arith.addf %128, %141 : vector<16x32xf32>
    %c0_88 = arith.constant 0 : index
    %c0_89 = arith.constant 0 : index
    %143 = vector.load %arg16[%c0_88, %c0_89] : memref<1x32xf32, #tpu.memory_space<vmem>>, vector<1x32xf32>
    %144 = vector.broadcast %143 : vector<1x32xf32> to vector<16x32xf32>
    %145 = arith.mulf %142, %144 : vector<16x32xf32>
    %c0_90 = arith.constant 0 : index
    %c0_91 = arith.constant 0 : index
    %146 = vector.load %arg17[%c0_90, %c0_91] : memref<1x32xf32, #tpu.memory_space<vmem>>, vector<1x32xf32>
    %147 = vector.broadcast %146 : vector<1x32xf32> to vector<16x32xf32>
    %148 = arith.addf %145, %147 : vector<16x32xf32>
    %c0_92 = arith.constant 0 : index
    %c0_93 = arith.constant 0 : index
    %149 = vector.load %arg18[%c0_92, %c0_93] : memref<32x32xf32, #tpu.memory_space<vmem>>, vector<32x32xf32>
    %cst_94 = arith.constant dense<0.000000e+00> : vector<16x32xf32>
    %150 = tpu.matmul %148, %149, %cst_94 {dimension_numbers = #tpu.dot_dimension_numbers<[1], [0], [0], [1], [0, 0, 1, 1], [], []>} : vector<16x32xf32>, vector<32x32xf32>, vector<16x32xf32> -> vector<16x32xf32>
    %c0_95 = arith.constant 0 : index
    %c0_96 = arith.constant 0 : index
    %151 = vector.load %arg19[%c0_95, %c0_96] : memref<1x32xf32, #tpu.memory_space<vmem>>, vector<1x32xf32>
    %152 = vector.broadcast %151 : vector<1x32xf32> to vector<16x32xf32>
    %153 = arith.addf %150, %152 : vector<16x32xf32>
    %cst_97 = arith.constant 0.000000e+00 : f32
    %154 = vector.broadcast %cst_97 : f32 to vector<16x32xf32>
    %155 = arith.cmpf oge, %153, %154 : vector<16x32xf32>
    %cst_98 = arith.constant 0.00999999977 : f32
    %156 = vector.broadcast %cst_98 : f32 to vector<16x32xf32>
    %157 = arith.mulf %156, %153 : vector<16x32xf32>
    %158 = arith.select %155, %153, %157 : vector<16x32xi1>, vector<16x32xf32>
    %159 = arith.addf %158, %6 : vector<16x32xf32>
    %cst_99 = arith.constant dense<0.000000e+00> : vector<48x32xf32>
    %160 = tpu.matmul %15, %159, %cst_99 {dimension_numbers = #tpu.dot_dimension_numbers<[1], [0], [0], [1], [0, 0, 1, 1], [], []>} : vector<48x16xf32>, vector<16x32xf32>, vector<48x32xf32> -> vector<48x32xf32>
    %cst_100 = arith.constant dense<0.000000e+00> : vector<48x32xf32>
    %161 = tpu.matmul %17, %159, %cst_100 {dimension_numbers = #tpu.dot_dimension_numbers<[1], [0], [0], [1], [0, 0, 1, 1], [], []>} : vector<48x16xf32>, vector<16x32xf32>, vector<48x32xf32> -> vector<48x32xf32>
    %c0_101 = arith.constant 0 : index
    %c0_102 = arith.constant 0 : index
    %162 = vector.load %arg20[%c0_101, %c0_102] : memref<32x32xf32, #tpu.memory_space<vmem>>, vector<32x32xf32>
    %cst_103 = arith.constant dense<0.000000e+00> : vector<48x32xf32>
    %163 = tpu.matmul %160, %162, %cst_103 {dimension_numbers = #tpu.dot_dimension_numbers<[1], [0], [0], [1], [0, 0, 1, 1], [], []>} : vector<48x32xf32>, vector<32x32xf32>, vector<48x32xf32> -> vector<48x32xf32>
    %c0_104 = arith.constant 0 : index
    %c0_105 = arith.constant 0 : index
    %164 = vector.load %arg21[%c0_104, %c0_105] : memref<32x32xf32, #tpu.memory_space<vmem>>, vector<32x32xf32>
    %cst_106 = arith.constant dense<0.000000e+00> : vector<48x32xf32>
    %165 = tpu.matmul %161, %164, %cst_106 {dimension_numbers = #tpu.dot_dimension_numbers<[1], [0], [0], [1], [0, 0, 1, 1], [], []>} : vector<48x32xf32>, vector<32x32xf32>, vector<48x32xf32> -> vector<48x32xf32>
    %166 = arith.addf %163, %165 : vector<48x32xf32>
    %c0_107 = arith.constant 0 : index
    %c0_108 = arith.constant 0 : index
    %167 = vector.load %arg22[%c0_107, %c0_108] : memref<32x32xf32, #tpu.memory_space<vmem>>, vector<32x32xf32>
    %cst_109 = arith.constant dense<0.000000e+00> : vector<48x32xf32>
    %168 = tpu.matmul %13, %167, %cst_109 {dimension_numbers = #tpu.dot_dimension_numbers<[1], [0], [0], [1], [0, 0, 1, 1], [], []>} : vector<48x32xf32>, vector<32x32xf32>, vector<48x32xf32> -> vector<48x32xf32>
    %169 = arith.addf %166, %168 : vector<48x32xf32>
    %c0_110 = arith.constant 0 : index
    %c0_111 = arith.constant 0 : index
    %170 = vector.load %arg23[%c0_110, %c0_111] : memref<1x32xf32, #tpu.memory_space<vmem>>, vector<1x32xf32>
    %171 = vector.broadcast %170 : vector<1x32xf32> to vector<48x32xf32>
    %172 = arith.addf %169, %171 : vector<48x32xf32>
    %cst_112 = arith.constant dense<0.000000e+00> : vector<16x32xf32>
    %173 = tpu.matmul %19, %172, %cst_112 {dimension_numbers = #tpu.dot_dimension_numbers<[1], [0], [0], [1], [0, 0, 1, 1], [], []>} : vector<16x48xf32>, vector<48x32xf32>, vector<16x32xf32> -> vector<16x32xf32>
    %174 = vector.broadcast %27 : vector<16x1xf32> to vector<16x32xf32>
    %175 = arith.mulf %173, %174 : vector<16x32xf32>
    %176 = vector.shape_cast %172 : vector<48x32xf32> to vector<48x1x32xf32>
    %177 = vector.broadcast %176 : vector<48x1x32xf32> to vector<48x16x32xf32>
    %178 = vector.broadcast %43 : vector<48x16x1xf32> to vector<48x16x32xf32>
    %179 = arith.addf %177, %178 : vector<48x16x32xf32>
    %cst_113 = arith.constant dense<0xFF800000> : vector<16x32xf32>
    %180 = vector.multi_reduction <maximumf>, %179, %cst_113 [0] : vector<48x16x32xf32> to vector<16x32xf32>
    %cst_114 = arith.constant 0.000000e+00 : f32
    %181 = vector.shape_cast %23 : vector<16x1xi1> to vector<16x1xi1>
    %182 = vector.broadcast %181 : vector<16x1xi1> to vector<16x32xi1>
    %183 = vector.broadcast %cst_114 : f32 to vector<16x32xf32>
    %184 = arith.select %182, %180, %183 : vector<16x32xi1>, vector<16x32xf32>
    %c0_115 = arith.constant 0 : index
    %c0_116 = arith.constant 0 : index
    %185 = vector.load %arg24[%c0_115, %c0_116] : memref<224x32xf32, #tpu.memory_space<vmem>>, vector<32x32xf32>
    %cst_117 = arith.constant dense<0.000000e+00> : vector<16x32xf32>
    %186 = tpu.matmul %159, %185, %cst_117 {dimension_numbers = #tpu.dot_dimension_numbers<[1], [0], [0], [1], [0, 0, 1, 1], [], []>} : vector<16x32xf32>, vector<32x32xf32>, vector<16x32xf32> -> vector<16x32xf32>
    %c0_118 = arith.constant 0 : index
    %c0_119 = arith.constant 0 : index
    %187 = vector.load %arg25[%c0_118, %c0_119] : memref<1x32xf32, #tpu.memory_space<vmem>>, vector<1x32xf32>
    %188 = vector.broadcast %187 : vector<1x32xf32> to vector<16x32xf32>
    %189 = arith.addf %186, %188 : vector<16x32xf32>
    %c32_120 = arith.constant 32 : index
    %c0_121 = arith.constant 0 : index
    %190 = vector.load %arg24[%c32_120, %c0_121] : memref<224x32xf32, #tpu.memory_space<vmem>>, vector<32x32xf32>
    %cst_122 = arith.constant dense<0.000000e+00> : vector<16x32xf32>
    %191 = tpu.matmul %175, %190, %cst_122 {dimension_numbers = #tpu.dot_dimension_numbers<[1], [0], [0], [1], [0, 0, 1, 1], [], []>} : vector<16x32xf32>, vector<32x32xf32>, vector<16x32xf32> -> vector<16x32xf32>
    %c64_123 = arith.constant 64 : index
    %c0_124 = arith.constant 0 : index
    %192 = vector.load %arg24[%c64_123, %c0_124] : memref<224x32xf32, #tpu.memory_space<vmem>>, vector<32x32xf32>
    %cst_125 = arith.constant dense<0.000000e+00> : vector<16x32xf32>
    %193 = tpu.matmul %184, %192, %cst_125 {dimension_numbers = #tpu.dot_dimension_numbers<[1], [0], [0], [1], [0, 0, 1, 1], [], []>} : vector<16x32xf32>, vector<32x32xf32>, vector<16x32xf32> -> vector<16x32xf32>
    %194 = arith.addf %191, %193 : vector<16x32xf32>
    %c96_126 = arith.constant 96 : index
    %c0_127 = arith.constant 0 : index
    %195 = vector.load %arg24[%c96_126, %c0_127] : memref<224x32xf32, #tpu.memory_space<vmem>>, vector<32x32xf32>
    %cst_128 = arith.constant dense<0.000000e+00> : vector<16x32xf32>
    %196 = tpu.matmul %173, %195, %cst_128 {dimension_numbers = #tpu.dot_dimension_numbers<[1], [0], [0], [1], [0, 0, 1, 1], [], []>} : vector<16x32xf32>, vector<32x32xf32>, vector<16x32xf32> -> vector<16x32xf32>
    %197 = arith.addf %194, %196 : vector<16x32xf32>
    %198 = arith.addf %189, %197 : vector<16x32xf32>
    %c128_129 = arith.constant 128 : index
    %c0_130 = arith.constant 0 : index
    %199 = vector.load %arg24[%c128_129, %c0_130] : memref<224x32xf32, #tpu.memory_space<vmem>>, vector<32x32xf32>
    %cst_131 = arith.constant dense<0.000000e+00> : vector<16x32xf32>
    %200 = tpu.matmul %175, %199, %cst_131 {dimension_numbers = #tpu.dot_dimension_numbers<[1], [0], [0], [1], [0, 0, 1, 1], [], []>} : vector<16x32xf32>, vector<32x32xf32>, vector<16x32xf32> -> vector<16x32xf32>
    %c160_132 = arith.constant 160 : index
    %c0_133 = arith.constant 0 : index
    %201 = vector.load %arg24[%c160_132, %c0_133] : memref<224x32xf32, #tpu.memory_space<vmem>>, vector<32x32xf32>
    %cst_134 = arith.constant dense<0.000000e+00> : vector<16x32xf32>
    %202 = tpu.matmul %184, %201, %cst_134 {dimension_numbers = #tpu.dot_dimension_numbers<[1], [0], [0], [1], [0, 0, 1, 1], [], []>} : vector<16x32xf32>, vector<32x32xf32>, vector<16x32xf32> -> vector<16x32xf32>
    %203 = arith.addf %200, %202 : vector<16x32xf32>
    %c192_135 = arith.constant 192 : index
    %c0_136 = arith.constant 0 : index
    %204 = vector.load %arg24[%c192_135, %c0_136] : memref<224x32xf32, #tpu.memory_space<vmem>>, vector<32x32xf32>
    %cst_137 = arith.constant dense<0.000000e+00> : vector<16x32xf32>
    %205 = tpu.matmul %173, %204, %cst_137 {dimension_numbers = #tpu.dot_dimension_numbers<[1], [0], [0], [1], [0, 0, 1, 1], [], []>} : vector<16x32xf32>, vector<32x32xf32>, vector<16x32xf32> -> vector<16x32xf32>
    %206 = arith.addf %203, %205 : vector<16x32xf32>
    %207 = vector.broadcast %32 : vector<16x1xf32> to vector<16x32xf32>
    %208 = arith.mulf %206, %207 : vector<16x32xf32>
    %209 = arith.addf %198, %208 : vector<16x32xf32>
    %c0_138 = arith.constant 0 : index
    %c0_139 = arith.constant 0 : index
    %210 = vector.load %arg26[%c0_138, %c0_139] : memref<1x32xf32, #tpu.memory_space<vmem>>, vector<1x32xf32>
    %211 = vector.broadcast %210 : vector<1x32xf32> to vector<16x32xf32>
    %212 = arith.mulf %209, %211 : vector<16x32xf32>
    %c0_140 = arith.constant 0 : index
    %c0_141 = arith.constant 0 : index
    %213 = vector.load %arg27[%c0_140, %c0_141] : memref<1x32xf32, #tpu.memory_space<vmem>>, vector<1x32xf32>
    %214 = vector.broadcast %213 : vector<1x32xf32> to vector<16x32xf32>
    %215 = arith.addf %212, %214 : vector<16x32xf32>
    %c0_142 = arith.constant 0 : index
    %c0_143 = arith.constant 0 : index
    %216 = vector.load %arg28[%c0_142, %c0_143] : memref<32x32xf32, #tpu.memory_space<vmem>>, vector<32x32xf32>
    %cst_144 = arith.constant dense<0.000000e+00> : vector<16x32xf32>
    %217 = tpu.matmul %215, %216, %cst_144 {dimension_numbers = #tpu.dot_dimension_numbers<[1], [0], [0], [1], [0, 0, 1, 1], [], []>} : vector<16x32xf32>, vector<32x32xf32>, vector<16x32xf32> -> vector<16x32xf32>
    %c0_145 = arith.constant 0 : index
    %c0_146 = arith.constant 0 : index
    %218 = vector.load %arg29[%c0_145, %c0_146] : memref<1x32xf32, #tpu.memory_space<vmem>>, vector<1x32xf32>
    %219 = vector.broadcast %218 : vector<1x32xf32> to vector<16x32xf32>
    %220 = arith.addf %217, %219 : vector<16x32xf32>
    %cst_147 = arith.constant 0.000000e+00 : f32
    %221 = vector.broadcast %cst_147 : f32 to vector<16x32xf32>
    %222 = arith.cmpf oge, %220, %221 : vector<16x32xf32>
    %cst_148 = arith.constant 0.00999999977 : f32
    %223 = vector.broadcast %cst_148 : f32 to vector<16x32xf32>
    %224 = arith.mulf %223, %220 : vector<16x32xf32>
    %225 = arith.select %222, %220, %224 : vector<16x32xi1>, vector<16x32xf32>
    %226 = arith.addf %225, %159 : vector<16x32xf32>
    %cst_149 = arith.constant dense<0.000000e+00> : vector<32xf32>
    %227 = vector.multi_reduction <add>, %226, %cst_149 [0] : vector<16x32xf32> to vector<32xf32>
    %228 = vector.shape_cast %227 : vector<32xf32> to vector<1x32xf32>
    %cst_150 = arith.constant 6.250000e-02 : f32
    %229 = vector.broadcast %cst_150 : f32 to vector<1x32xf32>
    %230 = arith.mulf %228, %229 : vector<1x32xf32>
    %c0_151 = arith.constant 0 : index
    %c0_152 = arith.constant 0 : index
    %231 = vector.load %arg30[%c0_151, %c0_152] : memref<32x16xf32, #tpu.memory_space<vmem>>, vector<32x16xf32>
    %cst_153 = arith.constant dense<0.000000e+00> : vector<1x16xf32>
    %232 = tpu.matmul %230, %231, %cst_153 {dimension_numbers = #tpu.dot_dimension_numbers<[1], [0], [0], [1], [0, 0, 1, 1], [], []>} : vector<1x32xf32>, vector<32x16xf32>, vector<1x16xf32> -> vector<1x16xf32>
    %c0_154 = arith.constant 0 : index
    %c0_155 = arith.constant 0 : index
    %233 = vector.load %arg31[%c0_154, %c0_155] : memref<1x16xf32, #tpu.memory_space<vmem>>, vector<1x16xf32>
    %234 = arith.addf %232, %233 : vector<1x16xf32>
    %cst_156 = arith.constant 0.000000e+00 : f32
    %235 = vector.broadcast %cst_156 : f32 to vector<1x16xf32>
    %236 = arith.maximumf %234, %235 : vector<1x16xf32>
    %c0_157 = arith.constant 0 : index
    %c0_158 = arith.constant 0 : index
    %237 = vector.load %arg32[%c0_157, %c0_158] : memref<16x8xf32, #tpu.memory_space<vmem>>, vector<16x8xf32>
    %cst_159 = arith.constant dense<0.000000e+00> : vector<1x8xf32>
    %238 = tpu.matmul %236, %237, %cst_159 {dimension_numbers = #tpu.dot_dimension_numbers<[1], [0], [0], [1], [0, 0, 1, 1], [], []>} : vector<1x16xf32>, vector<16x8xf32>, vector<1x8xf32> -> vector<1x8xf32>
    %c0_160 = arith.constant 0 : index
    %c0_161 = arith.constant 0 : index
    %239 = vector.load %arg33[%c0_160, %c0_161] : memref<1x8xf32, #tpu.memory_space<vmem>>, vector<1x8xf32>
    %240 = arith.addf %238, %239 : vector<1x8xf32>
    %cst_162 = arith.constant 0.000000e+00 : f32
    %241 = vector.broadcast %cst_162 : f32 to vector<1x8xf32>
    %242 = arith.maximumf %240, %241 : vector<1x8xf32>
    %c0_163 = arith.constant 0 : index
    %c0_164 = arith.constant 0 : index
    %243 = vector.load %arg34[%c0_163, %c0_164] : memref<8x2xf32, #tpu.memory_space<vmem>>, vector<8x2xf32>
    %cst_165 = arith.constant dense<0.000000e+00> : vector<1x2xf32>
    %244 = tpu.matmul %242, %243, %cst_165 {dimension_numbers = #tpu.dot_dimension_numbers<[1], [0], [0], [1], [0, 0, 1, 1], [], []>} : vector<1x8xf32>, vector<8x2xf32>, vector<1x2xf32> -> vector<1x2xf32>
    %c0_166 = arith.constant 0 : index
    %c0_167 = arith.constant 0 : index
    %245 = vector.load %arg35[%c0_166, %c0_167] : memref<1x2xf32, #tpu.memory_space<vmem>>, vector<1x2xf32>
    %246 = arith.addf %244, %245 : vector<1x2xf32>
    %c0_168 = arith.constant 0 : index
    %c0_169 = arith.constant 0 : index
    %c0_170 = arith.constant 0 : index
    %247 = vector.load %arg36[%c0_168, %c0_169, %c0_170] : memref<1x1x2xf32, #tpu.memory_space<vmem>>, vector<1x1x2xf32>
    %248 = vector.shape_cast %247 : vector<1x1x2xf32> to vector<1x2xf32>
    %249 = vector.shape_cast %246 : vector<1x2xf32> to vector<1x1x2xf32>
    tpu.vector_store %arg36[%c0_168, %c0_169, %c0_170], %249 {strides = array<i32>} : memref<1x1x2xf32, #tpu.memory_space<vmem>>, vector<1x1x2xf32>,
    return
  }
  func.func @transform_0(%arg0: i32) -> (i32, i32, i32) {
    %c0_i32 = arith.constant 0 : i32
    %c0_i32_0 = arith.constant 0 : i32
    %c0_i32_1 = arith.constant 0 : i32
    return %arg0, %c0_i32, %c0_i32_0 : i32, i32, i32
  }
  func.func @transform_1(%arg0: i32) -> (i32, i32, i32) {
    %c0_i32 = arith.constant 0 : i32
    %c0_i32_0 = arith.constant 0 : i32
    %c0_i32_1 = arith.constant 0 : i32
    return %arg0, %c0_i32, %c0_i32_0 : i32, i32, i32
  }
  func.func @transform_2(%arg0: i32) -> (i32, i32, i32) {
    %c0_i32 = arith.constant 0 : i32
    %c0_i32_0 = arith.constant 0 : i32
    %c0_i32_1 = arith.constant 0 : i32
    return %arg0, %c0_i32, %c0_i32_0 : i32, i32, i32
  }
  func.func @transform_3(%arg0: i32) -> (i32, i32, i32) {
    %c0_i32 = arith.constant 0 : i32
    %c0_i32_0 = arith.constant 0 : i32
    %c0_i32_1 = arith.constant 0 : i32
    return %arg0, %c0_i32, %c0_i32_0 : i32, i32, i32
  }
  func.func @transform_4(%arg0: i32) -> (i32, i32, i32) {
    %c0_i32 = arith.constant 0 : i32
    %c0_i32_0 = arith.constant 0 : i32
    %c0_i32_1 = arith.constant 0 : i32
    return %arg0, %c0_i32, %c0_i32_0 : i32, i32, i32
  }
  func.func @transform_5(%arg0: i32) -> (i32, i32) {
    %c0_i32 = arith.constant 0 : i32
    %c0_i32_0 = arith.constant 0 : i32
    %c0_i32_1 = arith.constant 0 : i32
    return %c0_i32, %c0_i32_0 : i32, i32
  }
  func.func @transform_6(%arg0: i32) -> (i32, i32) {
    %c0_i32 = arith.constant 0 : i32
    %c0_i32_0 = arith.constant 0 : i32
    %c0_i32_1 = arith.constant 0 : i32
    return %c0_i32, %c0_i32_0 : i32, i32
  }
  func.func @transform_7(%arg0: i32) -> (i32, i32) {
    %c0_i32 = arith.constant 0 : i32
    %c0_i32_0 = arith.constant 0 : i32
    %c0_i32_1 = arith.constant 0 : i32
    return %c0_i32, %c0_i32_0 : i32, i32
  }
  func.func @transform_8(%arg0: i32) -> (i32, i32) {
    %c0_i32 = arith.constant 0 : i32
    %c0_i32_0 = arith.constant 0 : i32
    %c0_i32_1 = arith.constant 0 : i32
    return %c0_i32, %c0_i32_0 : i32, i32
  }
  func.func @transform_9(%arg0: i32) -> (i32, i32) {
    %c0_i32 = arith.constant 0 : i32
    %c0_i32_0 = arith.constant 0 : i32
    %c0_i32_1 = arith.constant 0 : i32
    return %c0_i32, %c0_i32_0 : i32, i32
  }
  func.func @transform_10(%arg0: i32) -> (i32, i32) {
    %c0_i32 = arith.constant 0 : i32
    %c0_i32_0 = arith.constant 0 : i32
    %c0_i32_1 = arith.constant 0 : i32
    return %c0_i32, %c0_i32_0 : i32, i32
  }
  func.func @transform_11(%arg0: i32) -> (i32, i32) {
    %c0_i32 = arith.constant 0 : i32
    %c0_i32_0 = arith.constant 0 : i32
    %c0_i32_1 = arith.constant 0 : i32
    return %c0_i32, %c0_i32_0 : i32, i32
  }
  func.func @transform_12(%arg0: i32) -> (i32, i32) {
    %c0_i32 = arith.constant 0 : i32
    %c0_i32_0 = arith.constant 0 : i32
    %c0_i32_1 = arith.constant 0 : i32
    return %c0_i32, %c0_i32_0 : i32, i32
  }
  func.func @transform_13(%arg0: i32) -> (i32, i32) {
    %c0_i32 = arith.constant 0 : i32
    %c0_i32_0 = arith.constant 0 : i32
    %c0_i32_1 = arith.constant 0 : i32
    return %c0_i32, %c0_i32_0 : i32, i32
  }
  func.func @transform_14(%arg0: i32) -> (i32, i32) {
    %c0_i32 = arith.constant 0 : i32
    %c0_i32_0 = arith.constant 0 : i32
    %c0_i32_1 = arith.constant 0 : i32
    return %c0_i32, %c0_i32_0 : i32, i32
  }
  func.func @transform_15(%arg0: i32) -> (i32, i32) {
    %c0_i32 = arith.constant 0 : i32
    %c0_i32_0 = arith.constant 0 : i32
    %c0_i32_1 = arith.constant 0 : i32
    return %c0_i32, %c0_i32_0 : i32, i32
  }
  func.func @transform_16(%arg0: i32) -> (i32, i32) {
    %c0_i32 = arith.constant 0 : i32
    %c0_i32_0 = arith.constant 0 : i32
    %c0_i32_1 = arith.constant 0 : i32
    return %c0_i32, %c0_i32_0 : i32, i32
  }
  func.func @transform_17(%arg0: i32) -> (i32, i32) {
    %c0_i32 = arith.constant 0 : i32
    %c0_i32_0 = arith.constant 0 : i32
    %c0_i32_1 = arith.constant 0 : i32
    return %c0_i32, %c0_i32_0 : i32, i32
  }
  func.func @transform_18(%arg0: i32) -> (i32, i32) {
    %c0_i32 = arith.constant 0 : i32
    %c0_i32_0 = arith.constant 0 : i32
    %c0_i32_1 = arith.constant 0 : i32
    return %c0_i32, %c0_i32_0 : i32, i32
  }
  func.func @transform_19(%arg0: i32) -> (i32, i32) {
    %c0_i32 = arith.constant 0 : i32
    %c0_i32_0 = arith.constant 0 : i32
    %c0_i32_1 = arith.constant 0 : i32
    return %c0_i32, %c0_i32_0 : i32, i32
  }
  func.func @transform_20(%arg0: i32) -> (i32, i32) {
    %c0_i32 = arith.constant 0 : i32
    %c0_i32_0 = arith.constant 0 : i32
    %c0_i32_1 = arith.constant 0 : i32
    return %c0_i32, %c0_i32_0 : i32, i32
  }
  func.func @transform_21(%arg0: i32) -> (i32, i32) {
    %c0_i32 = arith.constant 0 : i32
    %c0_i32_0 = arith.constant 0 : i32
    %c0_i32_1 = arith.constant 0 : i32
    return %c0_i32, %c0_i32_0 : i32, i32
  }
  func.func @transform_22(%arg0: i32) -> (i32, i32) {
    %c0_i32 = arith.constant 0 : i32
    %c0_i32_0 = arith.constant 0 : i32
    %c0_i32_1 = arith.constant 0 : i32
    return %c0_i32, %c0_i32_0 : i32, i32
  }
  func.func @transform_23(%arg0: i32) -> (i32, i32) {
    %c0_i32 = arith.constant 0 : i32
    %c0_i32_0 = arith.constant 0 : i32
    %c0_i32_1 = arith.constant 0 : i32
    return %c0_i32, %c0_i32_0 : i32, i32
  }
  func.func @transform_24(%arg0: i32) -> (i32, i32) {
    %c0_i32 = arith.constant 0 : i32
    %c0_i32_0 = arith.constant 0 : i32
    %c0_i32_1 = arith.constant 0 : i32
    return %c0_i32, %c0_i32_0 : i32, i32
  }
  func.func @transform_25(%arg0: i32) -> (i32, i32) {
    %c0_i32 = arith.constant 0 : i32
    %c0_i32_0 = arith.constant 0 : i32
    %c0_i32_1 = arith.constant 0 : i32
    return %c0_i32, %c0_i32_0 : i32, i32
  }
  func.func @transform_26(%arg0: i32) -> (i32, i32) {
    %c0_i32 = arith.constant 0 : i32
    %c0_i32_0 = arith.constant 0 : i32
    %c0_i32_1 = arith.constant 0 : i32
    return %c0_i32, %c0_i32_0 : i32, i32
  }
  func.func @transform_27(%arg0: i32) -> (i32, i32) {
    %c0_i32 = arith.constant 0 : i32
    %c0_i32_0 = arith.constant 0 : i32
    %c0_i32_1 = arith.constant 0 : i32
    return %c0_i32, %c0_i32_0 : i32, i32
  }
  func.func @transform_28(%arg0: i32) -> (i32, i32) {
    %c0_i32 = arith.constant 0 : i32
    %c0_i32_0 = arith.constant 0 : i32
    %c0_i32_1 = arith.constant 0 : i32
    return %c0_i32, %c0_i32_0 : i32, i32
  }
  func.func @transform_29(%arg0: i32) -> (i32, i32) {
    %c0_i32 = arith.constant 0 : i32
    %c0_i32_0 = arith.constant 0 : i32
    %c0_i32_1 = arith.constant 0 : i32
    return %c0_i32, %c0_i32_0 : i32, i32
  }
  func.func @transform_30(%arg0: i32) -> (i32, i32) {
    %c0_i32 = arith.constant 0 : i32
    %c0_i32_0 = arith.constant 0 : i32
    %c0_i32_1 = arith.constant 0 : i32
    return %c0_i32, %c0_i32_0 : i32, i32
  }
  func.func @transform_31(%arg0: i32) -> (i32, i32) {
    %c0_i32 = arith.constant 0 : i32
    %c0_i32_0 = arith.constant 0 : i32
    %c0_i32_1 = arith.constant 0 : i32
    return %c0_i32, %c0_i32_0 : i32, i32
  }
  func.func @transform_32(%arg0: i32) -> (i32, i32) {
    %c0_i32 = arith.constant 0 : i32
    %c0_i32_0 = arith.constant 0 : i32
    %c0_i32_1 = arith.constant 0 : i32
    return %c0_i32, %c0_i32_0 : i32, i32
  }
  func.func @transform_33(%arg0: i32) -> (i32, i32) {
    %c0_i32 = arith.constant 0 : i32
    %c0_i32_0 = arith.constant 0 : i32
    %c0_i32_1 = arith.constant 0 : i32
    return %c0_i32, %c0_i32_0 : i32, i32
  }
  func.func @transform_34(%arg0: i32) -> (i32, i32) {
    %c0_i32 = arith.constant 0 : i32
    %c0_i32_0 = arith.constant 0 : i32
    %c0_i32_1 = arith.constant 0 : i32
    return %c0_i32, %c0_i32_0 : i32, i32
  }
  func.func @transform_35(%arg0: i32) -> (i32, i32, i32) {
    %c0_i32 = arith.constant 0 : i32
    %c0_i32_0 = arith.constant 0 : i32
    %c0_i32_1 = arith.constant 0 : i32
    return %arg0, %c0_i32, %c0_i32_0 : i32, i32, i32
  }
}

</mosaic_0001>

<llo_original>
// kernel: _lambda_.1
$region0: #{_lambda_.1}
  #allocation0 [shape = 'u32[]', space=smem, size = 0x4, offset = 0x4, fixed_abs, tag = 'smem constant byte address 0x4 - core index']
  #allocation1 [shape = 'u32[72,128]{1,0:T(1,128)}', space=vmem, size = 0x9000, scoped, tag = 'internal scratch']
  %s0 = inlined_call_operand.smem [shape: u32[36], index: -1, kind: input, shape index: {}]
  %s1 = sld [smem:[%s0]]
  %s2 = scalar_lea.smem %s0, 1
  %s3 = sld [smem:[%s2]]
  %s4 = scalar_lea.smem %s0, 2
  %s5 = sld [smem:[%s4]]
  %s6 = scalar_lea.smem %s0, 3
  %s7 = sld [smem:[%s6]]
  %s8 = scalar_lea.smem %s0, 4
  %s9 = sld [smem:[%s8]]
  %s10 = scalar_lea.smem %s0, 5
  %s11 = sld [smem:[%s10]]
  %s12 = scalar_lea.smem %s0, 6
  %s13 = sld [smem:[%s12]]
  %s14 = scalar_lea.smem %s0, 7
  %s15 = sld [smem:[%s14]]
  %s16 = scalar_lea.smem %s0, 8
  %s17 = sld [smem:[%s16]]
  %s18 = scalar_lea.smem %s0, 9
  %s19 = sld [smem:[%s18]]
  %s20 = scalar_lea.smem %s0, 10
  %s21 = sld [smem:[%s20]]
  %s22 = scalar_lea.smem %s0, 11
  %s23 = sld [smem:[%s22]]
  %s24 = scalar_lea.smem %s0, 12
  %s25 = sld [smem:[%s24]]
  %s26 = scalar_lea.smem %s0, 13
  %s27 = sld [smem:[%s26]]
  %s28 = scalar_lea.smem %s0, 14
  %s29 = sld [smem:[%s28]]
  %s30 = scalar_lea.smem %s0, 15
  %s31 = sld [smem:[%s30]]
  %s32 = scalar_lea.smem %s0, 16
  %s33 = sld [smem:[%s32]]
  %s34 = scalar_lea.smem %s0, 17
  %s35 = sld [smem:[%s34]]
  %s36 = scalar_lea.smem %s0, 18
  %s37 = sld [smem:[%s36]]
  %s38 = scalar_lea.smem %s0, 19
  %s39 = sld [smem:[%s38]]
  %s40 = scalar_lea.smem %s0, 20
  %s41 = sld [smem:[%s40]]
  %s42 = scalar_lea.smem %s0, 21
  %s43 = sld [smem:[%s42]]
  %s44 = scalar_lea.smem %s0, 22
  %s45 = sld [smem:[%s44]]
  %s46 = scalar_lea.smem %s0, 23
  %s47 = sld [smem:[%s46]]
  %s48 = scalar_lea.smem %s0, 24
  %s49 = sld [smem:[%s48]]
  %s50 = scalar_lea.smem %s0, 25
  %s51 = sld [smem:[%s50]]
  %s52 = scalar_lea.smem %s0, 26
  %s53 = sld [smem:[%s52]]
  %s54 = scalar_lea.smem %s0, 27
  %s55 = sld [smem:[%s54]]
  %s56 = scalar_lea.smem %s0, 28
  %s57 = sld [smem:[%s56]]
  %s58 = scalar_lea.smem %s0, 29
  %s59 = sld [smem:[%s58]]
  %s60 = scalar_lea.smem %s0, 30
  %s61 = sld [smem:[%s60]]
  %s62 = scalar_lea.smem %s0, 31
  %s63 = sld [smem:[%s62]]
  %s64 = scalar_lea.smem %s0, 32
  %s65 = sld [smem:[%s64]]
  %s66 = scalar_lea.smem %s0, 33
  %s67 = sld [smem:[%s66]]
  %s68 = scalar_lea.smem %s0, 34
  %s69 = sld [smem:[%s68]]
  %s70 = scalar_lea.smem %s0, 35
  %s71 = sld [smem:[%s70]]
  %s72 = sld [smem:[#allocation0]]
  $region229: #{_lambda_.1} parent=0
    _
  %s74 = ssub.s32 1, %s72
  %s75 = scalar_select 0, %s74, %s72
  $region1: #{_lambda_.1} parent=0
    #allocation2 [shape = 'u8[8192]{0}', space=vmem, size = 0x2000, scoped, tag = 'input window, operand 5, single buffered']
    #allocation3 [shape = 's32[2]{0}', space=sflag, size = 0x8, scoped, tag = 'scoped memory for _lambda_.1']
    #allocation4 [shape = 'u8[4096]{0}', space=vmem, size = 0x1000, scoped, tag = 'input window, operand 7, single buffered']
    #allocation5 [shape = 's32[1]{0}', space=sflag, size = 0x4, scoped, tag = 'scoped memory for _lambda_.1']
    #allocation6 [shape = 'u8[16384]{0}', space=vmem, size = 0x4000, scoped, tag = 'input window, operand 9, single buffered']
    #allocation7 [shape = 'u8[16384]{0}', space=vmem, size = 0x4000, scoped, tag = 'input window, operand 10, single buffered']
    #allocation8 [shape = 's32[1]{0}', space=sflag, size = 0x4, scoped, tag = 'scoped memory for _lambda_.1']
    #allocation9 [shape = 'u8[16384]{0}', space=vmem, size = 0x4000, scoped, tag = 'input window, operand 11, single buffered']
    #allocation10 [shape = 'u8[16384]{0}', space=vmem, size = 0x4000, scoped, tag = 'input window, operand 17, single buffered']
    #allocation11 [shape = 's32[1]{0}', space=sflag, size = 0x4, scoped, tag = 'scoped memory for _lambda_.1']
    #allocation12 [shape = 'u8[16384]{0}', space=vmem, size = 0x4000, scoped, tag = 'input window, operand 19, single buffered']
    #allocation13 [shape = 'u8[16384]{0}', space=vmem, size = 0x4000, scoped, tag = 'input window, operand 20, single buffered']
    #allocation14 [shape = 's32[1]{0}', space=sflag, size = 0x4, scoped, tag = 'scoped memory for _lambda_.1']
    #allocation15 [shape = 'u8[16384]{0}', space=vmem, size = 0x4000, scoped, tag = 'input window, operand 21, single buffered']
    #allocation16 [shape = 'u8[512]{0}', space=vmem, size = 0x400, scoped, tag = 'input window, operand 28, single buffered']
    #allocation17 [shape = 's32[1]{0}', space=sflag, size = 0x4, scoped, tag = 'scoped memory for _lambda_.1']
    #allocation18 [shape = 'u8[512]{0}', space=vmem, size = 0x400, scoped, tag = 'input window, operand 30, single buffered']
    #allocation19 [shape = 'u8[8192]{0}', space=vmem, size = 0x2000, scoped, tag = 'input window, operand 31, single buffered']
    #allocation20 [shape = 's32[1]{0}', space=sflag, size = 0x4, scoped, tag = 'scoped memory for _lambda_.1']
    #allocation21 [shape = 'u8[512]{0}', space=vmem, size = 0x400, scoped, tag = 'input window, operand 32, single buffered']
    #allocation22 [shape = 'u8[512]{0}', space=vmem, size = 0x400, scoped, tag = 'input window, operand 34, single buffered']
    #allocation23 [shape = 's32[1]{0}', space=sflag, size = 0x4, scoped, tag = 'scoped memory for _lambda_.1']
    %76 = vsyncpa [#allocation3], 0
    %77 = vsyncpa [#allocation5], 0
    %78 = vsyncpa [#allocation8], 0
    %79 = vsyncpa [#allocation11], 0
    %80 = vsyncpa [#allocation14], 0
    %81 = vsyncpa [#allocation17], 0
    %82 = vsyncpa [#allocation20], 0
    %83 = vsyncpa [#allocation23], 0
    loop: start=0, step=1, limit=6
    $region2: #{_lambda_.1} parent=1 // loop_pre_header
      _
    $region3: #{_lambda_.1} parent=1 // loop_header
      %s85 = sphi 0, %s89
      %p86 = scmp.ge.s32.totalorder %s85, 6
      %s95 = sphi 0, %s97
      %s98 = sphi 0, %s95
      %s99 = sphi 0, %s98
      %s115 = sphi 0, %s99
      %s121 = sphi 0, %s123
      %s124 = sphi 0, %s121
      %s125 = sphi 0, %s124
      %s141 = sphi 0, %s125
      %s147 = sphi 0, %s149
      %s150 = sphi 0, %s147
      %s151 = sphi 0, %s150
      %s167 = sphi 0, %s151
      %s173 = sphi 0, %s175
      %s176 = sphi 0, %s173
      %s177 = sphi 0, %s176
      %s193 = sphi 0, %s177
      %s199 = sphi 0, %s201
      %s202 = sphi 0, %s199
      %s203 = sphi 0, %s202
      %s219 = sphi 0, %s203
      %s223 = sphi 0, %s223
      %s225 = sphi 0, %s223
      %s226 = sphi 0, %s225
      %s240 = sphi 0, %s226
      %s244 = sphi 0, %s244
      %s246 = sphi 0, %s244
      %s247 = sphi 0, %s246
      %s261 = sphi 0, %s247
      %s265 = sphi 0, %s265
      %s267 = sphi 0, %s265
      %s268 = sphi 0, %s267
      %s282 = sphi 0, %s268
      %s286 = sphi 0, %s286
      %s288 = sphi 0, %s286
      %s289 = sphi 0, %s288
      %s303 = sphi 0, %s289
      %s307 = sphi 0, %s307
      %s309 = sphi 0, %s307
      %s310 = sphi 0, %s309
      %s324 = sphi 0, %s310
      %s328 = sphi 0, %s328
      %s330 = sphi 0, %s328
      %s331 = sphi 0, %s330
      %s345 = sphi 0, %s331
      %s349 = sphi 0, %s349
      %s351 = sphi 0, %s349
      %s352 = sphi 0, %s351
      %s366 = sphi 0, %s352
      %s370 = sphi 0, %s370
      %s372 = sphi 0, %s370
      %s373 = sphi 0, %s372
      %s387 = sphi 0, %s373
      %s391 = sphi 0, %s391
      %s393 = sphi 0, %s391
      %s394 = sphi 0, %s393
      %s408 = sphi 0, %s394
      %s412 = sphi 0, %s412
      %s414 = sphi 0, %s412
      %s415 = sphi 0, %s414
      %s429 = sphi 0, %s415
      %s433 = sphi 0, %s433
      %s435 = sphi 0, %s433
      %s436 = sphi 0, %s435
      %s450 = sphi 0, %s436
      %s454 = sphi 0, %s454
      %s456 = sphi 0, %s454
      %s457 = sphi 0, %s456
      %s471 = sphi 0, %s457
      %s475 = sphi 0, %s475
      %s477 = sphi 0, %s475
      %s478 = sphi 0, %s477
      %s492 = sphi 0, %s478
      %s496 = sphi 0, %s496
      %s498 = sphi 0, %s496
      %s499 = sphi 0, %s498
      %s513 = sphi 0, %s499
      %s517 = sphi 0, %s517
      %s519 = sphi 0, %s517
      %s520 = sphi 0, %s519
      %s534 = sphi 0, %s520
      %s538 = sphi 0, %s538
      %s540 = sphi 0, %s538
      %s541 = sphi 0, %s540
      %s555 = sphi 0, %s541
      %s559 = sphi 0, %s559
      %s561 = sphi 0, %s559
      %s562 = sphi 0, %s561
      %s576 = sphi 0, %s562
      %s580 = sphi 0, %s580
      %s582 = sphi 0, %s580
      %s583 = sphi 0, %s582
      %s597 = sphi 0, %s583
      %s601 = sphi 0, %s601
      %s603 = sphi 0, %s601
      %s604 = sphi 0, %s603
      %s618 = sphi 0, %s604
      %s622 = sphi 0, %s622
      %s624 = sphi 0, %s622
      %s625 = sphi 0, %s624
      %s639 = sphi 0, %s625
      %s643 = sphi 0, %s643
      %s645 = sphi 0, %s643
      %s646 = sphi 0, %s645
      %s660 = sphi 0, %s646
      %s664 = sphi 0, %s664
      %s666 = sphi 0, %s664
      %s667 = sphi 0, %s666
      %s681 = sphi 0, %s667
      %s685 = sphi 0, %s685
      %s687 = sphi 0, %s685
      %s688 = sphi 0, %s687
      %s702 = sphi 0, %s688
      %s706 = sphi 0, %s706
      %s708 = sphi 0, %s706
      %s709 = sphi 0, %s708
      %s723 = sphi 0, %s709
      %s727 = sphi 0, %s727
      %s729 = sphi 0, %s727
      %s730 = sphi 0, %s729
      %s744 = sphi 0, %s730
      %s748 = sphi 0, %s748
      %s750 = sphi 0, %s748
      %s751 = sphi 0, %s750
      %s765 = sphi 0, %s751
      %s769 = sphi 0, %s769
      %s771 = sphi 0, %s769
      %s772 = sphi 0, %s771
      %s786 = sphi 0, %s772
      %s790 = sphi 0, %s790
      %s792 = sphi 0, %s790
      %s793 = sphi 0, %s792
      %s807 = sphi 0, %s793
      %s811 = sphi 0, %s811
      %s813 = sphi 0, %s811
      %s814 = sphi 0, %s813
      %s828 = sphi 0, %s814
      %s832 = sphi 0, %s832
      %s834 = sphi 0, %s832
      %s835 = sphi 0, %s834
      %s849 = sphi 0, %s835
      %s855 = sphi 0, %s857
      %s858 = sphi 0, %s855
      %s859 = sphi 0, %s858
      %s875 = sphi 0, %s859
    $region4: #{_lambda_.1} parent=1 // loop_header_branch
      %88 = sbr.rel (%p86) target = $region8
    $region5: #{_lambda_.1} parent=1 // loop_body
      %s90 = ssub.s32 %s85, 1
      %s91 = ssub.s32 %s85, 2
      %s92 = sadd.s32 %s85, 1
      %s93 = ssub.s32 %s85, %s92
      %p94 = scmp.eq.s32.totalorder %s93, 0
      %s96 = sadd.s32 %s95, 1
      %s97 = scalar_select %p94, %s95, %s96
      %p100 = pneg %p94
      %p101 = scmp.eq.s32.totalorder %s85, 3
      %p102 = por %p100, %p101
      %p103 = scmp.ne.s32.totalorder %s95, %s98
      %p104 = scmp.eq.s32.totalorder %s85, 0
      %p105 = por %p103, %p104
      %p106 = scmp.ne.s32.totalorder %s95, %s98
      %p107 = scmp.eq.s32.totalorder %s90, 3
      %p108 = por %p106, %p107
      %p109 = scmp.ne.s32.totalorder %s98, %s99
      %p110 = scmp.eq.s32.totalorder %s90, 0
      %p111 = por %p109, %p110
      %p112 = scmp.ne.s32.totalorder %s98, %s99
      %p113 = scmp.eq.s32.totalorder %s91, 3
      %p114 = por %p112, %p113
      %p116 = scmp.ne.s32.totalorder %s99, %s115
      %p117 = scmp.eq.s32.totalorder %s91, 0
      %p118 = por %p116, %p117
      %s119 = ssub.s32 %s85, %s92
      %p120 = scmp.eq.s32.totalorder %s119, 0
      %s122 = sadd.s32 %s121, 1
      %s123 = scalar_select %p120, %s121, %s122
      %p126 = pneg %p120
      %p127 = scmp.eq.s32.totalorder %s85, 3
      %p128 = por %p126, %p127
      %p129 = scmp.ne.s32.totalorder %s121, %s124
      %p130 = scmp.eq.s32.totalorder %s85, 0
      %p131 = por %p129, %p130
      %p132 = scmp.ne.s32.totalorder %s121, %s124
      %p133 = scmp.eq.s32.totalorder %s90, 3
      %p134 = por %p132, %p133
      %p135 = scmp.ne.s32.totalorder %s124, %s125
      %p136 = scmp.eq.s32.totalorder %s90, 0
      %p137 = por %p135, %p136
      %p138 = scmp.ne.s32.totalorder %s124, %s125
      %p139 = scmp.eq.s32.totalorder %s91, 3
      %p140 = por %p138, %p139
      %p142 = scmp.ne.s32.totalorder %s125, %s141
      %p143 = scmp.eq.s32.totalorder %s91, 0
      %p144 = por %p142, %p143
      %s145 = ssub.s32 %s85, %s92
      %p146 = scmp.eq.s32.totalorder %s145, 0
      %s148 = sadd.s32 %s147, 1
      %s149 = scalar_select %p146, %s147, %s148
      %p152 = pneg %p146
      %p153 = scmp.eq.s32.totalorder %s85, 3
      %p154 = por %p152, %p153
      %p155 = scmp.ne.s32.totalorder %s147, %s150
      %p156 = scmp.eq.s32.totalorder %s85, 0
      %p157 = por %p155, %p156
      %p158 = scmp.ne.s32.totalorder %s147, %s150
      %p159 = scmp.eq.s32.totalorder %s90, 3
      %p160 = por %p158, %p159
      %p161 = scmp.ne.s32.totalorder %s150, %s151
      %p162 = scmp.eq.s32.totalorder %s90, 0
      %p163 = por %p161, %p162
      %p164 = scmp.ne.s32.totalorder %s150, %s151
      %p165 = scmp.eq.s32.totalorder %s91, 3
      %p166 = por %p164, %p165
      %p168 = scmp.ne.s32.totalorder %s151, %s167
      %p169 = scmp.eq.s32.totalorder %s91, 0
      %p170 = por %p168, %p169
      %s171 = ssub.s32 %s85, %s92
      %p172 = scmp.eq.s32.totalorder %s171, 0
      %s174 = sadd.s32 %s173, 1
      %s175 = scalar_select %p172, %s173, %s174
      %p178 = pneg %p172
      %p179 = scmp.eq.s32.totalorder %s85, 3
      %p180 = por %p178, %p179
      %p181 = scmp.ne.s32.totalorder %s173, %s176
      %p182 = scmp.eq.s32.totalorder %s85, 0
      %p183 = por %p181, %p182
      %p184 = scmp.ne.s32.totalorder %s173, %s176
      %p185 = scmp.eq.s32.totalorder %s90, 3
      %p186 = por %p184, %p185
      %p187 = scmp.ne.s32.totalorder %s176, %s177
      %p188 = scmp.eq.s32.totalorder %s90, 0
      %p189 = por %p187, %p188
      %p190 = scmp.ne.s32.totalorder %s176, %s177
      %p191 = scmp.eq.s32.totalorder %s91, 3
      %p192 = por %p190, %p191
      %p194 = scmp.ne.s32.totalorder %s177, %s193
      %p195 = scmp.eq.s32.totalorder %s91, 0
      %p196 = por %p194, %p195
      %s197 = ssub.s32 %s85, %s92
      %p198 = scmp.eq.s32.totalorder %s197, 0
      %s200 = sadd.s32 %s199, 1
      %s201 = scalar_select %p198, %s199, %s200
      %p204 = pneg %p198
      %p205 = scmp.eq.s32.totalorder %s85, 3
      %p206 = por %p204, %p205
      %p207 = scmp.ne.s32.totalorder %s199, %s202
      %p208 = scmp.eq.s32.totalorder %s85, 0
      %p209 = por %p207, %p208
      %p210 = scmp.ne.s32.totalorder %s199, %s202
      %p211 = scmp.eq.s32.totalorder %s90, 3
      %p212 = por %p210, %p211
      %p213 = scmp.ne.s32.totalorder %s202, %s203
      %p214 = scmp.eq.s32.totalorder %s90, 0
      %p215 = por %p213, %p214
      %p216 = scmp.ne.s32.totalorder %s202, %s203
      %p217 = scmp.eq.s32.totalorder %s91, 3
      %p218 = por %p216, %p217
      %p220 = scmp.ne.s32.totalorder %s203, %s219
      %p221 = scmp.eq.s32.totalorder %s91, 0
      %p222 = por %p220, %p221
      %s224 = sadd.s32 %s223, 1
      %p227 = scmp.eq.s32.totalorder %s85, 3
      %p228 = scmp.ne.s32.totalorder %s223, %s225
      %p229 = scmp.eq.s32.totalorder %s85, 0
      %p230 = por %p228, %p229
      %p231 = scmp.ne.s32.totalorder %s223, %s225
      %p232 = scmp.eq.s32.totalorder %s90, 3
      %p233 = por %p231, %p232
      %p234 = scmp.ne.s32.totalorder %s225, %s226
      %p235 = scmp.eq.s32.totalorder %s90, 0
      %p236 = por %p234, %p235
      %p237 = scmp.ne.s32.totalorder %s225, %s226
      %p238 = scmp.eq.s32.totalorder %s91, 3
      %p239 = por %p237, %p238
      %p241 = scmp.ne.s32.totalorder %s226, %s240
      %p242 = scmp.eq.s32.totalorder %s91, 0
      %p243 = por %p241, %p242
      %s245 = sadd.s32 %s244, 1
      %p248 = scmp.eq.s32.totalorder %s85, 3
      %p249 = scmp.ne.s32.totalorder %s244, %s246
      %p250 = scmp.eq.s32.totalorder %s85, 0
      %p251 = por %p249, %p250
      %p252 = scmp.ne.s32.totalorder %s244, %s246
      %p253 = scmp.eq.s32.totalorder %s90, 3
      %p254 = por %p252, %p253
      %p255 = scmp.ne.s32.totalorder %s246, %s247
      %p256 = scmp.eq.s32.totalorder %s90, 0
      %p257 = por %p255, %p256
      %p258 = scmp.ne.s32.totalorder %s246, %s247
      %p259 = scmp.eq.s32.totalorder %s91, 3
      %p260 = por %p258, %p259
      %p262 = scmp.ne.s32.totalorder %s247, %s261
      %p263 = scmp.eq.s32.totalorder %s91, 0
      %p264 = por %p262, %p263
      %s266 = sadd.s32 %s265, 1
      %p269 = scmp.eq.s32.totalorder %s85, 3
      %p270 = scmp.ne.s32.totalorder %s265, %s267
      %p271 = scmp.eq.s32.totalorder %s85, 0
      %p272 = por %p270, %p271
      %p273 = scmp.ne.s32.totalorder %s265, %s267
      %p274 = scmp.eq.s32.totalorder %s90, 3
      %p275 = por %p273, %p274
      %p276 = scmp.ne.s32.totalorder %s267, %s268
      %p277 = scmp.eq.s32.totalorder %s90, 0
      %p278 = por %p276, %p277
      %p279 = scmp.ne.s32.totalorder %s267, %s268
      %p280 = scmp.eq.s32.totalorder %s91, 3
      %p281 = por %p279, %p280
      %p283 = scmp.ne.s32.totalorder %s268, %s282
      %p284 = scmp.eq.s32.totalorder %s91, 0
      %p285 = por %p283, %p284
      %s287 = sadd.s32 %s286, 1
      %p290 = scmp.eq.s32.totalorder %s85, 3
      %p291 = scmp.ne.s32.totalorder %s286, %s288
      %p292 = scmp.eq.s32.totalorder %s85, 0
      %p293 = por %p291, %p292
      %p294 = scmp.ne.s32.totalorder %s286, %s288
      %p295 = scmp.eq.s32.totalorder %s90, 3
      %p296 = por %p294, %p295
      %p297 = scmp.ne.s32.totalorder %s288, %s289
      %p298 = scmp.eq.s32.totalorder %s90, 0
      %p299 = por %p297, %p298
      %p300 = scmp.ne.s32.totalorder %s288, %s289
      %p301 = scmp.eq.s32.totalorder %s91, 3
      %p302 = por %p300, %p301
      %p304 = scmp.ne.s32.totalorder %s289, %s303
      %p305 = scmp.eq.s32.totalorder %s91, 0
      %p306 = por %p304, %p305
      %s308 = sadd.s32 %s307, 1
      %p311 = scmp.eq.s32.totalorder %s85, 3
      %p312 = scmp.ne.s32.totalorder %s307, %s309
      %p313 = scmp.eq.s32.totalorder %s85, 0
      %p314 = por %p312, %p313
      %p315 = scmp.ne.s32.totalorder %s307, %s309
      %p316 = scmp.eq.s32.totalorder %s90, 3
      %p317 = por %p315, %p316
      %p318 = scmp.ne.s32.totalorder %s309, %s310
      %p319 = scmp.eq.s32.totalorder %s90, 0
      %p320 = por %p318, %p319
      %p321 = scmp.ne.s32.totalorder %s309, %s310
      %p322 = scmp.eq.s32.totalorder %s91, 3
      %p323 = por %p321, %p322
      %p325 = scmp.ne.s32.totalorder %s310, %s324
      %p326 = scmp.eq.s32.totalorder %s91, 0
      %p327 = por %p325, %p326
      %s329 = sadd.s32 %s328, 1
      %p332 = scmp.eq.s32.totalorder %s85, 3
      %p333 = scmp.ne.s32.totalorder %s328, %s330
      %p334 = scmp.eq.s32.totalorder %s85, 0
      %p335 = por %p333, %p334
      %p336 = scmp.ne.s32.totalorder %s328, %s330
      %p337 = scmp.eq.s32.totalorder %s90, 3
      %p338 = por %p336, %p337
      %p339 = scmp.ne.s32.totalorder %s330, %s331
      %p340 = scmp.eq.s32.totalorder %s90, 0
      %p341 = por %p339, %p340
      %p342 = scmp.ne.s32.totalorder %s330, %s331
      %p343 = scmp.eq.s32.totalorder %s91, 3
      %p344 = por %p342, %p343
      %p346 = scmp.ne.s32.totalorder %s331, %s345
      %p347 = scmp.eq.s32.totalorder %s91, 0
      %p348 = por %p346, %p347
      %s350 = sadd.s32 %s349, 1
      %p353 = scmp.eq.s32.totalorder %s85, 3
      %p354 = scmp.ne.s32.totalorder %s349, %s351
      %p355 = scmp.eq.s32.totalorder %s85, 0
      %p356 = por %p354, %p355
      %p357 = scmp.ne.s32.totalorder %s349, %s351
      %p358 = scmp.eq.s32.totalorder %s90, 3
      %p359 = por %p357, %p358
      %p360 = scmp.ne.s32.totalorder %s351, %s352
      %p361 = scmp.eq.s32.totalorder %s90, 0
      %p362 = por %p360, %p361
      %p363 = scmp.ne.s32.totalorder %s351, %s352
      %p364 = scmp.eq.s32.totalorder %s91, 3
      %p365 = por %p363, %p364
      %p367 = scmp.ne.s32.totalorder %s352, %s366
      %p368 = scmp.eq.s32.totalorder %s91, 0
      %p369 = por %p367, %p368
      %s371 = sadd.s32 %s370, 1
      %p374 = scmp.eq.s32.totalorder %s85, 3
      %p375 = scmp.ne.s32.totalorder %s370, %s372
      %p376 = scmp.eq.s32.totalorder %s85, 0
      %p377 = por %p375, %p376
      %p378 = scmp.ne.s32.totalorder %s370, %s372
      %p379 = scmp.eq.s32.totalorder %s90, 3
      %p380 = por %p378, %p379
      %p381 = scmp.ne.s32.totalorder %s372, %s373
      %p382 = scmp.eq.s32.totalorder %s90, 0
      %p383 = por %p381, %p382
      %p384 = scmp.ne.s32.totalorder %s372, %s373
      %p385 = scmp.eq.s32.totalorder %s91, 3
      %p386 = por %p384, %p385
      %p388 = scmp.ne.s32.totalorder %s373, %s387
      %p389 = scmp.eq.s32.totalorder %s91, 0
      %p390 = por %p388, %p389
      %s392 = sadd.s32 %s391, 1
      %p395 = scmp.eq.s32.totalorder %s85, 3
      %p396 = scmp.ne.s32.totalorder %s391, %s393
      %p397 = scmp.eq.s32.totalorder %s85, 0
      %p398 = por %p396, %p397
      %p399 = scmp.ne.s32.totalorder %s391, %s393
      %p400 = scmp.eq.s32.totalorder %s90, 3
      %p401 = por %p399, %p400
      %p402 = scmp.ne.s32.totalorder %s393, %s394
      %p403 = scmp.eq.s32.totalorder %s90, 0
      %p404 = por %p402, %p403
      %p405 = scmp.ne.s32.totalorder %s393, %s394
      %p406 = scmp.eq.s32.totalorder %s91, 3
      %p407 = por %p405, %p406
      %p409 = scmp.ne.s32.totalorder %s394, %s408
      %p410 = scmp.eq.s32.totalorder %s91, 0
      %p411 = por %p409, %p410
      %s413 = sadd.s32 %s412, 1
      %p416 = scmp.eq.s32.totalorder %s85, 3
      %p417 = scmp.ne.s32.totalorder %s412, %s414
      %p418 = scmp.eq.s32.totalorder %s85, 0
      %p419 = por %p417, %p418
      %p420 = scmp.ne.s32.totalorder %s412, %s414
      %p421 = scmp.eq.s32.totalorder %s90, 3
      %p422 = por %p420, %p421
      %p423 = scmp.ne.s32.totalorder %s414, %s415
      %p424 = scmp.eq.s32.totalorder %s90, 0
      %p425 = por %p423, %p424
      %p426 = scmp.ne.s32.totalorder %s414, %s415
      %p427 = scmp.eq.s32.totalorder %s91, 3
      %p428 = por %p426, %p427
      %p430 = scmp.ne.s32.totalorder %s415, %s429
      %p431 = scmp.eq.s32.totalorder %s91, 0
      %p432 = por %p430, %p431
      %s434 = sadd.s32 %s433, 1
      %p437 = scmp.eq.s32.totalorder %s85, 3
      %p438 = scmp.ne.s32.totalorder %s433, %s435
      %p439 = scmp.eq.s32.totalorder %s85, 0
      %p440 = por %p438, %p439
      %p441 = scmp.ne.s32.totalorder %s433, %s435
      %p442 = scmp.eq.s32.totalorder %s90, 3
      %p443 = por %p441, %p442
      %p444 = scmp.ne.s32.totalorder %s435, %s436
      %p445 = scmp.eq.s32.totalorder %s90, 0
      %p446 = por %p444, %p445
      %p447 = scmp.ne.s32.totalorder %s435, %s436
      %p448 = scmp.eq.s32.totalorder %s91, 3
      %p449 = por %p447, %p448
      %p451 = scmp.ne.s32.totalorder %s436, %s450
      %p452 = scmp.eq.s32.totalorder %s91, 0
      %p453 = por %p451, %p452
      %s455 = sadd.s32 %s454, 1
      %p458 = scmp.eq.s32.totalorder %s85, 3
      %p459 = scmp.ne.s32.totalorder %s454, %s456
      %p460 = scmp.eq.s32.totalorder %s85, 0
      %p461 = por %p459, %p460
      %p462 = scmp.ne.s32.totalorder %s454, %s456
      %p463 = scmp.eq.s32.totalorder %s90, 3
      %p464 = por %p462, %p463
      %p465 = scmp.ne.s32.totalorder %s456, %s457
      %p466 = scmp.eq.s32.totalorder %s90, 0
      %p467 = por %p465, %p466
      %p468 = scmp.ne.s32.totalorder %s456, %s457
      %p469 = scmp.eq.s32.totalorder %s91, 3
      %p470 = por %p468, %p469
      %p472 = scmp.ne.s32.totalorder %s457, %s471
      %p473 = scmp.eq.s32.totalorder %s91, 0
      %p474 = por %p472, %p473
      %s476 = sadd.s32 %s475, 1
      %p479 = scmp.eq.s32.totalorder %s85, 3
      %p480 = scmp.ne.s32.totalorder %s475, %s477
      %p481 = scmp.eq.s32.totalorder %s85, 0
      %p482 = por %p480, %p481
      %p483 = scmp.ne.s32.totalorder %s475, %s477
      %p484 = scmp.eq.s32.totalorder %s90, 3
      %p485 = por %p483, %p484
      %p486 = scmp.ne.s32.totalorder %s477, %s478
      %p487 = scmp.eq.s32.totalorder %s90, 0
      %p488 = por %p486, %p487
      %p489 = scmp.ne.s32.totalorder %s477, %s478
      %p490 = scmp.eq.s32.totalorder %s91, 3
      %p491 = por %p489, %p490
      %p493 = scmp.ne.s32.totalorder %s478, %s492
      %p494 = scmp.eq.s32.totalorder %s91, 0
      %p495 = por %p493, %p494
      %s497 = sadd.s32 %s496, 1
      %p500 = scmp.eq.s32.totalorder %s85, 3
      %p501 = scmp.ne.s32.totalorder %s496, %s498
      %p502 = scmp.eq.s32.totalorder %s85, 0
      %p503 = por %p501, %p502
      %p504 = scmp.ne.s32.totalorder %s496, %s498
      %p505 = scmp.eq.s32.totalorder %s90, 3
      %p506 = por %p504, %p505
      %p507 = scmp.ne.s32.totalorder %s498, %s499
      %p508 = scmp.eq.s32.totalorder %s90, 0
      %p509 = por %p507, %p508
      %p510 = scmp.ne.s32.totalorder %s498, %s499
      %p511 = scmp.eq.s32.totalorder %s91, 3
      %p512 = por %p510, %p511
      %p514 = scmp.ne.s32.totalorder %s499, %s513
      %p515 = scmp.eq.s32.totalorder %s91, 0
      %p516 = por %p514, %p515
      %s518 = sadd.s32 %s517, 1
      %p521 = scmp.eq.s32.totalorder %s85, 3
      %p522 = scmp.ne.s32.totalorder %s517, %s519
      %p523 = scmp.eq.s32.totalorder %s85, 0
      %p524 = por %p522, %p523
      %p525 = scmp.ne.s32.totalorder %s517, %s519
      %p526 = scmp.eq.s32.totalorder %s90, 3
      %p527 = por %p525, %p526
      %p528 = scmp.ne.s32.totalorder %s519, %s520
      %p529 = scmp.eq.s32.totalorder %s90, 0
      %p530 = por %p528, %p529
      %p531 = scmp.ne.s32.totalorder %s519, %s520
      %p532 = scmp.eq.s32.totalorder %s91, 3
      %p533 = por %p531, %p532
      %p535 = scmp.ne.s32.totalorder %s520, %s534
      %p536 = scmp.eq.s32.totalorder %s91, 0
      %p537 = por %p535, %p536
      %s539 = sadd.s32 %s538, 1
      %p542 = scmp.eq.s32.totalorder %s85, 3
      %p543 = scmp.ne.s32.totalorder %s538, %s540
      %p544 = scmp.eq.s32.totalorder %s85, 0
      %p545 = por %p543, %p544
      %p546 = scmp.ne.s32.totalorder %s538, %s540
      %p547 = scmp.eq.s32.totalorder %s90, 3
      %p548 = por %p546, %p547
      %p549 = scmp.ne.s32.totalorder %s540, %s541
      %p550 = scmp.eq.s32.totalorder %s90, 0
      %p551 = por %p549, %p550
      %p552 = scmp.ne.s32.totalorder %s540, %s541
      %p553 = scmp.eq.s32.totalorder %s91, 3
      %p554 = por %p552, %p553
      %p556 = scmp.ne.s32.totalorder %s541, %s555
      %p557 = scmp.eq.s32.totalorder %s91, 0
      %p558 = por %p556, %p557
      %s560 = sadd.s32 %s559, 1
      %p563 = scmp.eq.s32.totalorder %s85, 3
      %p564 = scmp.ne.s32.totalorder %s559, %s561
      %p565 = scmp.eq.s32.totalorder %s85, 0
      %p566 = por %p564, %p565
      %p567 = scmp.ne.s32.totalorder %s559, %s561
      %p568 = scmp.eq.s32.totalorder %s90, 3
      %p569 = por %p567, %p568
      %p570 = scmp.ne.s32.totalorder %s561, %s562
      %p571 = scmp.eq.s32.totalorder %s90, 0
      %p572 = por %p570, %p571
      %p573 = scmp.ne.s32.totalorder %s561, %s562
      %p574 = scmp.eq.s32.totalorder %s91, 3
      %p575 = por %p573, %p574
      %p577 = scmp.ne.s32.totalorder %s562, %s576
      %p578 = scmp.eq.s32.totalorder %s91, 0
      %p579 = por %p577, %p578
      %s581 = sadd.s32 %s580, 1
      %p584 = scmp.eq.s32.totalorder %s85, 3
      %p585 = scmp.ne.s32.totalorder %s580, %s582
      %p586 = scmp.eq.s32.totalorder %s85, 0
      %p587 = por %p585, %p586
      %p588 = scmp.ne.s32.totalorder %s580, %s582
      %p589 = scmp.eq.s32.totalorder %s90, 3
      %p590 = por %p588, %p589
      %p591 = scmp.ne.s32.totalorder %s582, %s583
      %p592 = scmp.eq.s32.totalorder %s90, 0
      %p593 = por %p591, %p592
      %p594 = scmp.ne.s32.totalorder %s582, %s583
      %p595 = scmp.eq.s32.totalorder %s91, 3
      %p596 = por %p594, %p595
      %p598 = scmp.ne.s32.totalorder %s583, %s597
      %p599 = scmp.eq.s32.totalorder %s91, 0
      %p600 = por %p598, %p599
      %s602 = sadd.s32 %s601, 1
      %p605 = scmp.eq.s32.totalorder %s85, 3
      %p606 = scmp.ne.s32.totalorder %s601, %s603
      %p607 = scmp.eq.s32.totalorder %s85, 0
      %p608 = por %p606, %p607
      %p609 = scmp.ne.s32.totalorder %s601, %s603
      %p610 = scmp.eq.s32.totalorder %s90, 3
      %p611 = por %p609, %p610
      %p612 = scmp.ne.s32.totalorder %s603, %s604
      %p613 = scmp.eq.s32.totalorder %s90, 0
      %p614 = por %p612, %p613
      %p615 = scmp.ne.s32.totalorder %s603, %s604
      %p616 = scmp.eq.s32.totalorder %s91, 3
      %p617 = por %p615, %p616
      %p619 = scmp.ne.s32.totalorder %s604, %s618
      %p620 = scmp.eq.s32.totalorder %s91, 0
      %p621 = por %p619, %p620
      %s623 = sadd.s32 %s622, 1
      %p626 = scmp.eq.s32.totalorder %s85, 3
      %p627 = scmp.ne.s32.totalorder %s622, %s624
      %p628 = scmp.eq.s32.totalorder %s85, 0
      %p629 = por %p627, %p628
      %p630 = scmp.ne.s32.totalorder %s622, %s624
      %p631 = scmp.eq.s32.totalorder %s90, 3
      %p632 = por %p630, %p631
      %p633 = scmp.ne.s32.totalorder %s624, %s625
      %p634 = scmp.eq.s32.totalorder %s90, 0
      %p635 = por %p633, %p634
      %p636 = scmp.ne.s32.totalorder %s624, %s625
      %p637 = scmp.eq.s32.totalorder %s91, 3
      %p638 = por %p636, %p637
      %p640 = scmp.ne.s32.totalorder %s625, %s639
      %p641 = scmp.eq.s32.totalorder %s91, 0
      %p642 = por %p640, %p641
      %s644 = sadd.s32 %s643, 1
      %p647 = scmp.eq.s32.totalorder %s85, 3
      %p648 = scmp.ne.s32.totalorder %s643, %s645
      %p649 = scmp.eq.s32.totalorder %s85, 0
      %p650 = por %p648, %p649
      %p651 = scmp.ne.s32.totalorder %s643, %s645
      %p652 = scmp.eq.s32.totalorder %s90, 3
      %p653 = por %p651, %p652
      %p654 = scmp.ne.s32.totalorder %s645, %s646
      %p655 = scmp.eq.s32.totalorder %s90, 0
      %p656 = por %p654, %p655
      %p657 = scmp.ne.s32.totalorder %s645, %s646
      %p658 = scmp.eq.s32.totalorder %s91, 3
      %p659 = por %p657, %p658
      %p661 = scmp.ne.s32.totalorder %s646, %s660
      %p662 = scmp.eq.s32.totalorder %s91, 0
      %p663 = por %p661, %p662
      %s665 = sadd.s32 %s664, 1
      %p668 = scmp.eq.s32.totalorder %s85, 3
      %p669 = scmp.ne.s32.totalorder %s664, %s666
      %p670 = scmp.eq.s32.totalorder %s85, 0
      %p671 = por %p669, %p670
      %p672 = scmp.ne.s32.totalorder %s664, %s666
      %p673 = scmp.eq.s32.totalorder %s90, 3
      %p674 = por %p672, %p673
      %p675 = scmp.ne.s32.totalorder %s666, %s667
      %p676 = scmp.eq.s32.totalorder %s90, 0
      %p677 = por %p675, %p676
      %p678 = scmp.ne.s32.totalorder %s666, %s667
      %p679 = scmp.eq.s32.totalorder %s91, 3
      %p680 = por %p678, %p679
      %p682 = scmp.ne.s32.totalorder %s667, %s681
      %p683 = scmp.eq.s32.totalorder %s91, 0
      %p684 = por %p682, %p683
      %s686 = sadd.s32 %s685, 1
      %p689 = scmp.eq.s32.totalorder %s85, 3
      %p690 = scmp.ne.s32.totalorder %s685, %s687
      %p691 = scmp.eq.s32.totalorder %s85, 0
      %p692 = por %p690, %p691
      %p693 = scmp.ne.s32.totalorder %s685, %s687
      %p694 = scmp.eq.s32.totalorder %s90, 3
      %p695 = por %p693, %p694
      %p696 = scmp.ne.s32.totalorder %s687, %s688
      %p697 = scmp.eq.s32.totalorder %s90, 0
      %p698 = por %p696, %p697
      %p699 = scmp.ne.s32.totalorder %s687, %s688
      %p700 = scmp.eq.s32.totalorder %s91, 3
      %p701 = por %p699, %p700
      %p703 = scmp.ne.s32.totalorder %s688, %s702
      %p704 = scmp.eq.s32.totalorder %s91, 0
      %p705 = por %p703, %p704
      %s707 = sadd.s32 %s706, 1
      %p710 = scmp.eq.s32.totalorder %s85, 3
      %p711 = scmp.ne.s32.totalorder %s706, %s708
      %p712 = scmp.eq.s32.totalorder %s85, 0
      %p713 = por %p711, %p712
      %p714 = scmp.ne.s32.totalorder %s706, %s708
      %p715 = scmp.eq.s32.totalorder %s90, 3
      %p716 = por %p714, %p715
      %p717 = scmp.ne.s32.totalorder %s708, %s709
      %p718 = scmp.eq.s32.totalorder %s90, 0
      %p719 = por %p717, %p718
      %p720 = scmp.ne.s32.totalorder %s708, %s709
      %p721 = scmp.eq.s32.totalorder %s91, 3
      %p722 = por %p720, %p721
      %p724 = scmp.ne.s32.totalorder %s709, %s723
      %p725 = scmp.eq.s32.totalorder %s91, 0
      %p726 = por %p724, %p725
      %s728 = sadd.s32 %s727, 1
      %p731 = scmp.eq.s32.totalorder %s85, 3
      %p732 = scmp.ne.s32.totalorder %s727, %s729
      %p733 = scmp.eq.s32.totalorder %s85, 0
      %p734 = por %p732, %p733
      %p735 = scmp.ne.s32.totalorder %s727, %s729
      %p736 = scmp.eq.s32.totalorder %s90, 3
      %p737 = por %p735, %p736
      %p738 = scmp.ne.s32.totalorder %s729, %s730
      %p739 = scmp.eq.s32.totalorder %s90, 0
      %p740 = por %p738, %p739
      %p741 = scmp.ne.s32.totalorder %s729, %s730
      %p742 = scmp.eq.s32.totalorder %s91, 3
      %p743 = por %p741, %p742
      %p745 = scmp.ne.s32.totalorder %s730, %s744
      %p746 = scmp.eq.s32.totalorder %s91, 0
      %p747 = por %p745, %p746
      %s749 = sadd.s32 %s748, 1
      %p752 = scmp.eq.s32.totalorder %s85, 3
      %p753 = scmp.ne.s32.totalorder %s748, %s750
      %p754 = scmp.eq.s32.totalorder %s85, 0
      %p755 = por %p753, %p754
      %p756 = scmp.ne.s32.totalorder %s748, %s750
      %p757 = scmp.eq.s32.totalorder %s90, 3
      %p758 = por %p756, %p757
      %p759 = scmp.ne.s32.totalorder %s750, %s751
      %p760 = scmp.eq.s32.totalorder %s90, 0
      %p761 = por %p759, %p760
      %p762 = scmp.ne.s32.totalorder %s750, %s751
      %p763 = scmp.eq.s32.totalorder %s91, 3
      %p764 = por %p762, %p763
      %p766 = scmp.ne.s32.totalorder %s751, %s765
      %p767 = scmp.eq.s32.totalorder %s91, 0
      %p768 = por %p766, %p767
      %s770 = sadd.s32 %s769, 1
      %p773 = scmp.eq.s32.totalorder %s85, 3
      %p774 = scmp.ne.s32.totalorder %s769, %s771
      %p775 = scmp.eq.s32.totalorder %s85, 0
      %p776 = por %p774, %p775
      %p777 = scmp.ne.s32.totalorder %s769, %s771
      %p778 = scmp.eq.s32.totalorder %s90, 3
      %p779 = por %p777, %p778
      %p780 = scmp.ne.s32.totalorder %s771, %s772
      %p781 = scmp.eq.s32.totalorder %s90, 0
      %p782 = por %p780, %p781
      %p783 = scmp.ne.s32.totalorder %s771, %s772
      %p784 = scmp.eq.s32.totalorder %s91, 3
      %p785 = por %p783, %p784
      %p787 = scmp.ne.s32.totalorder %s772, %s786
      %p788 = scmp.eq.s32.totalorder %s91, 0
      %p789 = por %p787, %p788
      %s791 = sadd.s32 %s790, 1
      %p794 = scmp.eq.s32.totalorder %s85, 3
      %p795 = scmp.ne.s32.totalorder %s790, %s792
      %p796 = scmp.eq.s32.totalorder %s85, 0
      %p797 = por %p795, %p796
      %p798 = scmp.ne.s32.totalorder %s790, %s792
      %p799 = scmp.eq.s32.totalorder %s90, 3
      %p800 = por %p798, %p799
      %p801 = scmp.ne.s32.totalorder %s792, %s793
      %p802 = scmp.eq.s32.totalorder %s90, 0
      %p803 = por %p801, %p802
      %p804 = scmp.ne.s32.totalorder %s792, %s793
      %p805 = scmp.eq.s32.totalorder %s91, 3
      %p806 = por %p804, %p805
      %p808 = scmp.ne.s32.totalorder %s793, %s807
      %p809 = scmp.eq.s32.totalorder %s91, 0
      %p810 = por %p808, %p809
      %s812 = sadd.s32 %s811, 1
      %p815 = scmp.eq.s32.totalorder %s85, 3
      %p816 = scmp.ne.s32.totalorder %s811, %s813
      %p817 = scmp.eq.s32.totalorder %s85, 0
      %p818 = por %p816, %p817
      %p819 = scmp.ne.s32.totalorder %s811, %s813
      %p820 = scmp.eq.s32.totalorder %s90, 3
      %p821 = por %p819, %p820
      %p822 = scmp.ne.s32.totalorder %s813, %s814
      %p823 = scmp.eq.s32.totalorder %s90, 0
      %p824 = por %p822, %p823
      %p825 = scmp.ne.s32.totalorder %s813, %s814
      %p826 = scmp.eq.s32.totalorder %s91, 3
      %p827 = por %p825, %p826
      %p829 = scmp.ne.s32.totalorder %s814, %s828
      %p830 = scmp.eq.s32.totalorder %s91, 0
      %p831 = por %p829, %p830
      %s833 = sadd.s32 %s832, 1
      %p836 = scmp.eq.s32.totalorder %s85, 3
      %p837 = scmp.ne.s32.totalorder %s832, %s834
      %p838 = scmp.eq.s32.totalorder %s85, 0
      %p839 = por %p837, %p838
      %p840 = scmp.ne.s32.totalorder %s832, %s834
      %p841 = scmp.eq.s32.totalorder %s90, 3
      %p842 = por %p840, %p841
      %p843 = scmp.ne.s32.totalorder %s834, %s835
      %p844 = scmp.eq.s32.totalorder %s90, 0
      %p845 = por %p843, %p844
      %p846 = scmp.ne.s32.totalorder %s834, %s835
      %p847 = scmp.eq.s32.totalorder %s91, 3
      %p848 = por %p846, %p847
      %p850 = scmp.ne.s32.totalorder %s835, %s849
      %p851 = scmp.eq.s32.totalorder %s91, 0
      %p852 = por %p850, %p851
      %s853 = ssub.s32 %s85, %s92
      %p854 = scmp.eq.s32.totalorder %s853, 0
      %s856 = sadd.s32 %s855, 1
      %s857 = scalar_select %p854, %s855, %s856
      %p860 = pneg %p854
      %p861 = scmp.eq.s32.totalorder %s85, 3
      %p862 = por %p860, %p861
      %p863 = scmp.ne.s32.totalorder %s855, %s858
      %p864 = scmp.eq.s32.totalorder %s85, 0
      %p865 = por %p863, %p864
      %p866 = scmp.ne.s32.totalorder %s855, %s858
      %p867 = scmp.eq.s32.totalorder %s90, 3
      %p868 = por %p866, %p867
      %p869 = scmp.ne.s32.totalorder %s858, %s859
      %p870 = scmp.eq.s32.totalorder %s90, 0
      %p871 = por %p869, %p870
      %p872 = scmp.ne.s32.totalorder %s858, %s859
      %p873 = scmp.eq.s32.totalorder %s91, 3
      %p874 = por %p872, %p873
      %p876 = scmp.ne.s32.totalorder %s859, %s875
      %p877 = scmp.eq.s32.totalorder %s91, 0
      %p878 = por %p876, %p877
      %p879 = scmp.le.s32.totalorder 1, %s85
      %p880 = scmp.lt.s32.totalorder %s85, 5
      %p881 = pnand %p879, %p880
      %p882 = pneg %p881
      // Predicated region
      $region9: #{_lambda_.1} parent=5 // pred_check
        _
      $region10: #{_lambda_.1} parent=5 // pred_check_branch
        %884 = sbr.rel (%p881) target = $region12
      $region11: #{_lambda_.1} parent=5 // pred_region
        %s885 = ssub.s32 %s85, 1
        // Predicated region
        $region13: #{_lambda_.1} parent=11 // pred_check
          %p886 = pneg %p236
        $region14: #{_lambda_.1} parent=11 // pred_check_branch
          %888 = sbr.rel (%p886) target = $region16
        $region15: #{_lambda_.1} parent=11 // pred_region
          %890 = vsyncadd [#allocation3], 0
          %s891 = sshll.u32 %s11, 4
          %s892 = int_to_ptr.hbm [resolvable:$true] %s891
          %s893 = sshll.u32 [#allocation2], 4
          %s894 = int_to_ptr.vmem [resolvable:$true] %s893
          %899 = dma.hbm_to_vmem [thread:$0]  %s892, 256, %s894, [#allocation3], 128, 128, 8
        $region16: #{_lambda_.1} parent=11 // pred_fallthru
          _
        // Predicated region
        $region17: #{_lambda_.1} parent=11 // pred_check
          %p900 = pneg %p257
        $region18: #{_lambda_.1} parent=11 // pred_check_branch
          %902 = sbr.rel (%p900) target = $region20
        $region19: #{_lambda_.1} parent=11 // pred_region
          _
        $region20: #{_lambda_.1} parent=11 // pred_fallthru
          _
        // Predicated region
        $region21: #{_lambda_.1} parent=11 // pred_check
          %p903 = pneg %p278
        $region22: #{_lambda_.1} parent=11 // pred_check_branch
          %905 = sbr.rel (%p903) target = $region24
        $region23: #{_lambda_.1} parent=11 // pred_region
          %907 = vsyncadd [#allocation5], 0
          %s909 = sshll.u32 %s15, 4
          %s910 = int_to_ptr.hbm [resolvable:$true] %s909
          %s911 = sshll.u32 [#allocation4], 4
          %s912 = int_to_ptr.vmem [resolvable:$true] %s911
          %914 = dma.hbm_to_vmem [thread:$0]  %s910, 128, %s912, [#allocation5]
        $region24: #{_lambda_.1} parent=11 // pred_fallthru
          _
        // Predicated region
        $region25: #{_lambda_.1} parent=11 // pred_check
          %p915 = pneg %p299
        $region26: #{_lambda_.1} parent=11 // pred_check_branch
          %917 = sbr.rel (%p915) target = $region28
        $region27: #{_lambda_.1} parent=11 // pred_region
          _
        $region28: #{_lambda_.1} parent=11 // pred_fallthru
          _
        // Predicated region
        $region29: #{_lambda_.1} parent=11 // pred_check
          %p918 = pneg %p320
        $region30: #{_lambda_.1} parent=11 // pred_check_branch
          %920 = sbr.rel (%p918) target = $region32
        $region31: #{_lambda_.1} parent=11 // pred_region
          %922 = vsyncadd [#allocation5], 0
          %s923 = sshll.u32 %s19, 4
          %s924 = int_to_ptr.hbm [resolvable:$true] %s923
          %s925 = sshll.u32 [#allocation6], 4
          %s926 = int_to_ptr.vmem [resolvable:$true] %s925
          %931 = dma.hbm_to_vmem [thread:$0]  %s924, 512, %s926, [#allocation5], 128, 128, 8
        $region32: #{_lambda_.1} parent=11 // pred_fallthru
          _
        // Predicated region
        $region33: #{_lambda_.1} parent=11 // pred_check
          %p932 = pneg %p341
        $region34: #{_lambda_.1} parent=11 // pred_check_branch
          %934 = sbr.rel (%p932) target = $region36
        $region35: #{_lambda_.1} parent=11 // pred_region
          %936 = vsyncadd [#allocation8], 0
          %s937 = sshll.u32 %s21, 4
          %s938 = int_to_ptr.hbm [resolvable:$true] %s937
          %s939 = sshll.u32 [#allocation7], 4
          %s940 = int_to_ptr.vmem [resolvable:$true] %s939
          %945 = dma.hbm_to_vmem [thread:$0]  %s938, 512, %s940, [#allocation8], 128, 128, 8
        $region36: #{_lambda_.1} parent=11 // pred_fallthru
          _
        // Predicated region
        $region37: #{_lambda_.1} parent=11 // pred_check
          %p946 = pneg %p362
        $region38: #{_lambda_.1} parent=11 // pred_check_branch
          %948 = sbr.rel (%p946) target = $region40
        $region39: #{_lambda_.1} parent=11 // pred_region
          %950 = vsyncadd [#allocation8], 0
          %s951 = sshll.u32 %s23, 4
          %s952 = int_to_ptr.hbm [resolvable:$true] %s951
          %s953 = sshll.u32 [#allocation9], 4
          %s954 = int_to_ptr.vmem [resolvable:$true] %s953
          %959 = dma.hbm_to_vmem [thread:$0]  %s952, 512, %s954, [#allocation8], 128, 128, 8
        $region40: #{_lambda_.1} parent=11 // pred_fallthru
          _
        // Predicated region
        $region41: #{_lambda_.1} parent=11 // pred_check
          %p960 = pneg %p383
        $region42: #{_lambda_.1} parent=11 // pred_check_branch
          %962 = sbr.rel (%p960) target = $region44
        $region43: #{_lambda_.1} parent=11 // pred_region
          _
        $region44: #{_lambda_.1} parent=11 // pred_fallthru
          _
        // Predicated region
        $region45: #{_lambda_.1} parent=11 // pred_check
          %p963 = pneg %p404
        $region46: #{_lambda_.1} parent=11 // pred_check_branch
          %965 = sbr.rel (%p963) target = $region48
        $region47: #{_lambda_.1} parent=11 // pred_region
          _
        $region48: #{_lambda_.1} parent=11 // pred_fallthru
          _
        // Predicated region
        $region49: #{_lambda_.1} parent=11 // pred_check
          %p966 = pneg %p425
        $region50: #{_lambda_.1} parent=11 // pred_check_branch
          %968 = sbr.rel (%p966) target = $region52
        $region51: #{_lambda_.1} parent=11 // pred_region
          _
        $region52: #{_lambda_.1} parent=11 // pred_fallthru
          _
        // Predicated region
        $region53: #{_lambda_.1} parent=11 // pred_check
          %p969 = pneg %p446
        $region54: #{_lambda_.1} parent=11 // pred_check_branch
          %971 = sbr.rel (%p969) target = $region56
        $region55: #{_lambda_.1} parent=11 // pred_region
          _
        $region56: #{_lambda_.1} parent=11 // pred_fallthru
          _
        // Predicated region
        $region57: #{_lambda_.1} parent=11 // pred_check
          %p972 = pneg %p467
        $region58: #{_lambda_.1} parent=11 // pred_check_branch
          %974 = sbr.rel (%p972) target = $region60
        $region59: #{_lambda_.1} parent=11 // pred_region
          _
        $region60: #{_lambda_.1} parent=11 // pred_fallthru
          _
        // Predicated region
        $region61: #{_lambda_.1} parent=11 // pred_check
          %p975 = pneg %p488
        $region62: #{_lambda_.1} parent=11 // pred_check_branch
          %977 = sbr.rel (%p975) target = $region64
        $region63: #{_lambda_.1} parent=11 // pred_region
          %979 = vsyncadd [#allocation11], 0
          %s980 = sshll.u32 %s35, 4
          %s981 = int_to_ptr.hbm [resolvable:$true] %s980
          %s982 = sshll.u32 [#allocation10], 4
          %s983 = int_to_ptr.vmem [resolvable:$true] %s982
          %988 = dma.hbm_to_vmem [thread:$0]  %s981, 512, %s983, [#allocation11], 128, 128, 8
        $region64: #{_lambda_.1} parent=11 // pred_fallthru
          _
        // Predicated region
        $region65: #{_lambda_.1} parent=11 // pred_check
          %p989 = pneg %p509
        $region66: #{_lambda_.1} parent=11 // pred_check_branch
          %991 = sbr.rel (%p989) target = $region68
        $region67: #{_lambda_.1} parent=11 // pred_region
          _
        $region68: #{_lambda_.1} parent=11 // pred_fallthru
          _
        // Predicated region
        $region69: #{_lambda_.1} parent=11 // pred_check
          %p992 = pneg %p530
        $region70: #{_lambda_.1} parent=11 // pred_check_branch
          %994 = sbr.rel (%p992) target = $region72
        $region71: #{_lambda_.1} parent=11 // pred_region
          %996 = vsyncadd [#allocation11], 0
          %s997 = sshll.u32 %s39, 4
          %s998 = int_to_ptr.hbm [resolvable:$true] %s997
          %s999 = sshll.u32 [#allocation12], 4
          %s1000 = int_to_ptr.vmem [resolvable:$true] %s999
          %1005 = dma.hbm_to_vmem [thread:$0]  %s998, 512, %s1000, [#allocation11], 128, 128, 8
        $region72: #{_lambda_.1} parent=11 // pred_fallthru
          _
        // Predicated region
        $region73: #{_lambda_.1} parent=11 // pred_check
          %p1006 = pneg %p551
        $region74: #{_lambda_.1} parent=11 // pred_check_branch
          %1008 = sbr.rel (%p1006) target = $region76
        $region75: #{_lambda_.1} parent=11 // pred_region
          %1010 = vsyncadd [#allocation14], 0
          %s1011 = sshll.u32 %s41, 4
          %s1012 = int_to_ptr.hbm [resolvable:$true] %s1011
          %s1013 = sshll.u32 [#allocation13], 4
          %s1014 = int_to_ptr.vmem [resolvable:$true] %s1013
          %1019 = dma.hbm_to_vmem [thread:$0]  %s1012, 512, %s1014, [#allocation14], 128, 128, 8
        $region76: #{_lambda_.1} parent=11 // pred_fallthru
          _
        // Predicated region
        $region77: #{_lambda_.1} parent=11 // pred_check
          %p1020 = pneg %p572
        $region78: #{_lambda_.1} parent=11 // pred_check_branch
          %1022 = sbr.rel (%p1020) target = $region80
        $region79: #{_lambda_.1} parent=11 // pred_region
          %1024 = vsyncadd [#allocation14], 0
          %s1025 = sshll.u32 %s43, 4
          %s1026 = int_to_ptr.hbm [resolvable:$true] %s1025
          %s1027 = sshll.u32 [#allocation15], 4
          %s1028 = int_to_ptr.vmem [resolvable:$true] %s1027
          %1033 = dma.hbm_to_vmem [thread:$0]  %s1026, 512, %s1028, [#allocation14], 128, 128, 8
        $region80: #{_lambda_.1} parent=11 // pred_fallthru
          _
        // Predicated region
        $region81: #{_lambda_.1} parent=11 // pred_check
          %p1034 = pneg %p593
        $region82: #{_lambda_.1} parent=11 // pred_check_branch
          %1036 = sbr.rel (%p1034) target = $region84
        $region83: #{_lambda_.1} parent=11 // pred_region
          _
        $region84: #{_lambda_.1} parent=11 // pred_fallthru
          _
        // Predicated region
        $region85: #{_lambda_.1} parent=11 // pred_check
          %p1037 = pneg %p614
        $region86: #{_lambda_.1} parent=11 // pred_check_branch
          %1039 = sbr.rel (%p1037) target = $region88
        $region87: #{_lambda_.1} parent=11 // pred_region
          _
        $region88: #{_lambda_.1} parent=11 // pred_fallthru
          _
        // Predicated region
        $region89: #{_lambda_.1} parent=11 // pred_check
          %p1040 = pneg %p635
        $region90: #{_lambda_.1} parent=11 // pred_check_branch
          %1042 = sbr.rel (%p1040) target = $region92
        $region91: #{_lambda_.1} parent=11 // pred_region
          _
        $region92: #{_lambda_.1} parent=11 // pred_fallthru
          _
        // Predicated region
        $region93: #{_lambda_.1} parent=11 // pred_check
          %p1043 = pneg %p656
        $region94: #{_lambda_.1} parent=11 // pred_check_branch
          %1045 = sbr.rel (%p1043) target = $region96
        $region95: #{_lambda_.1} parent=11 // pred_region
          _
        $region96: #{_lambda_.1} parent=11 // pred_fallthru
          _
        // Predicated region
        $region97: #{_lambda_.1} parent=11 // pred_check
          %p1046 = pneg %p677
        $region98: #{_lambda_.1} parent=11 // pred_check_branch
          %1048 = sbr.rel (%p1046) target = $region100
        $region99: #{_lambda_.1} parent=11 // pred_region
          _
        $region100: #{_lambda_.1} parent=11 // pred_fallthru
          _
        // Predicated region
        $region101: #{_lambda_.1} parent=11 // pred_check
          %p1049 = pneg %p698
        $region102: #{_lambda_.1} parent=11 // pred_check_branch
          %1051 = sbr.rel (%p1049) target = $region104
        $region103: #{_lambda_.1} parent=11 // pred_region
          _
        $region104: #{_lambda_.1} parent=11 // pred_fallthru
          _
        // Predicated region
        $region105: #{_lambda_.1} parent=11 // pred_check
          %p1052 = pneg %p719
        $region106: #{_lambda_.1} parent=11 // pred_check_branch
          %1054 = sbr.rel (%p1052) target = $region108
        $region107: #{_lambda_.1} parent=11 // pred_region
          %1056 = vsyncadd [#allocation17], 0
          %s1058 = sshll.u32 %s57, 4
          %s1059 = int_to_ptr.hbm [resolvable:$true] %s1058
          %s1060 = sshll.u32 [#allocation16], 4
          %s1061 = int_to_ptr.vmem [resolvable:$true] %s1060
          %1063 = dma.hbm_to_vmem [thread:$0]  %s1059, 16, %s1061, [#allocation17]
        $region108: #{_lambda_.1} parent=11 // pred_fallthru
          _
        // Predicated region
        $region109: #{_lambda_.1} parent=11 // pred_check
          %p1064 = pneg %p740
        $region110: #{_lambda_.1} parent=11 // pred_check_branch
          %1066 = sbr.rel (%p1064) target = $region112
        $region111: #{_lambda_.1} parent=11 // pred_region
          _
        $region112: #{_lambda_.1} parent=11 // pred_fallthru
          _
        // Predicated region
        $region113: #{_lambda_.1} parent=11 // pred_check
          %p1067 = pneg %p761
        $region114: #{_lambda_.1} parent=11 // pred_check_branch
          %1069 = sbr.rel (%p1067) target = $region116
        $region115: #{_lambda_.1} parent=11 // pred_region
          %1071 = vsyncadd [#allocation17], 0
          %s1073 = sshll.u32 %s61, 4
          %s1074 = int_to_ptr.hbm [resolvable:$true] %s1073
          %s1075 = sshll.u32 [#allocation18], 4
          %s1076 = int_to_ptr.vmem [resolvable:$true] %s1075
          %1078 = dma.hbm_to_vmem [thread:$0]  %s1074, 16, %s1076, [#allocation17]
        $region116: #{_lambda_.1} parent=11 // pred_fallthru
          _
        // Predicated region
        $region117: #{_lambda_.1} parent=11 // pred_check
          %p1079 = pneg %p782
        $region118: #{_lambda_.1} parent=11 // pred_check_branch
          %1081 = sbr.rel (%p1079) target = $region120
        $region119: #{_lambda_.1} parent=11 // pred_region
          %1083 = vsyncadd [#allocation20], 0
          %s1084 = sshll.u32 %s63, 4
          %s1085 = int_to_ptr.hbm [resolvable:$true] %s1084
          %s1086 = sshll.u32 [#allocation19], 4
          %s1087 = int_to_ptr.vmem [resolvable:$true] %s1086
          %1092 = dma.hbm_to_vmem [thread:$0]  %s1085, 256, %s1087, [#allocation20], 128, 128, 8
        $region120: #{_lambda_.1} parent=11 // pred_fallthru
          _
        // Predicated region
        $region121: #{_lambda_.1} parent=11 // pred_check
          %p1093 = pneg %p803
        $region122: #{_lambda_.1} parent=11 // pred_check_branch
          %1095 = sbr.rel (%p1093) target = $region124
        $region123: #{_lambda_.1} parent=11 // pred_region
          %1097 = vsyncadd [#allocation20], 0
          %s1099 = sshll.u32 %s65, 4
          %s1100 = int_to_ptr.hbm [resolvable:$true] %s1099
          %s1101 = sshll.u32 [#allocation21], 4
          %s1102 = int_to_ptr.vmem [resolvable:$true] %s1101
          %1104 = dma.hbm_to_vmem [thread:$0]  %s1100, 16, %s1102, [#allocation20]
        $region124: #{_lambda_.1} parent=11 // pred_fallthru
          _
        // Predicated region
        $region125: #{_lambda_.1} parent=11 // pred_check
          %p1105 = pneg %p824
        $region126: #{_lambda_.1} parent=11 // pred_check_branch
          %1107 = sbr.rel (%p1105) target = $region128
        $region127: #{_lambda_.1} parent=11 // pred_region
          _
        $region128: #{_lambda_.1} parent=11 // pred_fallthru
          _
        // Predicated region
        $region129: #{_lambda_.1} parent=11 // pred_check
          %p1108 = pneg %p845
        $region130: #{_lambda_.1} parent=11 // pred_check_branch
          %1110 = sbr.rel (%p1108) target = $region132
        $region131: #{_lambda_.1} parent=11 // pred_region
          %1112 = vsyncadd [#allocation23], 0
          %s1114 = sshll.u32 %s69, 4
          %s1115 = int_to_ptr.hbm [resolvable:$true] %s1114
          %s1116 = sshll.u32 [#allocation22], 4
          %s1117 = int_to_ptr.vmem [resolvable:$true] %s1116
          %1119 = dma.hbm_to_vmem [thread:$0]  %s1115, 16, %s1117, [#allocation23]
        $region132: #{_lambda_.1} parent=11 // pred_fallthru
          _
      $region12: #{_lambda_.1} parent=5 // pred_fallthru
        _
      %p1120 = scmp.lt.s32.totalorder %s85, 4
      // Predicated region
      $region133: #{_lambda_.1} parent=5 // pred_check
        %p1121 = pneg %p1120
      $region134: #{_lambda_.1} parent=5 // pred_check_branch
        %1123 = sbr.rel (%p1121) target = $region136
      $region135: #{_lambda_.1} parent=5 // pred_region
        // Predicated region
        $region137: #{_lambda_.1} parent=135 // pred_check
          %p1124 = pneg %p105
        $region138: #{_lambda_.1} parent=135 // pred_check_branch
          %1126 = sbr.rel (%p1124) target = $region140
        $region139: #{_lambda_.1} parent=135 // pred_region
          %p1127 = scmp.lt.s32.totalorder %s85, 3
          %s1128 = scalar_select %p1127, %s85, 3
          %s1129 = smul.addr %s1128, 2
          %s1130 = smul.addr %s1129, 8
          %s1131 = scalar_lea.vmem %s1, %s1130
        $region140: #{_lambda_.1} parent=135 // pred_fallthru
          _
        // Predicated region
        $region141: #{_lambda_.1} parent=135 // pred_check
          %p1132 = pneg %p131
        $region142: #{_lambda_.1} parent=135 // pred_check_branch
          %1134 = sbr.rel (%p1132) target = $region144
        $region143: #{_lambda_.1} parent=135 // pred_region
          %p1135 = scmp.lt.s32.totalorder %s85, 3
          %s1136 = scalar_select %p1135, %s85, 3
          %s1137 = smul.addr %s1136, 6
          %s1138 = smul.addr %s1137, 8
          %s1139 = scalar_lea.vmem %s3, %s1138
        $region144: #{_lambda_.1} parent=135 // pred_fallthru
          _
        // Predicated region
        $region145: #{_lambda_.1} parent=135 // pred_check
          %p1140 = pneg %p157
        $region146: #{_lambda_.1} parent=135 // pred_check_branch
          %1142 = sbr.rel (%p1140) target = $region148
        $region147: #{_lambda_.1} parent=135 // pred_region
          %p1143 = scmp.lt.s32.totalorder %s85, 3
          %s1144 = scalar_select %p1143, %s85, 3
          %s1145 = smul.addr %s1144, 6
          %s1146 = smul.addr %s1145, 8
          %s1147 = scalar_lea.vmem %s5, %s1146
        $region148: #{_lambda_.1} parent=135 // pred_fallthru
          _
        // Predicated region
        $region149: #{_lambda_.1} parent=135 // pred_check
          %p1148 = pneg %p183
        $region150: #{_lambda_.1} parent=135 // pred_check_branch
          %1150 = sbr.rel (%p1148) target = $region152
        $region151: #{_lambda_.1} parent=135 // pred_region
          %p1151 = scmp.lt.s32.totalorder %s85, 3
          %s1152 = scalar_select %p1151, %s85, 3
          %s1153 = smul.addr %s1152, 6
          %s1154 = smul.addr %s1153, 8
          %s1155 = scalar_lea.vmem %s7, %s1154
        $region152: #{_lambda_.1} parent=135 // pred_fallthru
          _
        // Predicated region
        $region153: #{_lambda_.1} parent=135 // pred_check
          %p1156 = pneg %p209
        $region154: #{_lambda_.1} parent=135 // pred_check_branch
          %1158 = sbr.rel (%p1156) target = $region156
        $region155: #{_lambda_.1} parent=135 // pred_region
          %p1159 = scmp.lt.s32.totalorder %s85, 3
          %s1160 = scalar_select %p1159, %s85, 3
          %s1161 = smul.addr %s1160, 2
          %s1162 = smul.addr %s1161, 8
          %s1163 = scalar_lea.vmem %s9, %s1162
        $region156: #{_lambda_.1} parent=135 // pred_fallthru
          _
      $region136: #{_lambda_.1} parent=5 // pred_fallthru
        _
      %p1164 = scmp.le.s32.totalorder 1, %s85
      %p1165 = scmp.lt.s32.totalorder %s85, 5
      %p1166 = pnand %p1164, %p1165
      %p1167 = pneg %p1166
      // Predicated region
      $region157: #{_lambda_.1} parent=5 // pred_check
        _
      $region158: #{_lambda_.1} parent=5 // pred_check_branch
        %1169 = sbr.rel (%p1166) target = $region160
      $region159: #{_lambda_.1} parent=5 // pred_region
        %s1170 = ssub.s32 %s85, 1
        // Predicated region
        $region161: #{_lambda_.1} parent=159 // pred_check
          %p1171 = pneg %p236
        $region162: #{_lambda_.1} parent=159 // pred_check_branch
          %1173 = sbr.rel (%p1171) target = $region164
        $region163: #{_lambda_.1} parent=159 // pred_region
          %1175 = dma.done [#allocation3], 256
        $region164: #{_lambda_.1} parent=159 // pred_fallthru
          _
        // Predicated region
        $region165: #{_lambda_.1} parent=159 // pred_check
          %p1176 = pneg %p278
        $region166: #{_lambda_.1} parent=159 // pred_check_branch
          %1178 = sbr.rel (%p1176) target = $region168
        $region167: #{_lambda_.1} parent=159 // pred_region
          %1180 = dma.done [#allocation5], 128
        $region168: #{_lambda_.1} parent=159 // pred_fallthru
          _
        // Predicated region
        $region169: #{_lambda_.1} parent=159 // pred_check
          %p1181 = pneg %p320
        $region170: #{_lambda_.1} parent=159 // pred_check_branch
          %1183 = sbr.rel (%p1181) target = $region172
        $region171: #{_lambda_.1} parent=159 // pred_region
          %1185 = dma.done [#allocation5], 512
        $region172: #{_lambda_.1} parent=159 // pred_fallthru
          _
        // Predicated region
        $region173: #{_lambda_.1} parent=159 // pred_check
          %p1186 = pneg %p341
        $region174: #{_lambda_.1} parent=159 // pred_check_branch
          %1188 = sbr.rel (%p1186) target = $region176
        $region175: #{_lambda_.1} parent=159 // pred_region
          %1190 = dma.done [#allocation8], 512
        $region176: #{_lambda_.1} parent=159 // pred_fallthru
          _
        // Predicated region
        $region177: #{_lambda_.1} parent=159 // pred_check
          %p1191 = pneg %p362
        $region178: #{_lambda_.1} parent=159 // pred_check_branch
          %1193 = sbr.rel (%p1191) target = $region180
        $region179: #{_lambda_.1} parent=159 // pred_region
          %1195 = dma.done [#allocation8], 512
        $region180: #{_lambda_.1} parent=159 // pred_fallthru
          _
        // Predicated region
        $region181: #{_lambda_.1} parent=159 // pred_check
          %p1196 = pneg %p488
        $region182: #{_lambda_.1} parent=159 // pred_check_branch
          %1198 = sbr.rel (%p1196) target = $region184
        $region183: #{_lambda_.1} parent=159 // pred_region
          %1200 = dma.done [#allocation11], 512
        $region184: #{_lambda_.1} parent=159 // pred_fallthru
          _
        // Predicated region
        $region185: #{_lambda_.1} parent=159 // pred_check
          %p1201 = pneg %p530
        $region186: #{_lambda_.1} parent=159 // pred_check_branch
          %1203 = sbr.rel (%p1201) target = $region188
        $region187: #{_lambda_.1} parent=159 // pred_region
          %1205 = dma.done [#allocation11], 512
        $region188: #{_lambda_.1} parent=159 // pred_fallthru
          _
        // Predicated region
        $region189: #{_lambda_.1} parent=159 // pred_check
          %p1206 = pneg %p551
        $region190: #{_lambda_.1} parent=159 // pred_check_branch
          %1208 = sbr.rel (%p1206) target = $region192
        $region191: #{_lambda_.1} parent=159 // pred_region
          %1210 = dma.done [#allocation14], 512
        $region192: #{_lambda_.1} parent=159 // pred_fallthru
          _
        // Predicated region
        $region193: #{_lambda_.1} parent=159 // pred_check
          %p1211 = pneg %p572
        $region194: #{_lambda_.1} parent=159 // pred_check_branch
          %1213 = sbr.rel (%p1211) target = $region196
        $region195: #{_lambda_.1} parent=159 // pred_region
          %1215 = dma.done [#allocation14], 512
        $region196: #{_lambda_.1} parent=159 // pred_fallthru
          _
        // Predicated region
        $region197: #{_lambda_.1} parent=159 // pred_check
          %p1216 = pneg %p719
        $region198: #{_lambda_.1} parent=159 // pred_check_branch
          %1218 = sbr.rel (%p1216) target = $region200
        $region199: #{_lambda_.1} parent=159 // pred_region
          %1220 = dma.done [#allocation17], 16
        $region200: #{_lambda_.1} parent=159 // pred_fallthru
          _
        // Predicated region
        $region201: #{_lambda_.1} parent=159 // pred_check
          %p1221 = pneg %p761
        $region202: #{_lambda_.1} parent=159 // pred_check_branch
          %1223 = sbr.rel (%p1221) target = $region204
        $region203: #{_lambda_.1} parent=159 // pred_region
          %1225 = dma.done [#allocation17], 16
        $region204: #{_lambda_.1} parent=159 // pred_fallthru
          _
        // Predicated region
        $region205: #{_lambda_.1} parent=159 // pred_check
          %p1226 = pneg %p782
        $region206: #{_lambda_.1} parent=159 // pred_check_branch
          %1228 = sbr.rel (%p1226) target = $region208
        $region207: #{_lambda_.1} parent=159 // pred_region
          %1230 = dma.done [#allocation20], 256
        $region208: #{_lambda_.1} parent=159 // pred_fallthru
          _
        // Predicated region
        $region209: #{_lambda_.1} parent=159 // pred_check
          %p1231 = pneg %p803
        $region210: #{_lambda_.1} parent=159 // pred_check_branch
          %1233 = sbr.rel (%p1231) target = $region212
        $region211: #{_lambda_.1} parent=159 // pred_region
          %1235 = dma.done [#allocation20], 16
        $region212: #{_lambda_.1} parent=159 // pred_fallthru
          _
        // Predicated region
        $region213: #{_lambda_.1} parent=159 // pred_check
          %p1236 = pneg %p845
        $region214: #{_lambda_.1} parent=159 // pred_check_branch
          %1238 = sbr.rel (%p1236) target = $region216
        $region215: #{_lambda_.1} parent=159 // pred_region
          %1240 = dma.done [#allocation23], 16
        $region216: #{_lambda_.1} parent=159 // pred_fallthru
          _
        %p1241 = scmp.lt.s32.totalorder %s90, 3
        %s1242 = scalar_select %p1241, %s90, 3
        %s1243 = smul.addr %s1242, 2
        %s1244 = smul.addr %s1243, 8
        %s1245 = scalar_lea.vmem %s1, %s1244
        %p1246 = pneg %p111
        %p1247 = pneg %p108
        %p1248 = scmp.lt.s32.totalorder %s90, 3
        %s1249 = scalar_select %p1248, %s90, 3
        %s1250 = smul.addr %s1249, 6
        %s1251 = smul.addr %s1250, 8
        %s1252 = scalar_lea.vmem %s3, %s1251
        %p1253 = pneg %p137
        %p1254 = pneg %p134
        %p1255 = scmp.lt.s32.totalorder %s90, 3
        %s1256 = scalar_select %p1255, %s90, 3
        %s1257 = smul.addr %s1256, 6
        %s1258 = smul.addr %s1257, 8
        %s1259 = scalar_lea.vmem %s5, %s1258
        %p1260 = pneg %p163
        %p1261 = pneg %p160
        %p1262 = scmp.lt.s32.totalorder %s90, 3
        %s1263 = scalar_select %p1262, %s90, 3
        %s1264 = smul.addr %s1263, 6
        %s1265 = smul.addr %s1264, 8
        %s1266 = scalar_lea.vmem %s7, %s1265
        %p1267 = pneg %p189
        %p1268 = pneg %p186
        %p1269 = scmp.lt.s32.totalorder %s90, 3
        %s1270 = scalar_select %p1269, %s90, 3
        %s1271 = smul.addr %s1270, 2
        %s1272 = smul.addr %s1271, 8
        %s1273 = scalar_lea.vmem %s9, %s1272
        %p1274 = pneg %p215
        %p1275 = pneg %p212
        %p1276 = pneg %p236
        %p1277 = pneg %p233
        %p1278 = pneg %p257
        %p1279 = pneg %p254
        %p1280 = pneg %p278
        %p1281 = pneg %p275
        %p1282 = pneg %p299
        %p1283 = pneg %p296
        %p1284 = pneg %p320
        %p1285 = pneg %p317
        %p1286 = pneg %p341
        %p1287 = pneg %p338
        %p1288 = pneg %p362
        %p1289 = pneg %p359
        %p1290 = pneg %p383
        %p1291 = pneg %p380
        %p1292 = pneg %p404
        %p1293 = pneg %p401
        %p1294 = pneg %p425
        %p1295 = pneg %p422
        %p1296 = pneg %p446
        %p1297 = pneg %p443
        %p1298 = pneg %p467
        %p1299 = pneg %p464
        %p1300 = pneg %p488
        %p1301 = pneg %p485
        %p1302 = pneg %p509
        %p1303 = pneg %p506
        %p1304 = pneg %p530
        %p1305 = pneg %p527
        %p1306 = pneg %p551
        %p1307 = pneg %p548
        %p1308 = pneg %p572
        %p1309 = pneg %p569
        %p1310 = pneg %p593
        %p1311 = pneg %p590
        %p1312 = pneg %p614
        %p1313 = pneg %p611
        %p1314 = pneg %p635
        %p1315 = pneg %p632
        %p1316 = pneg %p656
        %p1317 = pneg %p653
        %p1318 = pneg %p677
        %p1319 = pneg %p674
        %p1320 = pneg %p698
        %p1321 = pneg %p695
        %p1322 = pneg %p719
        %p1323 = pneg %p716
        %p1324 = pneg %p740
        %p1325 = pneg %p737
        %p1326 = pneg %p761
        %p1327 = pneg %p758
        %p1328 = pneg %p782
        %p1329 = pneg %p779
        %p1330 = pneg %p803
        %p1331 = pneg %p800
        %p1332 = pneg %p824
        %p1333 = pneg %p821
        %p1334 = pneg %p845
        %p1335 = pneg %p842
        %p1336 = pneg %p871
        %p1337 = pneg %p868
        %p1338 = scmp.lt.s32.totalorder %s90, 3
        %s1339 = scalar_select %p1338, %s90, 3
        %s1340 = scalar_lea.vmem %s71, %s1339
        %p1341 = scmp.lt.s32.totalorder %s90, 3
        %s1342 = scalar_select %p1341, %s90, 3
        %s1343 = smul.addr %s1342, 2
        %s1344 = smul.addr %s1343, 8
        %s1345 = scalar_lea.vmem %s1, %s1344
        %p1346 = scmp.lt.s32.totalorder %s90, 3
        %s1347 = scalar_select %p1346, %s90, 3
        %s1348 = smul.addr %s1347, 6
        %s1349 = smul.addr %s1348, 8
        %s1350 = scalar_lea.vmem %s3, %s1349
        %p1351 = scmp.lt.s32.totalorder %s90, 3
        %s1352 = scalar_select %p1351, %s90, 3
        %s1353 = smul.addr %s1352, 6
        %s1354 = smul.addr %s1353, 8
        %s1355 = scalar_lea.vmem %s5, %s1354
        %p1356 = scmp.lt.s32.totalorder %s90, 3
        %s1357 = scalar_select %p1356, %s90, 3
        %s1358 = smul.addr %s1357, 6
        %s1359 = smul.addr %s1358, 8
        %s1360 = scalar_lea.vmem %s7, %s1359
        %p1361 = scmp.lt.s32.totalorder %s90, 3
        %s1362 = scalar_select %p1361, %s90, 3
        %s1363 = smul.addr %s1362, 2
        %s1364 = smul.addr %s1363, 8
        %s1365 = scalar_lea.vmem %s9, %s1364
        %p1366 = scmp.lt.s32.totalorder %s90, 3
        %s1367 = scalar_select %p1366, %s90, 3
        %s1368 = scalar_lea.vmem %s71, %s1367
        %v1369 = vld [vmem:[%s1345] sm:$0xff]
        %v1370 = vld [vmem:[%s1345 + $0x8] sm:$0xff]
        %v1371 = vld [vmem:[#allocation2] sm:$0xff]
        %v1372 = vld [vmem:[#allocation2 + $0x8] sm:$0xf]
        %v1373 = vld [vmem:[%s13] sm:$0x1]
        %v1375 = vperm.slane %v1373, 0
        %vm1377 = vcmask 97280
        %v1379 = vsel %vm1377, %v1369, 0
        %v1382 = vsel %vm1377, %v1370, 0
        %vm1384 = vcmask 1043456
        %v1386 = vsel %vm1384, %v1372, 0
        %1388 = vmatpush.msra.mxu0 0.0
        %1389 = vmatpush.msra.mxu0 0.0
        %1390 = vmatpush.msra.mxu0 0.0
        %1391 = vmatpush.msra.mxu0 0.0
        %1392 = vmatpush.msra.mxu0 0.0
        %1393 = vmatpush.msra.mxu0 0.0
        %1394 = vmatpush.msra.mxu0 0.0
        %1395 = vmatpush.msra.mxu0 0.0
        %1396 = vmatpush.msra.mxu0 0.0
        %1397 = vmatpush.msra.mxu0 0.0
        %1398 = vmatpush.msra.mxu0 0.0
        %1399 = vmatpush.msra.mxu0 0.0
        %1400 = vmatpush.msra.mxu0 0.0
        %1401 = vmatpush.msra.mxu0 0.0
        %1402 = vmatpush.msra.mxu0 %v1386
        %1403 = vmatpush.msra.mxu0 %v1371
        %1404 = vmatmul.f32.gmra.mxu0 %v1379
        %v1405 = vpop.f32.mrf.mxu0
        %v1406 = vadd.f32 %v1375, %v1405
        %1407 = vmatmul.f32.gmra.mxu0 %v1382
        %v1408 = vpop.f32.mrf.mxu0
        %v1409 = vadd.f32 %v1375, %v1408
        %1410 = vdwg.mxu0
        %v1411 = vld [vmem:[%s1350] sm:$0xff]
        %v1412 = vld [vmem:[%s1350 + $0x8] sm:$0xff]
        %v1413 = vld [vmem:[%s1350 + $0x10] sm:$0xff]
        %v1414 = vld [vmem:[%s1350 + $0x18] sm:$0xff]
        %v1415 = vld [vmem:[%s1350 + $0x20] sm:$0xff]
        %v1416 = vld [vmem:[%s1350 + $0x28] sm:$0xff]
        %v1417 = vld [vmem:[#allocation4] sm:$0x3f]
        %v1418 = vld [vmem:[%s17] sm:$0x1]
        %v1420 = vperm.slane %v1418, 0
        %vm1422 = vcmask 48128
        %v1424 = vsel %vm1422, %v1411, 0
        %v1427 = vsel %vm1422, %v1412, 0
        %v1430 = vsel %vm1422, %v1413, 0
        %v1433 = vsel %vm1422, %v1414, 0
        %v1436 = vsel %vm1422, %v1415, 0
        %v1439 = vsel %vm1422, %v1416, 0
        %vm1441 = vcmask 1045504
        %v1443 = vsel %vm1441, %v1417, 0
        %1445 = vmatpush.msra.mxu0 0.0
        %1446 = vmatpush.msra.mxu0 0.0
        %1447 = vmatpush.msra.mxu0 0.0
        %1448 = vmatpush.msra.mxu0 0.0
        %1449 = vmatpush.msra.mxu0 0.0
        %1450 = vmatpush.msra.mxu0 0.0
        %1451 = vmatpush.msra.mxu0 0.0
        %1452 = vmatpush.msra.mxu0 0.0
        %1453 = vmatpush.msra.mxu0 0.0
        %1454 = vmatpush.msra.mxu0 0.0
        %1455 = vmatpush.msra.mxu0 0.0
        %1456 = vmatpush.msra.mxu0 0.0
        %1457 = vmatpush.msra.mxu0 0.0
        %1458 = vmatpush.msra.mxu0 0.0
        %1459 = vmatpush.msra.mxu0 0.0
        %1460 = vmatpush.msra.mxu0 %v1443
        %1461 = vmatmul.f32.gmra.mxu0 %v1424
        %v1462 = vpop.f32.mrf.mxu0
        %v1463 = vadd.f32 %v1420, %v1462
        %1464 = vmatmul.f32.gmra.mxu0 %v1427
        %v1465 = vpop.f32.mrf.mxu0
        %v1466 = vadd.f32 %v1420, %v1465
        %1467 = vmatmul.f32.gmra.mxu0 %v1430
        %v1468 = vpop.f32.mrf.mxu0
        %v1469 = vadd.f32 %v1420, %v1468
        %1470 = vmatmul.f32.gmra.mxu0 %v1433
        %v1471 = vpop.f32.mrf.mxu0
        %v1472 = vadd.f32 %v1420, %v1471
        %1473 = vmatmul.f32.gmra.mxu0 %v1436
        %v1474 = vpop.f32.mrf.mxu0
        %v1475 = vadd.f32 %v1420, %v1474
        %1476 = vmatmul.f32.gmra.mxu0 %v1439
        %v1477 = vpop.f32.mrf.mxu0
        %v1478 = vadd.f32 %v1420, %v1477
        %1479 = vdwg.mxu0
        %v1480 = vld [vmem:[%s1355] sm:$0xff]
        %v1481 = vld [vmem:[%s1355 + $0x8] sm:$0xff]
        %v1482 = vld [vmem:[%s1355 + $0x10] sm:$0xff]
        %v1483 = vld [vmem:[%s1355 + $0x18] sm:$0xff]
        %v1484 = vld [vmem:[%s1355 + $0x20] sm:$0xff]
        %v1485 = vld [vmem:[%s1355 + $0x28] sm:$0xff]
        %v1486 = vld [vmem:[%s1360] sm:$0xff]
        %v1487 = vld [vmem:[%s1360 + $0x8] sm:$0xff]
        %v1488 = vld [vmem:[%s1360 + $0x10] sm:$0xff]
        %v1489 = vld [vmem:[%s1360 + $0x18] sm:$0xff]
        %v1490 = vld [vmem:[%s1360 + $0x20] sm:$0xff]
        %v1491 = vld [vmem:[%s1360 + $0x28] sm:$0xff]
        %v1492 = vld [vmem:[%s1365] sm:$0xff]
        %v1493 = vld [vmem:[%s1365 + $0x8] sm:$0xff]
        %vm1494 = vcmask 392192
        %v1496 = vsel %vm1494, %v1492, 0
        %v1499 = vsel %vm1494, %v1493, 0
        %1501 = vmatpush.msra.mxu0 0.0
        %1502 = vmatpush.msra.mxu0 0.0
        %1503 = vmatpush.msra.mxu0 0.0
        %1504 = vmatpush.msra.mxu0 0.0
        %1505 = vmatpush.msra.mxu0 0.0
        %1506 = vmatpush.msra.mxu0 0.0
        %1507 = vmatpush.msra.mxu0 0.0
        %1508 = vmatpush.msra.mxu0 0.0
        %1509 = vmatpush.msra.mxu0 0.0
        %1510 = vmatpush.msra.mxu0 0.0
        %1511 = vmatpush.msra.mxu0 1.0
        %1512 = vmatpush.msra.mxu0 1.0
        %1513 = vmatpush.msra.mxu0 1.0
        %1514 = vmatpush.msra.mxu0 1.0
        %1515 = vmatpush.msra.mxu0 1.0
        %1516 = vmatpush.msra.mxu0 1.0
        %1517 = vmatmul.f32.gmra.mxu0 %v1496
        %v1518 = vpop.f32.mrf.mxu0
        %v1519 = vadd.f32 0.0, %v1518
        %1520 = vmatmul.f32.gmra.mxu0 %v1499
        %v1521 = vpop.f32.mrf.mxu0
        %v1522 = vadd.f32 0.0, %v1521
        %1523 = vdwg.mxu0
        %vm1524 = vcmp.gt.f32.partialorder %v1519, 0.0
        %vm1525 = vcmp.gt.f32.partialorder %v1522, 0.0
        %v1526 = vmax.f32 %v1519, 1.0
        %v1527 = vmax.f32 %v1522, 1.0
        %v1528 = vrcp.pop %v1526
        %v1529 = vmul.f32 %v1526, %v1528
        %v1530 = vsub.f32 1.0, %v1529
        %v1531 = vmul.f32 %v1528, %v1530
        %v1532 = vadd.f32 %v1528, %v1531
        %vm1533 = vweird.f32 %v1526
        %vm1534 = vweird.f32 %v1528
        %vm1535 = vmor %vm1533, %vm1534
        %v1536 = vsel %vm1535, %v1528, %v1532
        %v1537 = vand.u32 2147483647, %v1526
        %vm1538 = vcmp.eq.f32.partialorder %v1537, 8.507059e+37
        %v1539 = vand.u32 %v1526, 2147483648
        %v1540 = vor.u32 1.1754944e-38, %v1539
        %v1541 = vsel %vm1538, %v1540, %v1536
        %v1542 = vmul.f32 1.0, %v1541
        %v1543 = vrcp.pop %v1527
        %v1544 = vmul.f32 %v1527, %v1543
        %v1545 = vsub.f32 1.0, %v1544
        %v1546 = vmul.f32 %v1543, %v1545
        %v1547 = vadd.f32 %v1543, %v1546
        %vm1548 = vweird.f32 %v1527
        %vm1549 = vweird.f32 %v1543
        %vm1550 = vmor %vm1548, %vm1549
        %v1551 = vsel %vm1550, %v1543, %v1547
        %v1552 = vand.u32 2147483647, %v1527
        %vm1553 = vcmp.eq.f32.partialorder %v1552, 8.507059e+37
        %v1554 = vand.u32 %v1527, 2147483648
        %v1555 = vor.u32 1.1754944e-38, %v1554
        %v1556 = vsel %vm1553, %v1555, %v1551
        %v1557 = vmul.f32 1.0, %v1556
        %v1558 = vadd.f32 %v1519, 1.0
        %v1559 = vadd.f32 %v1522, 1.0
        %v1560 = vlog2.pop %v1558
        %v1561 = vmul.f32 %v1560, 0.6931472
        %v1562 = vlog2.pop %v1559
        %v1563 = vmul.f32 %v1562, 0.6931472
        %v1564 = vmul.f32 %v1561, 0.4
        %v1565 = vmul.f32 %v1563, 0.4
        %v1566 = vmax.f32 %v1561, 1e-12
        %v1567 = vmax.f32 %v1563, 1e-12
        %v1568 = vrcp.pop %v1566
        %v1569 = vmul.f32 %v1566, %v1568
        %v1570 = vsub.f32 1.0, %v1569
        %v1571 = vmul.f32 %v1568, %v1570
        %v1572 = vadd.f32 %v1568, %v1571
        %vm1573 = vweird.f32 %v1566
        %vm1574 = vweird.f32 %v1568
        %vm1575 = vmor %vm1573, %vm1574
        %v1576 = vsel %vm1575, %v1568, %v1572
        %v1577 = vand.u32 2147483647, %v1566
        %vm1578 = vcmp.eq.f32.partialorder %v1577, 8.507059e+37
        %v1579 = vand.u32 %v1566, 2147483648
        %v1580 = vor.u32 1.1754944e-38, %v1579
        %v1581 = vsel %vm1578, %v1580, %v1576
        %v1582 = vmul.f32 2.5, %v1581
        %v1583 = vrcp.pop %v1567
        %v1584 = vmul.f32 %v1567, %v1583
        %v1585 = vsub.f32 1.0, %v1584
        %v1586 = vmul.f32 %v1583, %v1585
        %v1587 = vadd.f32 %v1583, %v1586
        %vm1588 = vweird.f32 %v1567
        %vm1589 = vweird.f32 %v1583
        %vm1590 = vmor %vm1588, %vm1589
        %v1591 = vsel %vm1590, %v1583, %v1587
        %v1592 = vand.u32 2147483647, %v1567
        %vm1593 = vcmp.eq.f32.partialorder %v1592, 8.507059e+37
        %v1594 = vand.u32 %v1567, 2147483648
        %v1595 = vor.u32 1.1754944e-38, %v1594
        %v1596 = vsel %vm1593, %v1595, %v1591
        %v1597 = vmul.f32 2.5, %v1596
        %v1598 = vsel %vm1524, %v1582, 0.0
        %v1599 = vsel %vm1525, %v1597, 0.0
        %v1600 = vsub.f32 %v1486, 1.0
        %v1601 = vsub.f32 %v1487, 1.0
        %v1602 = vsub.f32 %v1488, 1.0
        %v1603 = vsub.f32 %v1489, 1.0
        %v1604 = vsub.f32 %v1490, 1.0
        %v1605 = vsub.f32 %v1491, 1.0
        %v1606 = vmul.f32 %v1600, 1e+30
        %v1607 = vmul.f32 %v1601, 1e+30
        %v1608 = vmul.f32 %v1602, 1e+30
        %v1609 = vmul.f32 %v1603, 1e+30
        %v1610 = vmul.f32 %v1604, 1e+30
        %v1611 = vmul.f32 %v1605, 1e+30
        %v1612 = vperm.slane %v1606, 0
        %v1613 = vlaneseq
        %v1614 = vshrl.u32 %v1613, 7
        %1616 = vset.pattern.permute.xlu0 %v1614
        %1617 = vperm.xlu0 %1616, %v1612
        %v1618 = vpop.permute.xlu0 %1617
        %v1619 = vlaneseq
        %v1620 = vshrl.u32 %v1619, 7
        %v1621 = vadd.s32 %v1620, 8
        %1622 = vset.pattern.permute.xlu0 %v1621
        %1623 = vperm.xlu0 %1622, %v1612
        %v1624 = vpop.permute.xlu0 %1623
        %v1625 = vperm.slane %v1606, 1
        %v1626 = vlaneseq
        %v1627 = vshrl.u32 %v1626, 7
        %1629 = vset.pattern.permute.xlu0 %v1627
        %1630 = vperm.xlu0 %1629, %v1625
        %v1631 = vpop.permute.xlu0 %1630
        %v1632 = vlaneseq
        %v1633 = vshrl.u32 %v1632, 7
        %v1634 = vadd.s32 %v1633, 8
        %1635 = vset.pattern.permute.xlu0 %v1634
        %1636 = vperm.xlu0 %1635, %v1625
        %v1637 = vpop.permute.xlu0 %1636
        %v1638 = vperm.slane %v1606, 2
        %v1639 = vlaneseq
        %v1640 = vshrl.u32 %v1639, 7
        %1642 = vset.pattern.permute.xlu0 %v1640
        %1643 = vperm.xlu0 %1642, %v1638
        %v1644 = vpop.permute.xlu0 %1643
        %v1645 = vlaneseq
        %v1646 = vshrl.u32 %v1645, 7
        %v1647 = vadd.s32 %v1646, 8
        %1648 = vset.pattern.permute.xlu0 %v1647
        %1649 = vperm.xlu0 %1648, %v1638
        %v1650 = vpop.permute.xlu0 %1649
        %v1651 = vperm.slane %v1606, 3
        %v1652 = vlaneseq
        %v1653 = vshrl.u32 %v1652, 7
        %1655 = vset.pattern.permute.xlu0 %v1653
        %1656 = vperm.xlu0 %1655, %v1651
        %v1657 = vpop.permute.xlu0 %1656
        %v1658 = vlaneseq
        %v1659 = vshrl.u32 %v1658, 7
        %v1660 = vadd.s32 %v1659, 8
        %1661 = vset.pattern.permute.xlu0 %v1660
        %1662 = vperm.xlu0 %1661, %v1651
        %v1663 = vpop.permute.xlu0 %1662
        %v1664 = vperm.slane %v1606, 4
        %v1665 = vlaneseq
        %v1666 = vshrl.u32 %v1665, 7
        %1668 = vset.pattern.permute.xlu0 %v1666
        %1669 = vperm.xlu0 %1668, %v1664
        %v1670 = vpop.permute.xlu0 %1669
        %v1671 = vlaneseq
        %v1672 = vshrl.u32 %v1671, 7
        %v1673 = vadd.s32 %v1672, 8
        %1674 = vset.pattern.permute.xlu0 %v1673
        %1675 = vperm.xlu0 %1674, %v1664
        %v1676 = vpop.permute.xlu0 %1675
        %v1677 = vperm.slane %v1606, 5
        %v1678 = vlaneseq
        %v1679 = vshrl.u32 %v1678, 7
        %1681 = vset.pattern.permute.xlu0 %v1679
        %1682 = vperm.xlu0 %1681, %v1677
        %v1683 = vpop.permute.xlu0 %1682
        %v1684 = vlaneseq
        %v1685 = vshrl.u32 %v1684, 7
        %v1686 = vadd.s32 %v1685, 8
        %1687 = vset.pattern.permute.xlu0 %v1686
        %1688 = vperm.xlu0 %1687, %v1677
        %v1689 = vpop.permute.xlu0 %1688
        %v1690 = vperm.slane %v1606, 6
        %v1691 = vlaneseq
        %v1692 = vshrl.u32 %v1691, 7
        %1694 = vset.pattern.permute.xlu0 %v1692
        %1695 = vperm.xlu0 %1694, %v1690
        %v1696 = vpop.permute.xlu0 %1695
        %v1697 = vlaneseq
        %v1698 = vshrl.u32 %v1697, 7
        %v1699 = vadd.s32 %v1698, 8
        %1700 = vset.pattern.permute.xlu0 %v1699
        %1701 = vperm.xlu0 %1700, %v1690
        %v1702 = vpop.permute.xlu0 %1701
        %v1703 = vperm.slane %v1606, 7
        %v1704 = vlaneseq
        %v1705 = vshrl.u32 %v1704, 7
        %1707 = vset.pattern.permute.xlu0 %v1705
        %1708 = vperm.xlu0 %1707, %v1703
        %v1709 = vpop.permute.xlu0 %1708
        %v1710 = vlaneseq
        %v1711 = vshrl.u32 %v1710, 7
        %v1712 = vadd.s32 %v1711, 8
        %1713 = vset.pattern.permute.xlu0 %v1712
        %1714 = vperm.xlu0 %1713, %v1703
        %v1715 = vpop.permute.xlu0 %1714
        %v1716 = vperm.slane %v1607, 0
        %v1717 = vlaneseq
        %v1718 = vshrl.u32 %v1717, 7
        %1720 = vset.pattern.permute.xlu0 %v1718
        %1721 = vperm.xlu0 %1720, %v1716
        %v1722 = vpop.permute.xlu0 %1721
        %v1723 = vlaneseq
        %v1724 = vshrl.u32 %v1723, 7
        %v1725 = vadd.s32 %v1724, 8
        %1726 = vset.pattern.permute.xlu0 %v1725
        %1727 = vperm.xlu0 %1726, %v1716
        %v1728 = vpop.permute.xlu0 %1727
        %v1729 = vperm.slane %v1607, 1
        %v1730 = vlaneseq
        %v1731 = vshrl.u32 %v1730, 7
        %1733 = vset.pattern.permute.xlu0 %v1731
        %1734 = vperm.xlu0 %1733, %v1729
        %v1735 = vpop.permute.xlu0 %1734
        %v1736 = vlaneseq
        %v1737 = vshrl.u32 %v1736, 7
        %v1738 = vadd.s32 %v1737, 8
        %1739 = vset.pattern.permute.xlu0 %v1738
        %1740 = vperm.xlu0 %1739, %v1729
        %v1741 = vpop.permute.xlu0 %1740
        %v1742 = vperm.slane %v1607, 2
        %v1743 = vlaneseq
        %v1744 = vshrl.u32 %v1743, 7
        %1746 = vset.pattern.permute.xlu0 %v1744
        %1747 = vperm.xlu0 %1746, %v1742
        %v1748 = vpop.permute.xlu0 %1747
        %v1749 = vlaneseq
        %v1750 = vshrl.u32 %v1749, 7
        %v1751 = vadd.s32 %v1750, 8
        %1752 = vset.pattern.permute.xlu0 %v1751
        %1753 = vperm.xlu0 %1752, %v1742
        %v1754 = vpop.permute.xlu0 %1753
        %v1755 = vperm.slane %v1607, 3
        %v1756 = vlaneseq
        %v1757 = vshrl.u32 %v1756, 7
        %1759 = vset.pattern.permute.xlu0 %v1757
        %1760 = vperm.xlu0 %1759, %v1755
        %v1761 = vpop.permute.xlu0 %1760
        %v1762 = vlaneseq
        %v1763 = vshrl.u32 %v1762, 7
        %v1764 = vadd.s32 %v1763, 8
        %1765 = vset.pattern.permute.xlu0 %v1764
        %1766 = vperm.xlu0 %1765, %v1755
        %v1767 = vpop.permute.xlu0 %1766
        %v1768 = vperm.slane %v1607, 4
        %v1769 = vlaneseq
        %v1770 = vshrl.u32 %v1769, 7
        %1772 = vset.pattern.permute.xlu0 %v1770
        %1773 = vperm.xlu0 %1772, %v1768
        %v1774 = vpop.permute.xlu0 %1773
        %v1775 = vlaneseq
        %v1776 = vshrl.u32 %v1775, 7
        %v1777 = vadd.s32 %v1776, 8
        %1778 = vset.pattern.permute.xlu0 %v1777
        %1779 = vperm.xlu0 %1778, %v1768
        %v1780 = vpop.permute.xlu0 %1779
        %v1781 = vperm.slane %v1607, 5
        %v1782 = vlaneseq
        %v1783 = vshrl.u32 %v1782, 7
        %1785 = vset.pattern.permute.xlu0 %v1783
        %1786 = vperm.xlu0 %1785, %v1781
        %v1787 = vpop.permute.xlu0 %1786
        %v1788 = vlaneseq
        %v1789 = vshrl.u32 %v1788, 7
        %v1790 = vadd.s32 %v1789, 8
        %1791 = vset.pattern.permute.xlu0 %v1790
        %1792 = vperm.xlu0 %1791, %v1781
        %v1793 = vpop.permute.xlu0 %1792
        %v1794 = vperm.slane %v1607, 6
        %v1795 = vlaneseq
        %v1796 = vshrl.u32 %v1795, 7
        %1798 = vset.pattern.permute.xlu0 %v1796
        %1799 = vperm.xlu0 %1798, %v1794
        %v1800 = vpop.permute.xlu0 %1799
        %v1801 = vlaneseq
        %v1802 = vshrl.u32 %v1801, 7
        %v1803 = vadd.s32 %v1802, 8
        %1804 = vset.pattern.permute.xlu0 %v1803
        %1805 = vperm.xlu0 %1804, %v1794
        %v1806 = vpop.permute.xlu0 %1805
        %v1807 = vperm.slane %v1607, 7
        %v1808 = vlaneseq
        %v1809 = vshrl.u32 %v1808, 7
        %1811 = vset.pattern.permute.xlu0 %v1809
        %1812 = vperm.xlu0 %1811, %v1807
        %v1813 = vpop.permute.xlu0 %1812
        %v1814 = vlaneseq
        %v1815 = vshrl.u32 %v1814, 7
        %v1816 = vadd.s32 %v1815, 8
        %1817 = vset.pattern.permute.xlu0 %v1816
        %1818 = vperm.xlu0 %1817, %v1807
        %v1819 = vpop.permute.xlu0 %1818
        %v1820 = vperm.slane %v1608, 0
        %v1821 = vlaneseq
        %v1822 = vshrl.u32 %v1821, 7
        %1824 = vset.pattern.permute.xlu0 %v1822
        %1825 = vperm.xlu0 %1824, %v1820
        %v1826 = vpop.permute.xlu0 %1825
        %v1827 = vlaneseq
        %v1828 = vshrl.u32 %v1827, 7
        %v1829 = vadd.s32 %v1828, 8
        %1830 = vset.pattern.permute.xlu0 %v1829
        %1831 = vperm.xlu0 %1830, %v1820
        %v1832 = vpop.permute.xlu0 %1831
        %v1833 = vperm.slane %v1608, 1
        %v1834 = vlaneseq
        %v1835 = vshrl.u32 %v1834, 7
        %1837 = vset.pattern.permute.xlu0 %v1835
        %1838 = vperm.xlu0 %1837, %v1833
        %v1839 = vpop.permute.xlu0 %1838
        %v1840 = vlaneseq
        %v1841 = vshrl.u32 %v1840, 7
        %v1842 = vadd.s32 %v1841, 8
        %1843 = vset.pattern.permute.xlu0 %v1842
        %1844 = vperm.xlu0 %1843, %v1833
        %v1845 = vpop.permute.xlu0 %1844
        %v1846 = vperm.slane %v1608, 2
        %v1847 = vlaneseq
        %v1848 = vshrl.u32 %v1847, 7
        %1850 = vset.pattern.permute.xlu0 %v1848
        %1851 = vperm.xlu0 %1850, %v1846
        %v1852 = vpop.permute.xlu0 %1851
        %v1853 = vlaneseq
        %v1854 = vshrl.u32 %v1853, 7
        %v1855 = vadd.s32 %v1854, 8
        %1856 = vset.pattern.permute.xlu0 %v1855
        %1857 = vperm.xlu0 %1856, %v1846
        %v1858 = vpop.permute.xlu0 %1857
        %v1859 = vperm.slane %v1608, 3
        %v1860 = vlaneseq
        %v1861 = vshrl.u32 %v1860, 7
        %1863 = vset.pattern.permute.xlu0 %v1861
        %1864 = vperm.xlu0 %1863, %v1859
        %v1865 = vpop.permute.xlu0 %1864
        %v1866 = vlaneseq
        %v1867 = vshrl.u32 %v1866, 7
        %v1868 = vadd.s32 %v1867, 8
        %1869 = vset.pattern.permute.xlu0 %v1868
        %1870 = vperm.xlu0 %1869, %v1859
        %v1871 = vpop.permute.xlu0 %1870
        %v1872 = vperm.slane %v1608, 4
        %v1873 = vlaneseq
        %v1874 = vshrl.u32 %v1873, 7
        %1876 = vset.pattern.permute.xlu0 %v1874
        %1877 = vperm.xlu0 %1876, %v1872
        %v1878 = vpop.permute.xlu0 %1877
        %v1879 = vlaneseq
        %v1880 = vshrl.u32 %v1879, 7
        %v1881 = vadd.s32 %v1880, 8
        %1882 = vset.pattern.permute.xlu0 %v1881
        %1883 = vperm.xlu0 %1882, %v1872
        %v1884 = vpop.permute.xlu0 %1883
        %v1885 = vperm.slane %v1608, 5
        %v1886 = vlaneseq
        %v1887 = vshrl.u32 %v1886, 7
        %1889 = vset.pattern.permute.xlu0 %v1887
        %1890 = vperm.xlu0 %1889, %v1885
        %v1891 = vpop.permute.xlu0 %1890
        %v1892 = vlaneseq
        %v1893 = vshrl.u32 %v1892, 7
        %v1894 = vadd.s32 %v1893, 8
        %1895 = vset.pattern.permute.xlu0 %v1894
        %1896 = vperm.xlu0 %1895, %v1885
        %v1897 = vpop.permute.xlu0 %1896
        %v1898 = vperm.slane %v1608, 6
        %v1899 = vlaneseq
        %v1900 = vshrl.u32 %v1899, 7
        %1902 = vset.pattern.permute.xlu0 %v1900
        %1903 = vperm.xlu0 %1902, %v1898
        %v1904 = vpop.permute.xlu0 %1903
        %v1905 = vlaneseq
        %v1906 = vshrl.u32 %v1905, 7
        %v1907 = vadd.s32 %v1906, 8
        %1908 = vset.pattern.permute.xlu0 %v1907
        %1909 = vperm.xlu0 %1908, %v1898
        %v1910 = vpop.permute.xlu0 %1909
        %v1911 = vperm.slane %v1608, 7
        %v1912 = vlaneseq
        %v1913 = vshrl.u32 %v1912, 7
        %1915 = vset.pattern.permute.xlu0 %v1913
        %1916 = vperm.xlu0 %1915, %v1911
        %v1917 = vpop.permute.xlu0 %1916
        %v1918 = vlaneseq
        %v1919 = vshrl.u32 %v1918, 7
        %v1920 = vadd.s32 %v1919, 8
        %1921 = vset.pattern.permute.xlu0 %v1920
        %1922 = vperm.xlu0 %1921, %v1911
        %v1923 = vpop.permute.xlu0 %1922
        %v1924 = vperm.slane %v1609, 0
        %v1925 = vlaneseq
        %v1926 = vshrl.u32 %v1925, 7
        %1928 = vset.pattern.permute.xlu0 %v1926
        %1929 = vperm.xlu0 %1928, %v1924
        %v1930 = vpop.permute.xlu0 %1929
        %v1931 = vlaneseq
        %v1932 = vshrl.u32 %v1931, 7
        %v1933 = vadd.s32 %v1932, 8
        %1934 = vset.pattern.permute.xlu0 %v1933
        %1935 = vperm.xlu0 %1934, %v1924
        %v1936 = vpop.permute.xlu0 %1935
        %v1937 = vperm.slane %v1609, 1
        %v1938 = vlaneseq
        %v1939 = vshrl.u32 %v1938, 7
        %1941 = vset.pattern.permute.xlu0 %v1939
        %1942 = vperm.xlu0 %1941, %v1937
        %v1943 = vpop.permute.xlu0 %1942
        %v1944 = vlaneseq
        %v1945 = vshrl.u32 %v1944, 7
        %v1946 = vadd.s32 %v1945, 8
        %1947 = vset.pattern.permute.xlu0 %v1946
        %1948 = vperm.xlu0 %1947, %v1937
        %v1949 = vpop.permute.xlu0 %1948
        %v1950 = vperm.slane %v1609, 2
        %v1951 = vlaneseq
        %v1952 = vshrl.u32 %v1951, 7
        %1954 = vset.pattern.permute.xlu0 %v1952
        %1955 = vperm.xlu0 %1954, %v1950
        %v1956 = vpop.permute.xlu0 %1955
        %v1957 = vlaneseq
        %v1958 = vshrl.u32 %v1957, 7
        %v1959 = vadd.s32 %v1958, 8
        %1960 = vset.pattern.permute.xlu0 %v1959
        %1961 = vperm.xlu0 %1960, %v1950
        %v1962 = vpop.permute.xlu0 %1961
        %v1963 = vperm.slane %v1609, 3
        %v1964 = vlaneseq
        %v1965 = vshrl.u32 %v1964, 7
        %1967 = vset.pattern.permute.xlu0 %v1965
        %1968 = vperm.xlu0 %1967, %v1963
        %v1969 = vpop.permute.xlu0 %1968
        %v1970 = vlaneseq
        %v1971 = vshrl.u32 %v1970, 7
        %v1972 = vadd.s32 %v1971, 8
        %1973 = vset.pattern.permute.xlu0 %v1972
        %1974 = vperm.xlu0 %1973, %v1963
        %v1975 = vpop.permute.xlu0 %1974
        %v1976 = vperm.slane %v1609, 4
        %v1977 = vlaneseq
        %v1978 = vshrl.u32 %v1977, 7
        %1980 = vset.pattern.permute.xlu0 %v1978
        %1981 = vperm.xlu0 %1980, %v1976
        %v1982 = vpop.permute.xlu0 %1981
        %v1983 = vlaneseq
        %v1984 = vshrl.u32 %v1983, 7
        %v1985 = vadd.s32 %v1984, 8
        %1986 = vset.pattern.permute.xlu0 %v1985
        %1987 = vperm.xlu0 %1986, %v1976
        %v1988 = vpop.permute.xlu0 %1987
        %v1989 = vperm.slane %v1609, 5
        %v1990 = vlaneseq
        %v1991 = vshrl.u32 %v1990, 7
        %1993 = vset.pattern.permute.xlu0 %v1991
        %1994 = vperm.xlu0 %1993, %v1989
        %v1995 = vpop.permute.xlu0 %1994
        %v1996 = vlaneseq
        %v1997 = vshrl.u32 %v1996, 7
        %v1998 = vadd.s32 %v1997, 8
        %1999 = vset.pattern.permute.xlu0 %v1998
        %2000 = vperm.xlu0 %1999, %v1989
        %v2001 = vpop.permute.xlu0 %2000
        %v2002 = vperm.slane %v1609, 6
        %v2003 = vlaneseq
        %v2004 = vshrl.u32 %v2003, 7
        %2006 = vset.pattern.permute.xlu0 %v2004
        %2007 = vperm.xlu0 %2006, %v2002
        %v2008 = vpop.permute.xlu0 %2007
        %v2009 = vlaneseq
        %v2010 = vshrl.u32 %v2009, 7
        %v2011 = vadd.s32 %v2010, 8
        %2012 = vset.pattern.permute.xlu0 %v2011
        %2013 = vperm.xlu0 %2012, %v2002
        %v2014 = vpop.permute.xlu0 %2013
        %v2015 = vperm.slane %v1609, 7
        %v2016 = vlaneseq
        %v2017 = vshrl.u32 %v2016, 7
        %2019 = vset.pattern.permute.xlu0 %v2017
        %2020 = vperm.xlu0 %2019, %v2015
        %v2021 = vpop.permute.xlu0 %2020
        %v2022 = vlaneseq
        %v2023 = vshrl.u32 %v2022, 7
        %v2024 = vadd.s32 %v2023, 8
        %2025 = vset.pattern.permute.xlu0 %v2024
        %2026 = vperm.xlu0 %2025, %v2015
        %v2027 = vpop.permute.xlu0 %2026
        %v2028 = vperm.slane %v1610, 0
        %v2029 = vlaneseq
        %v2030 = vshrl.u32 %v2029, 7
        %2032 = vset.pattern.permute.xlu0 %v2030
        %2033 = vperm.xlu0 %2032, %v2028
        %v2034 = vpop.permute.xlu0 %2033
        %v2035 = vlaneseq
        %v2036 = vshrl.u32 %v2035, 7
        %v2037 = vadd.s32 %v2036, 8
        %2038 = vset.pattern.permute.xlu0 %v2037
        %2039 = vperm.xlu0 %2038, %v2028
        %v2040 = vpop.permute.xlu0 %2039
        %v2041 = vperm.slane %v1610, 1
        %v2042 = vlaneseq
        %v2043 = vshrl.u32 %v2042, 7
        %2045 = vset.pattern.permute.xlu0 %v2043
        %2046 = vperm.xlu0 %2045, %v2041
        %v2047 = vpop.permute.xlu0 %2046
        %v2048 = vlaneseq
        %v2049 = vshrl.u32 %v2048, 7
        %v2050 = vadd.s32 %v2049, 8
        %2051 = vset.pattern.permute.xlu0 %v2050
        %2052 = vperm.xlu0 %2051, %v2041
        %v2053 = vpop.permute.xlu0 %2052
        %v2054 = vperm.slane %v1610, 2
        %v2055 = vlaneseq
        %v2056 = vshrl.u32 %v2055, 7
        %2058 = vset.pattern.permute.xlu0 %v2056
        %2059 = vperm.xlu0 %2058, %v2054
        %v2060 = vpop.permute.xlu0 %2059
        %v2061 = vlaneseq
        %v2062 = vshrl.u32 %v2061, 7
        %v2063 = vadd.s32 %v2062, 8
        %2064 = vset.pattern.permute.xlu0 %v2063
        %2065 = vperm.xlu0 %2064, %v2054
        %v2066 = vpop.permute.xlu0 %2065
        %v2067 = vperm.slane %v1610, 3
        %v2068 = vlaneseq
        %v2069 = vshrl.u32 %v2068, 7
        %2071 = vset.pattern.permute.xlu0 %v2069
        %2072 = vperm.xlu0 %2071, %v2067
        %v2073 = vpop.permute.xlu0 %2072
        %v2074 = vlaneseq
        %v2075 = vshrl.u32 %v2074, 7
        %v2076 = vadd.s32 %v2075, 8
        %2077 = vset.pattern.permute.xlu0 %v2076
        %2078 = vperm.xlu0 %2077, %v2067
        %v2079 = vpop.permute.xlu0 %2078
        %v2080 = vperm.slane %v1610, 4
        %v2081 = vlaneseq
        %v2082 = vshrl.u32 %v2081, 7
        %2084 = vset.pattern.permute.xlu0 %v2082
        %2085 = vperm.xlu0 %2084, %v2080
        %v2086 = vpop.permute.xlu0 %2085
        %v2087 = vlaneseq
        %v2088 = vshrl.u32 %v2087, 7
        %v2089 = vadd.s32 %v2088, 8
        %2090 = vset.pattern.permute.xlu0 %v2089
        %2091 = vperm.xlu0 %2090, %v2080
        %v2092 = vpop.permute.xlu0 %2091
        %v2093 = vperm.slane %v1610, 5
        %v2094 = vlaneseq
        %v2095 = vshrl.u32 %v2094, 7
        %2097 = vset.pattern.permute.xlu0 %v2095
        %2098 = vperm.xlu0 %2097, %v2093
        %v2099 = vpop.permute.xlu0 %2098
        %v2100 = vlaneseq
        %v2101 = vshrl.u32 %v2100, 7
        %v2102 = vadd.s32 %v2101, 8
        %2103 = vset.pattern.permute.xlu0 %v2102
        %2104 = vperm.xlu0 %2103, %v2093
        %v2105 = vpop.permute.xlu0 %2104
        %v2106 = vperm.slane %v1610, 6
        %v2107 = vlaneseq
        %v2108 = vshrl.u32 %v2107, 7
        %2110 = vset.pattern.permute.xlu0 %v2108
        %2111 = vperm.xlu0 %2110, %v2106
        %v2112 = vpop.permute.xlu0 %2111
        %v2113 = vlaneseq
        %v2114 = vshrl.u32 %v2113, 7
        %v2115 = vadd.s32 %v2114, 8
        %2116 = vset.pattern.permute.xlu0 %v2115
        %2117 = vperm.xlu0 %2116, %v2106
        %v2118 = vpop.permute.xlu0 %2117
        %v2119 = vperm.slane %v1610, 7
        %v2120 = vlaneseq
        %v2121 = vshrl.u32 %v2120, 7
        %2123 = vset.pattern.permute.xlu0 %v2121
        %2124 = vperm.xlu0 %2123, %v2119
        %v2125 = vpop.permute.xlu0 %2124
        %v2126 = vlaneseq
        %v2127 = vshrl.u32 %v2126, 7
        %v2128 = vadd.s32 %v2127, 8
        %2129 = vset.pattern.permute.xlu0 %v2128
        %2130 = vperm.xlu0 %2129, %v2119
        %v2131 = vpop.permute.xlu0 %2130
        %v2132 = vperm.slane %v1611, 0
        %v2133 = vlaneseq
        %v2134 = vshrl.u32 %v2133, 7
        %2136 = vset.pattern.permute.xlu0 %v2134
        %2137 = vperm.xlu0 %2136, %v2132
        %v2138 = vpop.permute.xlu0 %2137
        %v2139 = vlaneseq
        %v2140 = vshrl.u32 %v2139, 7
        %v2141 = vadd.s32 %v2140, 8
        %2142 = vset.pattern.permute.xlu0 %v2141
        %2143 = vperm.xlu0 %2142, %v2132
        %v2144 = vpop.permute.xlu0 %2143
        %v2145 = vperm.slane %v1611, 1
        %v2146 = vlaneseq
        %v2147 = vshrl.u32 %v2146, 7
        %2149 = vset.pattern.permute.xlu0 %v2147
        %2150 = vperm.xlu0 %2149, %v2145
        %v2151 = vpop.permute.xlu0 %2150
        %v2152 = vlaneseq
        %v2153 = vshrl.u32 %v2152, 7
        %v2154 = vadd.s32 %v2153, 8
        %2155 = vset.pattern.permute.xlu0 %v2154
        %2156 = vperm.xlu0 %2155, %v2145
        %v2157 = vpop.permute.xlu0 %2156
        %v2158 = vperm.slane %v1611, 2
        %v2159 = vlaneseq
        %v2160 = vshrl.u32 %v2159, 7
        %2162 = vset.pattern.permute.xlu0 %v2160
        %2163 = vperm.xlu0 %2162, %v2158
        %v2164 = vpop.permute.xlu0 %2163
        %v2165 = vlaneseq
        %v2166 = vshrl.u32 %v2165, 7
        %v2167 = vadd.s32 %v2166, 8
        %2168 = vset.pattern.permute.xlu0 %v2167
        %2169 = vperm.xlu0 %2168, %v2158
        %v2170 = vpop.permute.xlu0 %2169
        %v2171 = vperm.slane %v1611, 3
        %v2172 = vlaneseq
        %v2173 = vshrl.u32 %v2172, 7
        %2175 = vset.pattern.permute.xlu0 %v2173
        %2176 = vperm.xlu0 %2175, %v2171
        %v2177 = vpop.permute.xlu0 %2176
        %v2178 = vlaneseq
        %v2179 = vshrl.u32 %v2178, 7
        %v2180 = vadd.s32 %v2179, 8
        %2181 = vset.pattern.permute.xlu0 %v2180
        %2182 = vperm.xlu0 %2181, %v2171
        %v2183 = vpop.permute.xlu0 %2182
        %v2184 = vperm.slane %v1611, 4
        %v2185 = vlaneseq
        %v2186 = vshrl.u32 %v2185, 7
        %2188 = vset.pattern.permute.xlu0 %v2186
        %2189 = vperm.xlu0 %2188, %v2184
        %v2190 = vpop.permute.xlu0 %2189
        %v2191 = vlaneseq
        %v2192 = vshrl.u32 %v2191, 7
        %v2193 = vadd.s32 %v2192, 8
        %2194 = vset.pattern.permute.xlu0 %v2193
        %2195 = vperm.xlu0 %2194, %v2184
        %v2196 = vpop.permute.xlu0 %2195
        %v2197 = vperm.slane %v1611, 5
        %v2198 = vlaneseq
        %v2199 = vshrl.u32 %v2198, 7
        %2201 = vset.pattern.permute.xlu0 %v2199
        %2202 = vperm.xlu0 %2201, %v2197
        %v2203 = vpop.permute.xlu0 %2202
        %v2204 = vlaneseq
        %v2205 = vshrl.u32 %v2204, 7
        %v2206 = vadd.s32 %v2205, 8
        %2207 = vset.pattern.permute.xlu0 %v2206
        %2208 = vperm.xlu0 %2207, %v2197
        %v2209 = vpop.permute.xlu0 %2208
        %v2210 = vperm.slane %v1611, 6
        %v2211 = vlaneseq
        %v2212 = vshrl.u32 %v2211, 7
        %2214 = vset.pattern.permute.xlu0 %v2212
        %2215 = vperm.xlu0 %2214, %v2210
        %v2216 = vpop.permute.xlu0 %2215
        %v2217 = vlaneseq
        %v2218 = vshrl.u32 %v2217, 7
        %v2219 = vadd.s32 %v2218, 8
        %2220 = vset.pattern.permute.xlu0 %v2219
        %2221 = vperm.xlu0 %2220, %v2210
        %v2222 = vpop.permute.xlu0 %2221
        %v2223 = vperm.slane %v1611, 7
        %v2224 = vlaneseq
        %v2225 = vshrl.u32 %v2224, 7
        %2227 = vset.pattern.permute.xlu0 %v2225
        %2228 = vperm.xlu0 %2227, %v2223
        %v2229 = vpop.permute.xlu0 %2228
        %v2230 = vlaneseq
        %v2231 = vshrl.u32 %v2230, 7
        %v2232 = vadd.s32 %v2231, 8
        %2233 = vset.pattern.permute.xlu0 %v2232
        %2234 = vperm.xlu0 %2233, %v2223
        %v2235 = vpop.permute.xlu0 %2234
        %v2236 = vsub.f32 1.0, %v1486
        %v2237 = vsub.f32 1.0, %v1487
        %v2238 = vsub.f32 1.0, %v1488
        %v2239 = vsub.f32 1.0, %v1489
        %v2240 = vsub.f32 1.0, %v1490
        %v2241 = vsub.f32 1.0, %v1491
        %v2242 = vmul.f32 %v2236, 1e+30
        %v2243 = vmul.f32 %v2237, 1e+30
        %v2244 = vmul.f32 %v2238, 1e+30
        %v2245 = vmul.f32 %v2239, 1e+30
        %v2246 = vmul.f32 %v2240, 1e+30
        %v2247 = vmul.f32 %v2241, 1e+30
        %v2248 = vperm.slane %v2242, 0
        %v2249 = vlaneseq
        %v2250 = vshrl.u32 %v2249, 7
        %2252 = vset.pattern.permute.xlu0 %v2250
        %2253 = vperm.xlu0 %2252, %v2248
        %v2254 = vpop.permute.xlu0 %2253
        %v2255 = vlaneseq
        %v2256 = vshrl.u32 %v2255, 7
        %v2257 = vadd.s32 %v2256, 8
        %2258 = vset.pattern.permute.xlu0 %v2257
        %2259 = vperm.xlu0 %2258, %v2248
        %v2260 = vpop.permute.xlu0 %2259
        %v2261 = vperm.slane %v2242, 1
        %v2262 = vlaneseq
        %v2263 = vshrl.u32 %v2262, 7
        %2265 = vset.pattern.permute.xlu0 %v2263
        %2266 = vperm.xlu0 %2265, %v2261
        %v2267 = vpop.permute.xlu0 %2266
        %v2268 = vlaneseq
        %v2269 = vshrl.u32 %v2268, 7
        %v2270 = vadd.s32 %v2269, 8
        %2271 = vset.pattern.permute.xlu0 %v2270
        %2272 = vperm.xlu0 %2271, %v2261
        %v2273 = vpop.permute.xlu0 %2272
        %v2274 = vperm.slane %v2242, 2
        %v2275 = vlaneseq
        %v2276 = vshrl.u32 %v2275, 7
        %2278 = vset.pattern.permute.xlu0 %v2276
        %2279 = vperm.xlu0 %2278, %v2274
        %v2280 = vpop.permute.xlu0 %2279
        %v2281 = vlaneseq
        %v2282 = vshrl.u32 %v2281, 7
        %v2283 = vadd.s32 %v2282, 8
        %2284 = vset.pattern.permute.xlu0 %v2283
        %2285 = vperm.xlu0 %2284, %v2274
        %v2286 = vpop.permute.xlu0 %2285
        %v2287 = vperm.slane %v2242, 3
        %v2288 = vlaneseq
        %v2289 = vshrl.u32 %v2288, 7
        %2291 = vset.pattern.permute.xlu0 %v2289
        %2292 = vperm.xlu0 %2291, %v2287
        %v2293 = vpop.permute.xlu0 %2292
        %v2294 = vlaneseq
        %v2295 = vshrl.u32 %v2294, 7
        %v2296 = vadd.s32 %v2295, 8
        %2297 = vset.pattern.permute.xlu0 %v2296
        %2298 = vperm.xlu0 %2297, %v2287
        %v2299 = vpop.permute.xlu0 %2298
        %v2300 = vperm.slane %v2242, 4
        %v2301 = vlaneseq
        %v2302 = vshrl.u32 %v2301, 7
        %2304 = vset.pattern.permute.xlu0 %v2302
        %2305 = vperm.xlu0 %2304, %v2300
        %v2306 = vpop.permute.xlu0 %2305
        %v2307 = vlaneseq
        %v2308 = vshrl.u32 %v2307, 7
        %v2309 = vadd.s32 %v2308, 8
        %2310 = vset.pattern.permute.xlu0 %v2309
        %2311 = vperm.xlu0 %2310, %v2300
        %v2312 = vpop.permute.xlu0 %2311
        %v2313 = vperm.slane %v2242, 5
        %v2314 = vlaneseq
        %v2315 = vshrl.u32 %v2314, 7
        %2317 = vset.pattern.permute.xlu0 %v2315
        %2318 = vperm.xlu0 %2317, %v2313
        %v2319 = vpop.permute.xlu0 %2318
        %v2320 = vlaneseq
        %v2321 = vshrl.u32 %v2320, 7
        %v2322 = vadd.s32 %v2321, 8
        %2323 = vset.pattern.permute.xlu0 %v2322
        %2324 = vperm.xlu0 %2323, %v2313
        %v2325 = vpop.permute.xlu0 %2324
        %v2326 = vperm.slane %v2242, 6
        %v2327 = vlaneseq
        %v2328 = vshrl.u32 %v2327, 7
        %2330 = vset.pattern.permute.xlu0 %v2328
        %2331 = vperm.xlu0 %2330, %v2326
        %v2332 = vpop.permute.xlu0 %2331
        %v2333 = vlaneseq
        %v2334 = vshrl.u32 %v2333, 7
        %v2335 = vadd.s32 %v2334, 8
        %2336 = vset.pattern.permute.xlu0 %v2335
        %2337 = vperm.xlu0 %2336, %v2326
        %v2338 = vpop.permute.xlu0 %2337
        %v2339 = vperm.slane %v2242, 7
        %v2340 = vlaneseq
        %v2341 = vshrl.u32 %v2340, 7
        %2343 = vset.pattern.permute.xlu0 %v2341
        %2344 = vperm.xlu0 %2343, %v2339
        %v2345 = vpop.permute.xlu0 %2344
        %v2346 = vlaneseq
        %v2347 = vshrl.u32 %v2346, 7
        %v2348 = vadd.s32 %v2347, 8
        %2349 = vset.pattern.permute.xlu0 %v2348
        %2350 = vperm.xlu0 %2349, %v2339
        %v2351 = vpop.permute.xlu0 %2350
        %v2352 = vperm.slane %v2243, 0
        %v2353 = vlaneseq
        %v2354 = vshrl.u32 %v2353, 7
        %2356 = vset.pattern.permute.xlu0 %v2354
        %2357 = vperm.xlu0 %2356, %v2352
        %v2358 = vpop.permute.xlu0 %2357
        %v2359 = vlaneseq
        %v2360 = vshrl.u32 %v2359, 7
        %v2361 = vadd.s32 %v2360, 8
        %2362 = vset.pattern.permute.xlu0 %v2361
        %2363 = vperm.xlu0 %2362, %v2352
        %v2364 = vpop.permute.xlu0 %2363
        %v2365 = vperm.slane %v2243, 1
        %v2366 = vlaneseq
        %v2367 = vshrl.u32 %v2366, 7
        %2369 = vset.pattern.permute.xlu0 %v2367
        %2370 = vperm.xlu0 %2369, %v2365
        %v2371 = vpop.permute.xlu0 %2370
        %v2372 = vlaneseq
        %v2373 = vshrl.u32 %v2372, 7
        %v2374 = vadd.s32 %v2373, 8
        %2375 = vset.pattern.permute.xlu0 %v2374
        %2376 = vperm.xlu0 %2375, %v2365
        %v2377 = vpop.permute.xlu0 %2376
        %v2378 = vperm.slane %v2243, 2
        %v2379 = vlaneseq
        %v2380 = vshrl.u32 %v2379, 7
        %2382 = vset.pattern.permute.xlu0 %v2380
        %2383 = vperm.xlu0 %2382, %v2378
        %v2384 = vpop.permute.xlu0 %2383
        %v2385 = vlaneseq
        %v2386 = vshrl.u32 %v2385, 7
        %v2387 = vadd.s32 %v2386, 8
        %2388 = vset.pattern.permute.xlu0 %v2387
        %2389 = vperm.xlu0 %2388, %v2378
        %v2390 = vpop.permute.xlu0 %2389
        %v2391 = vperm.slane %v2243, 3
        %v2392 = vlaneseq
        %v2393 = vshrl.u32 %v2392, 7
        %2395 = vset.pattern.permute.xlu0 %v2393
        %2396 = vperm.xlu0 %2395, %v2391
        %v2397 = vpop.permute.xlu0 %2396
        %v2398 = vlaneseq
        %v2399 = vshrl.u32 %v2398, 7
        %v2400 = vadd.s32 %v2399, 8
        %2401 = vset.pattern.permute.xlu0 %v2400
        %2402 = vperm.xlu0 %2401, %v2391
        %v2403 = vpop.permute.xlu0 %2402
        %v2404 = vperm.slane %v2243, 4
        %v2405 = vlaneseq
        %v2406 = vshrl.u32 %v2405, 7
        %2408 = vset.pattern.permute.xlu0 %v2406
        %2409 = vperm.xlu0 %2408, %v2404
        %v2410 = vpop.permute.xlu0 %2409
        %v2411 = vlaneseq
        %v2412 = vshrl.u32 %v2411, 7
        %v2413 = vadd.s32 %v2412, 8
        %2414 = vset.pattern.permute.xlu0 %v2413
        %2415 = vperm.xlu0 %2414, %v2404
        %v2416 = vpop.permute.xlu0 %2415
        %v2417 = vperm.slane %v2243, 5
        %v2418 = vlaneseq
        %v2419 = vshrl.u32 %v2418, 7
        %2421 = vset.pattern.permute.xlu0 %v2419
        %2422 = vperm.xlu0 %2421, %v2417
        %v2423 = vpop.permute.xlu0 %2422
        %v2424 = vlaneseq
        %v2425 = vshrl.u32 %v2424, 7
        %v2426 = vadd.s32 %v2425, 8
        %2427 = vset.pattern.permute.xlu0 %v2426
        %2428 = vperm.xlu0 %2427, %v2417
        %v2429 = vpop.permute.xlu0 %2428
        %v2430 = vperm.slane %v2243, 6
        %v2431 = vlaneseq
        %v2432 = vshrl.u32 %v2431, 7
        %2434 = vset.pattern.permute.xlu0 %v2432
        %2435 = vperm.xlu0 %2434, %v2430
        %v2436 = vpop.permute.xlu0 %2435
        %v2437 = vlaneseq
        %v2438 = vshrl.u32 %v2437, 7
        %v2439 = vadd.s32 %v2438, 8
        %2440 = vset.pattern.permute.xlu0 %v2439
        %2441 = vperm.xlu0 %2440, %v2430
        %v2442 = vpop.permute.xlu0 %2441
        %v2443 = vperm.slane %v2243, 7
        %v2444 = vlaneseq
        %v2445 = vshrl.u32 %v2444, 7
        %2447 = vset.pattern.permute.xlu0 %v2445
        %2448 = vperm.xlu0 %2447, %v2443
        %v2449 = vpop.permute.xlu0 %2448
        %v2450 = vlaneseq
        %v2451 = vshrl.u32 %v2450, 7
        %v2452 = vadd.s32 %v2451, 8
        %2453 = vset.pattern.permute.xlu0 %v2452
        %2454 = vperm.xlu0 %2453, %v2443
        %v2455 = vpop.permute.xlu0 %2454
        %v2456 = vperm.slane %v2244, 0
        %v2457 = vlaneseq
        %v2458 = vshrl.u32 %v2457, 7
        %2460 = vset.pattern.permute.xlu0 %v2458
        %2461 = vperm.xlu0 %2460, %v2456
        %v2462 = vpop.permute.xlu0 %2461
        %v2463 = vlaneseq
        %v2464 = vshrl.u32 %v2463, 7
        %v2465 = vadd.s32 %v2464, 8
        %2466 = vset.pattern.permute.xlu0 %v2465
        %2467 = vperm.xlu0 %2466, %v2456
        %v2468 = vpop.permute.xlu0 %2467
        %v2469 = vperm.slane %v2244, 1
        %v2470 = vlaneseq
        %v2471 = vshrl.u32 %v2470, 7
        %2473 = vset.pattern.permute.xlu0 %v2471
        %2474 = vperm.xlu0 %2473, %v2469
        %v2475 = vpop.permute.xlu0 %2474
        %v2476 = vlaneseq
        %v2477 = vshrl.u32 %v2476, 7
        %v2478 = vadd.s32 %v2477, 8
        %2479 = vset.pattern.permute.xlu0 %v2478
        %2480 = vperm.xlu0 %2479, %v2469
        %v2481 = vpop.permute.xlu0 %2480
        %v2482 = vperm.slane %v2244, 2
        %v2483 = vlaneseq
        %v2484 = vshrl.u32 %v2483, 7
        %2486 = vset.pattern.permute.xlu0 %v2484
        %2487 = vperm.xlu0 %2486, %v2482
        %v2488 = vpop.permute.xlu0 %2487
        %v2489 = vlaneseq
        %v2490 = vshrl.u32 %v2489, 7
        %v2491 = vadd.s32 %v2490, 8
        %2492 = vset.pattern.permute.xlu0 %v2491
        %2493 = vperm.xlu0 %2492, %v2482
        %v2494 = vpop.permute.xlu0 %2493
        %v2495 = vperm.slane %v2244, 3
        %v2496 = vlaneseq
        %v2497 = vshrl.u32 %v2496, 7
        %2499 = vset.pattern.permute.xlu0 %v2497
        %2500 = vperm.xlu0 %2499, %v2495
        %v2501 = vpop.permute.xlu0 %2500
        %v2502 = vlaneseq
        %v2503 = vshrl.u32 %v2502, 7
        %v2504 = vadd.s32 %v2503, 8
        %2505 = vset.pattern.permute.xlu0 %v2504
        %2506 = vperm.xlu0 %2505, %v2495
        %v2507 = vpop.permute.xlu0 %2506
        %v2508 = vperm.slane %v2244, 4
        %v2509 = vlaneseq
        %v2510 = vshrl.u32 %v2509, 7
        %2512 = vset.pattern.permute.xlu0 %v2510
        %2513 = vperm.xlu0 %2512, %v2508
        %v2514 = vpop.permute.xlu0 %2513
        %v2515 = vlaneseq
        %v2516 = vshrl.u32 %v2515, 7
        %v2517 = vadd.s32 %v2516, 8
        %2518 = vset.pattern.permute.xlu0 %v2517
        %2519 = vperm.xlu0 %2518, %v2508
        %v2520 = vpop.permute.xlu0 %2519
        %v2521 = vperm.slane %v2244, 5
        %v2522 = vlaneseq
        %v2523 = vshrl.u32 %v2522, 7
        %2525 = vset.pattern.permute.xlu0 %v2523
        %2526 = vperm.xlu0 %2525, %v2521
        %v2527 = vpop.permute.xlu0 %2526
        %v2528 = vlaneseq
        %v2529 = vshrl.u32 %v2528, 7
        %v2530 = vadd.s32 %v2529, 8
        %2531 = vset.pattern.permute.xlu0 %v2530
        %2532 = vperm.xlu0 %2531, %v2521
        %v2533 = vpop.permute.xlu0 %2532
        %v2534 = vperm.slane %v2244, 6
        %v2535 = vlaneseq
        %v2536 = vshrl.u32 %v2535, 7
        %2538 = vset.pattern.permute.xlu0 %v2536
        %2539 = vperm.xlu0 %2538, %v2534
        %v2540 = vpop.permute.xlu0 %2539
        %v2541 = vlaneseq
        %v2542 = vshrl.u32 %v2541, 7
        %v2543 = vadd.s32 %v2542, 8
        %2544 = vset.pattern.permute.xlu0 %v2543
        %2545 = vperm.xlu0 %2544, %v2534
        %v2546 = vpop.permute.xlu0 %2545
        %v2547 = vperm.slane %v2244, 7
        %v2548 = vlaneseq
        %v2549 = vshrl.u32 %v2548, 7
        %2551 = vset.pattern.permute.xlu0 %v2549
        %2552 = vperm.xlu0 %2551, %v2547
        %v2553 = vpop.permute.xlu0 %2552
        %v2554 = vlaneseq
        %v2555 = vshrl.u32 %v2554, 7
        %v2556 = vadd.s32 %v2555, 8
        %2557 = vset.pattern.permute.xlu0 %v2556
        %2558 = vperm.xlu0 %2557, %v2547
        %v2559 = vpop.permute.xlu0 %2558
        %v2560 = vperm.slane %v2245, 0
        %v2561 = vlaneseq
        %v2562 = vshrl.u32 %v2561, 7
        %2564 = vset.pattern.permute.xlu0 %v2562
        %2565 = vperm.xlu0 %2564, %v2560
        %v2566 = vpop.permute.xlu0 %2565
        %v2567 = vlaneseq
        %v2568 = vshrl.u32 %v2567, 7
        %v2569 = vadd.s32 %v2568, 8
        %2570 = vset.pattern.permute.xlu0 %v2569
        %2571 = vperm.xlu0 %2570, %v2560
        %v2572 = vpop.permute.xlu0 %2571
        %v2573 = vperm.slane %v2245, 1
        %v2574 = vlaneseq
        %v2575 = vshrl.u32 %v2574, 7
        %2577 = vset.pattern.permute.xlu0 %v2575
        %2578 = vperm.xlu0 %2577, %v2573
        %v2579 = vpop.permute.xlu0 %2578
        %v2580 = vlaneseq
        %v2581 = vshrl.u32 %v2580, 7
        %v2582 = vadd.s32 %v2581, 8
        %2583 = vset.pattern.permute.xlu0 %v2582
        %2584 = vperm.xlu0 %2583, %v2573
        %v2585 = vpop.permute.xlu0 %2584
        %v2586 = vperm.slane %v2245, 2
        %v2587 = vlaneseq
        %v2588 = vshrl.u32 %v2587, 7
        %2590 = vset.pattern.permute.xlu0 %v2588
        %2591 = vperm.xlu0 %2590, %v2586
        %v2592 = vpop.permute.xlu0 %2591
        %v2593 = vlaneseq
        %v2594 = vshrl.u32 %v2593, 7
        %v2595 = vadd.s32 %v2594, 8
        %2596 = vset.pattern.permute.xlu0 %v2595
        %2597 = vperm.xlu0 %2596, %v2586
        %v2598 = vpop.permute.xlu0 %2597
        %v2599 = vperm.slane %v2245, 3
        %v2600 = vlaneseq
        %v2601 = vshrl.u32 %v2600, 7
        %2603 = vset.pattern.permute.xlu0 %v2601
        %2604 = vperm.xlu0 %2603, %v2599
        %v2605 = vpop.permute.xlu0 %2604
        %v2606 = vlaneseq
        %v2607 = vshrl.u32 %v2606, 7
        %v2608 = vadd.s32 %v2607, 8
        %2609 = vset.pattern.permute.xlu0 %v2608
        %2610 = vperm.xlu0 %2609, %v2599
        %v2611 = vpop.permute.xlu0 %2610
        %v2612 = vperm.slane %v2245, 4
        %v2613 = vlaneseq
        %v2614 = vshrl.u32 %v2613, 7
        %2616 = vset.pattern.permute.xlu0 %v2614
        %2617 = vperm.xlu0 %2616, %v2612
        %v2618 = vpop.permute.xlu0 %2617
        %v2619 = vlaneseq
        %v2620 = vshrl.u32 %v2619, 7
        %v2621 = vadd.s32 %v2620, 8
        %2622 = vset.pattern.permute.xlu0 %v2621
        %2623 = vperm.xlu0 %2622, %v2612
        %v2624 = vpop.permute.xlu0 %2623
        %v2625 = vperm.slane %v2245, 5
        %v2626 = vlaneseq
        %v2627 = vshrl.u32 %v2626, 7
        %2629 = vset.pattern.permute.xlu0 %v2627
        %2630 = vperm.xlu0 %2629, %v2625
        %v2631 = vpop.permute.xlu0 %2630
        %v2632 = vlaneseq
        %v2633 = vshrl.u32 %v2632, 7
        %v2634 = vadd.s32 %v2633, 8
        %2635 = vset.pattern.permute.xlu0 %v2634
        %2636 = vperm.xlu0 %2635, %v2625
        %v2637 = vpop.permute.xlu0 %2636
        %v2638 = vperm.slane %v2245, 6
        %v2639 = vlaneseq
        %v2640 = vshrl.u32 %v2639, 7
        %2642 = vset.pattern.permute.xlu0 %v2640
        %2643 = vperm.xlu0 %2642, %v2638
        %v2644 = vpop.permute.xlu0 %2643
        %v2645 = vlaneseq
        %v2646 = vshrl.u32 %v2645, 7
        %v2647 = vadd.s32 %v2646, 8
        %2648 = vset.pattern.permute.xlu0 %v2647
        %2649 = vperm.xlu0 %2648, %v2638
        %v2650 = vpop.permute.xlu0 %2649
        %v2651 = vperm.slane %v2245, 7
        %v2652 = vlaneseq
        %v2653 = vshrl.u32 %v2652, 7
        %2655 = vset.pattern.permute.xlu0 %v2653
        %2656 = vperm.xlu0 %2655, %v2651
        %v2657 = vpop.permute.xlu0 %2656
        %v2658 = vlaneseq
        %v2659 = vshrl.u32 %v2658, 7
        %v2660 = vadd.s32 %v2659, 8
        %2661 = vset.pattern.permute.xlu0 %v2660
        %2662 = vperm.xlu0 %2661, %v2651
        %v2663 = vpop.permute.xlu0 %2662
        %v2664 = vperm.slane %v2246, 0
        %v2665 = vlaneseq
        %v2666 = vshrl.u32 %v2665, 7
        %2668 = vset.pattern.permute.xlu0 %v2666
        %2669 = vperm.xlu0 %2668, %v2664
        %v2670 = vpop.permute.xlu0 %2669
        %v2671 = vlaneseq
        %v2672 = vshrl.u32 %v2671, 7
        %v2673 = vadd.s32 %v2672, 8
        %2674 = vset.pattern.permute.xlu0 %v2673
        %2675 = vperm.xlu0 %2674, %v2664
        %v2676 = vpop.permute.xlu0 %2675
        %v2677 = vperm.slane %v2246, 1
        %v2678 = vlaneseq
        %v2679 = vshrl.u32 %v2678, 7
        %2681 = vset.pattern.permute.xlu0 %v2679
        %2682 = vperm.xlu0 %2681, %v2677
        %v2683 = vpop.permute.xlu0 %2682
        %v2684 = vlaneseq
        %v2685 = vshrl.u32 %v2684, 7
        %v2686 = vadd.s32 %v2685, 8
        %2687 = vset.pattern.permute.xlu0 %v2686
        %2688 = vperm.xlu0 %2687, %v2677
        %v2689 = vpop.permute.xlu0 %2688
        %v2690 = vperm.slane %v2246, 2
        %v2691 = vlaneseq
        %v2692 = vshrl.u32 %v2691, 7
        %2694 = vset.pattern.permute.xlu0 %v2692
        %2695 = vperm.xlu0 %2694, %v2690
        %v2696 = vpop.permute.xlu0 %2695
        %v2697 = vlaneseq
        %v2698 = vshrl.u32 %v2697, 7
        %v2699 = vadd.s32 %v2698, 8
        %2700 = vset.pattern.permute.xlu0 %v2699
        %2701 = vperm.xlu0 %2700, %v2690
        %v2702 = vpop.permute.xlu0 %2701
        %v2703 = vperm.slane %v2246, 3
        %v2704 = vlaneseq
        %v2705 = vshrl.u32 %v2704, 7
        %2707 = vset.pattern.permute.xlu0 %v2705
        %2708 = vperm.xlu0 %2707, %v2703
        %v2709 = vpop.permute.xlu0 %2708
        %v2710 = vlaneseq
        %v2711 = vshrl.u32 %v2710, 7
        %v2712 = vadd.s32 %v2711, 8
        %2713 = vset.pattern.permute.xlu0 %v2712
        %2714 = vperm.xlu0 %2713, %v2703
        %v2715 = vpop.permute.xlu0 %2714
        %v2716 = vperm.slane %v2246, 4
        %v2717 = vlaneseq
        %v2718 = vshrl.u32 %v2717, 7
        %2720 = vset.pattern.permute.xlu0 %v2718
        %2721 = vperm.xlu0 %2720, %v2716
        %v2722 = vpop.permute.xlu0 %2721
        %v2723 = vlaneseq
        %v2724 = vshrl.u32 %v2723, 7
        %v2725 = vadd.s32 %v2724, 8
        %2726 = vset.pattern.permute.xlu0 %v2725
        %2727 = vperm.xlu0 %2726, %v2716
        %v2728 = vpop.permute.xlu0 %2727
        %v2729 = vperm.slane %v2246, 5
        %v2730 = vlaneseq
        %v2731 = vshrl.u32 %v2730, 7
        %2733 = vset.pattern.permute.xlu0 %v2731
        %2734 = vperm.xlu0 %2733, %v2729
        %v2735 = vpop.permute.xlu0 %2734
        %v2736 = vlaneseq
        %v2737 = vshrl.u32 %v2736, 7
        %v2738 = vadd.s32 %v2737, 8
        %2739 = vset.pattern.permute.xlu0 %v2738
        %2740 = vperm.xlu0 %2739, %v2729
        %v2741 = vpop.permute.xlu0 %2740
        %v2742 = vperm.slane %v2246, 6
        %v2743 = vlaneseq
        %v2744 = vshrl.u32 %v2743, 7
        %2746 = vset.pattern.permute.xlu0 %v2744
        %2747 = vperm.xlu0 %2746, %v2742
        %v2748 = vpop.permute.xlu0 %2747
        %v2749 = vlaneseq
        %v2750 = vshrl.u32 %v2749, 7
        %v2751 = vadd.s32 %v2750, 8
        %2752 = vset.pattern.permute.xlu0 %v2751
        %2753 = vperm.xlu0 %2752, %v2742
        %v2754 = vpop.permute.xlu0 %2753
        %v2755 = vperm.slane %v2246, 7
        %v2756 = vlaneseq
        %v2757 = vshrl.u32 %v2756, 7
        %2759 = vset.pattern.permute.xlu0 %v2757
        %2760 = vperm.xlu0 %2759, %v2755
        %v2761 = vpop.permute.xlu0 %2760
        %v2762 = vlaneseq
        %v2763 = vshrl.u32 %v2762, 7
        %v2764 = vadd.s32 %v2763, 8
        %2765 = vset.pattern.permute.xlu0 %v2764
        %2766 = vperm.xlu0 %2765, %v2755
        %v2767 = vpop.permute.xlu0 %2766
        %v2768 = vperm.slane %v2247, 0
        %v2769 = vlaneseq
        %v2770 = vshrl.u32 %v2769, 7
        %2772 = vset.pattern.permute.xlu0 %v2770
        %2773 = vperm.xlu0 %2772, %v2768
        %v2774 = vpop.permute.xlu0 %2773
        %v2775 = vlaneseq
        %v2776 = vshrl.u32 %v2775, 7
        %v2777 = vadd.s32 %v2776, 8
        %2778 = vset.pattern.permute.xlu0 %v2777
        %2779 = vperm.xlu0 %2778, %v2768
        %v2780 = vpop.permute.xlu0 %2779
        %v2781 = vperm.slane %v2247, 1
        %v2782 = vlaneseq
        %v2783 = vshrl.u32 %v2782, 7
        %2785 = vset.pattern.permute.xlu0 %v2783
        %2786 = vperm.xlu0 %2785, %v2781
        %v2787 = vpop.permute.xlu0 %2786
        %v2788 = vlaneseq
        %v2789 = vshrl.u32 %v2788, 7
        %v2790 = vadd.s32 %v2789, 8
        %2791 = vset.pattern.permute.xlu0 %v2790
        %2792 = vperm.xlu0 %2791, %v2781
        %v2793 = vpop.permute.xlu0 %2792
        %v2794 = vperm.slane %v2247, 2
        %v2795 = vlaneseq
        %v2796 = vshrl.u32 %v2795, 7
        %2798 = vset.pattern.permute.xlu0 %v2796
        %2799 = vperm.xlu0 %2798, %v2794
        %v2800 = vpop.permute.xlu0 %2799
        %v2801 = vlaneseq
        %v2802 = vshrl.u32 %v2801, 7
        %v2803 = vadd.s32 %v2802, 8
        %2804 = vset.pattern.permute.xlu0 %v2803
        %2805 = vperm.xlu0 %2804, %v2794
        %v2806 = vpop.permute.xlu0 %2805
        %v2807 = vperm.slane %v2247, 3
        %v2808 = vlaneseq
        %v2809 = vshrl.u32 %v2808, 7
        %2811 = vset.pattern.permute.xlu0 %v2809
        %2812 = vperm.xlu0 %2811, %v2807
        %v2813 = vpop.permute.xlu0 %2812
        %v2814 = vlaneseq
        %v2815 = vshrl.u32 %v2814, 7
        %v2816 = vadd.s32 %v2815, 8
        %2817 = vset.pattern.permute.xlu0 %v2816
        %2818 = vperm.xlu0 %2817, %v2807
        %v2819 = vpop.permute.xlu0 %2818
        %v2820 = vperm.slane %v2247, 4
        %v2821 = vlaneseq
        %v2822 = vshrl.u32 %v2821, 7
        %2824 = vset.pattern.permute.xlu0 %v2822
        %2825 = vperm.xlu0 %2824, %v2820
        %v2826 = vpop.permute.xlu0 %2825
        %v2827 = vlaneseq
        %v2828 = vshrl.u32 %v2827, 7
        %v2829 = vadd.s32 %v2828, 8
        %2830 = vset.pattern.permute.xlu0 %v2829
        %2831 = vperm.xlu0 %2830, %v2820
        %v2832 = vpop.permute.xlu0 %2831
        %v2833 = vperm.slane %v2247, 5
        %v2834 = vlaneseq
        %v2835 = vshrl.u32 %v2834, 7
        %2837 = vset.pattern.permute.xlu0 %v2835
        %2838 = vperm.xlu0 %2837, %v2833
        %v2839 = vpop.permute.xlu0 %2838
        %v2840 = vlaneseq
        %v2841 = vshrl.u32 %v2840, 7
        %v2842 = vadd.s32 %v2841, 8
        %2843 = vset.pattern.permute.xlu0 %v2842
        %2844 = vperm.xlu0 %2843, %v2833
        %v2845 = vpop.permute.xlu0 %2844
        %v2846 = vperm.slane %v2247, 6
        %v2847 = vlaneseq
        %v2848 = vshrl.u32 %v2847, 7
        %2850 = vset.pattern.permute.xlu0 %v2848
        %2851 = vperm.xlu0 %2850, %v2846
        %v2852 = vpop.permute.xlu0 %2851
        %v2853 = vlaneseq
        %v2854 = vshrl.u32 %v2853, 7
        %v2855 = vadd.s32 %v2854, 8
        %2856 = vset.pattern.permute.xlu0 %v2855
        %2857 = vperm.xlu0 %2856, %v2846
        %v2858 = vpop.permute.xlu0 %2857
        %v2859 = vperm.slane %v2247, 7
        %v2860 = vlaneseq
        %v2861 = vshrl.u32 %v2860, 7
        %2863 = vset.pattern.permute.xlu0 %v2861
        %2864 = vperm.xlu0 %2863, %v2859
        %v2865 = vpop.permute.xlu0 %2864
        %v2866 = vlaneseq
        %v2867 = vshrl.u32 %v2866, 7
        %v2868 = vadd.s32 %v2867, 8
        %2869 = vset.pattern.permute.xlu0 %v2868
        %2870 = vperm.xlu0 %2869, %v2859
        %v2871 = vpop.permute.xlu0 %2870
        %vm2872 = vcmask 130048
        %v2874 = vsel %vm2872, %v1480, 0
        %v2877 = vsel %vm2872, %v1481, 0
        %v2880 = vsel %vm2872, %v1482, 0
        %v2883 = vsel %vm2872, %v1483, 0
        %v2886 = vsel %vm2872, %v1484, 0
        %v2889 = vsel %vm2872, %v1485, 0
        %2891 = vmatpush.msra.mxu0 0.0
        %2892 = vmatpush.msra.mxu0 0.0
        %2893 = vmatpush.msra.mxu0 0.0
        %2894 = vmatpush.msra.mxu0 0.0
        %2895 = vmatpush.msra.mxu0 0.0
        %2896 = vmatpush.msra.mxu0 0.0
        %2897 = vmatpush.msra.mxu0 0.0
        %2898 = vmatpush.msra.mxu0 0.0
        %2899 = vmatpush.msra.mxu0 0.0
        %2900 = vmatpush.msra.mxu0 0.0
        %2901 = vmatpush.msra.mxu0 0.0
        %2902 = vmatpush.msra.mxu0 0.0
        %2903 = vmatpush.msra.mxu0 0.0
        %2904 = vmatpush.msra.mxu0 0.0
        %2905 = vmatpush.msra.mxu0 %v1409
        %2906 = vmatpush.msra.mxu0 %v1406
        %2907 = vmatmul.f32.gmra.mxu0 %v2874
        %v2908 = vpop.f32.mrf.mxu0
        %v2909 = vadd.f32 0.0, %v2908
        %2910 = vmatmul.f32.gmra.mxu0 %v2877
        %v2911 = vpop.f32.mrf.mxu0
        %v2912 = vadd.f32 0.0, %v2911
        %2913 = vmatmul.f32.gmra.mxu0 %v2880
        %v2914 = vpop.f32.mrf.mxu0
        %v2915 = vadd.f32 0.0, %v2914
        %2916 = vmatmul.f32.gmra.mxu0 %v2883
        %v2917 = vpop.f32.mrf.mxu0
        %v2918 = vadd.f32 0.0, %v2917
        %2919 = vmatmul.f32.gmra.mxu0 %v2886
        %v2920 = vpop.f32.mrf.mxu0
        %v2921 = vadd.f32 0.0, %v2920
        %2922 = vmatmul.f32.gmra.mxu0 %v2889
        %v2923 = vpop.f32.mrf.mxu0
        %v2924 = vadd.f32 0.0, %v2923
        %2925 = vdwg.mxu0
        %v2927 = vsel %vm2872, %v1486, 0
        %v2930 = vsel %vm2872, %v1487, 0
        %v2933 = vsel %vm2872, %v1488, 0
        %v2936 = vsel %vm2872, %v1489, 0
        %v2939 = vsel %vm2872, %v1490, 0
        %v2942 = vsel %vm2872, %v1491, 0
        %2944 = vmatpush.msra.mxu0 0.0
        %2945 = vmatpush.msra.mxu0 0.0
        %2946 = vmatpush.msra.mxu0 0.0
        %2947 = vmatpush.msra.mxu0 0.0
        %2948 = vmatpush.msra.mxu0 0.0
        %2949 = vmatpush.msra.mxu0 0.0
        %2950 = vmatpush.msra.mxu0 0.0
        %2951 = vmatpush.msra.mxu0 0.0
        %2952 = vmatpush.msra.mxu0 0.0
        %2953 = vmatpush.msra.mxu0 0.0
        %2954 = vmatpush.msra.mxu0 0.0
        %2955 = vmatpush.msra.mxu0 0.0
        %2956 = vmatpush.msra.mxu0 0.0
        %2957 = vmatpush.msra.mxu0 0.0
        %2958 = vmatpush.msra.mxu0 %v1409
        %2959 = vmatpush.msra.mxu0 %v1406
        %2960 = vmatmul.f32.gmra.mxu0 %v2927
        %v2961 = vpop.f32.mrf.mxu0
        %v2962 = vadd.f32 0.0, %v2961
        %2963 = vmatmul.f32.gmra.mxu0 %v2930
        %v2964 = vpop.f32.mrf.mxu0
        %v2965 = vadd.f32 0.0, %v2964
        %2966 = vmatmul.f32.gmra.mxu0 %v2933
        %v2967 = vpop.f32.mrf.mxu0
        %v2968 = vadd.f32 0.0, %v2967
        %2969 = vmatmul.f32.gmra.mxu0 %v2936
        %v2970 = vpop.f32.mrf.mxu0
        %v2971 = vadd.f32 0.0, %v2970
        %2972 = vmatmul.f32.gmra.mxu0 %v2939
        %v2973 = vpop.f32.mrf.mxu0
        %v2974 = vadd.f32 0.0, %v2973
        %2975 = vmatmul.f32.gmra.mxu0 %v2942
        %v2976 = vpop.f32.mrf.mxu0
        %v2977 = vadd.f32 0.0, %v2976
        %2978 = vdwg.mxu0
        %v2979 = vld [vmem:[#allocation6] sm:$0xff]
        %v2980 = vld [vmem:[#allocation6 + $0x8] sm:$0xff]
        %v2981 = vld [vmem:[#allocation6 + $0x10] sm:$0xff]
        %v2982 = vld [vmem:[#allocation6 + $0x18] sm:$0xff]
        %v2983 = vld [vmem:[#allocation7] sm:$0xff]
        %v2984 = vld [vmem:[#allocation7 + $0x8] sm:$0xff]
        %v2985 = vld [vmem:[#allocation7 + $0x10] sm:$0xff]
        %v2986 = vld [vmem:[#allocation7 + $0x18] sm:$0xff]
        %vm2987 = vcmask 261120
        %v2989 = vsel %vm2987, %v2962, 0
        %v2992 = vsel %vm2987, %v2965, 0
        %v2995 = vsel %vm2987, %v2968, 0
        %v2998 = vsel %vm2987, %v2971, 0
        %v3001 = vsel %vm2987, %v2974, 0
        %v3004 = vsel %vm2987, %v2977, 0
        %3006 = vmatpush.msra.mxu0 0.0
        %3007 = vmatpush.msra.mxu0 0.0
        %3008 = vmatpush.msra.mxu0 0.0
        %3009 = vmatpush.msra.mxu0 0.0
        %3010 = vmatpush.msra.mxu0 0.0
        %3011 = vmatpush.msra.mxu0 0.0
        %3012 = vmatpush.msra.mxu0 0.0
        %3013 = vmatpush.msra.mxu0 0.0
        %3014 = vmatpush.msra.mxu0 0.0
        %3015 = vmatpush.msra.mxu0 0.0
        %3016 = vmatpush.msra.mxu0 0.0
        %3017 = vmatpush.msra.mxu0 0.0
        %3018 = vmatpush.msra.mxu0 %v2986
        %3019 = vmatpush.msra.mxu0 %v2985
        %3020 = vmatpush.msra.mxu0 %v2984
        %3021 = vmatpush.msra.mxu0 %v2983
        %3022 = vmatmul.f32.gmra.mxu0 %v2989
        %v3023 = vpop.f32.mrf.mxu0
        %v3024 = vadd.f32 0.0, %v3023
        %3025 = vmatmul.f32.gmra.mxu0 %v2992
        %v3026 = vpop.f32.mrf.mxu0
        %v3027 = vadd.f32 0.0, %v3026
        %3028 = vmatmul.f32.gmra.mxu0 %v2995
        %v3029 = vpop.f32.mrf.mxu0
        %v3030 = vadd.f32 0.0, %v3029
        %3031 = vmatmul.f32.gmra.mxu0 %v2998
        %v3032 = vpop.f32.mrf.mxu0
        %v3033 = vadd.f32 0.0, %v3032
        %3034 = vmatmul.f32.gmra.mxu0 %v3001
        %v3035 = vpop.f32.mrf.mxu0
        %v3036 = vadd.f32 0.0, %v3035
        %3037 = vmatmul.f32.gmra.mxu0 %v3004
        %v3038 = vpop.f32.mrf.mxu0
        %v3039 = vadd.f32 0.0, %v3038
        %3040 = vdwg.mxu0
        %v3042 = vsel %vm2987, %v2909, 0
        %v3045 = vsel %vm2987, %v2912, 0
        %v3048 = vsel %vm2987, %v2915, 0
        %v3051 = vsel %vm2987, %v2918, 0
        %v3054 = vsel %vm2987, %v2921, 0
        %v3057 = vsel %vm2987, %v2924, 0
        %3059 = vmatpush.msra.mxu0 0.0
        %3060 = vmatpush.msra.mxu0 0.0
        %3061 = vmatpush.msra.mxu0 0.0
        %3062 = vmatpush.msra.mxu0 0.0
        %3063 = vmatpush.msra.mxu0 0.0
        %3064 = vmatpush.msra.mxu0 0.0
        %3065 = vmatpush.msra.mxu0 0.0
        %3066 = vmatpush.msra.mxu0 0.0
        %3067 = vmatpush.msra.mxu0 0.0
        %3068 = vmatpush.msra.mxu0 0.0
        %3069 = vmatpush.msra.mxu0 0.0
        %3070 = vmatpush.msra.mxu0 0.0
        %3071 = vmatpush.msra.mxu0 %v2982
        %3072 = vmatpush.msra.mxu0 %v2981
        %3073 = vmatpush.msra.mxu0 %v2980
        %3074 = vmatpush.msra.mxu0 %v2979
        %3075 = vmatmul.f32.gmra.mxu0 %v3042
        %v3076 = vpop.f32.mrf.mxu0
        %v3077 = vadd.f32 %v3024, %v3076
        %3078 = vmatmul.f32.gmra.mxu0 %v3045
        %v3079 = vpop.f32.mrf.mxu0
        %v3080 = vadd.f32 %v3027, %v3079
        %3081 = vmatmul.f32.gmra.mxu0 %v3048
        %v3082 = vpop.f32.mrf.mxu0
        %v3083 = vadd.f32 %v3030, %v3082
        %3084 = vmatmul.f32.gmra.mxu0 %v3051
        %v3085 = vpop.f32.mrf.mxu0
        %v3086 = vadd.f32 %v3033, %v3085
        %3087 = vmatmul.f32.gmra.mxu0 %v3054
        %v3088 = vpop.f32.mrf.mxu0
        %v3089 = vadd.f32 %v3036, %v3088
        %3090 = vmatmul.f32.gmra.mxu0 %v3057
        %v3091 = vpop.f32.mrf.mxu0
        %v3092 = vadd.f32 %v3039, %v3091
        %3093 = vdwg.mxu0
        %v3094 = vld [vmem:[#allocation9] sm:$0xff]
        %v3095 = vld [vmem:[#allocation9 + $0x8] sm:$0xff]
        %v3096 = vld [vmem:[#allocation9 + $0x10] sm:$0xff]
        %v3097 = vld [vmem:[#allocation9 + $0x18] sm:$0xff]
        %v3099 = vsel %vm2987, %v1463, 0
        %v3102 = vsel %vm2987, %v1466, 0
        %v3105 = vsel %vm2987, %v1469, 0
        %v3108 = vsel %vm2987, %v1472, 0
        %v3111 = vsel %vm2987, %v1475, 0
        %v3114 = vsel %vm2987, %v1478, 0
        %3116 = vmatpush.msra.mxu0 0.0
        %3117 = vmatpush.msra.mxu0 0.0
        %3118 = vmatpush.msra.mxu0 0.0
        %3119 = vmatpush.msra.mxu0 0.0
        %3120 = vmatpush.msra.mxu0 0.0
        %3121 = vmatpush.msra.mxu0 0.0
        %3122 = vmatpush.msra.mxu0 0.0
        %3123 = vmatpush.msra.mxu0 0.0
        %3124 = vmatpush.msra.mxu0 0.0
        %3125 = vmatpush.msra.mxu0 0.0
        %3126 = vmatpush.msra.mxu0 0.0
        %3127 = vmatpush.msra.mxu0 0.0
        %3128 = vmatpush.msra.mxu0 %v3097
        %3129 = vmatpush.msra.mxu0 %v3096
        %3130 = vmatpush.msra.mxu0 %v3095
        %3131 = vmatpush.msra.mxu0 %v3094
        %3132 = vmatmul.f32.gmra.mxu0 %v3099
        %v3133 = vpop.f32.mrf.mxu0
        %v3134 = vadd.f32 0.0, %v3133
        %3135 = vmatmul.f32.gmra.mxu0 %v3102
        %v3136 = vpop.f32.mrf.mxu0
        %v3137 = vadd.f32 0.0, %v3136
        %3138 = vmatmul.f32.gmra.mxu0 %v3105
        %v3139 = vpop.f32.mrf.mxu0
        %v3140 = vadd.f32 0.0, %v3139
        %3141 = vmatmul.f32.gmra.mxu0 %v3108
        %v3142 = vpop.f32.mrf.mxu0
        %v3143 = vadd.f32 0.0, %v3142
        %3144 = vmatmul.f32.gmra.mxu0 %v3111
        %v3145 = vpop.f32.mrf.mxu0
        %v3146 = vadd.f32 0.0, %v3145
        %3147 = vmatmul.f32.gmra.mxu0 %v3114
        %v3148 = vpop.f32.mrf.mxu0
        %v3149 = vadd.f32 0.0, %v3148
        %3150 = vdwg.mxu0
        %v3151 = vadd.f32 %v3077, %v3134
        %v3152 = vadd.f32 %v3080, %v3137
        %v3153 = vadd.f32 %v3083, %v3140
        %v3154 = vadd.f32 %v3086, %v3143
        %v3155 = vadd.f32 %v3089, %v3146
        %v3156 = vadd.f32 %v3092, %v3149
        %v3157 = vld [vmem:[%s25] sm:$0x1]
        %v3159 = vperm.slane %v3157, 0
        %v3161 = vadd.f32 %v3151, %v3159
        %v3162 = vadd.f32 %v3152, %v3159
        %v3163 = vadd.f32 %v3153, %v3159
        %v3164 = vadd.f32 %v3154, %v3159
        %v3165 = vadd.f32 %v3155, %v3159
        %v3166 = vadd.f32 %v3156, %v3159
        %3167 = vmatpush.msra.mxu0 0.0
        %3168 = vmatpush.msra.mxu0 0.0
        %3169 = vmatpush.msra.mxu0 0.0
        %3170 = vmatpush.msra.mxu0 0.0
        %3171 = vmatpush.msra.mxu0 0.0
        %3172 = vmatpush.msra.mxu0 0.0
        %3173 = vmatpush.msra.mxu0 0.0
        %3174 = vmatpush.msra.mxu0 0.0
        %3175 = vmatpush.msra.mxu0 0.0
        %3176 = vmatpush.msra.mxu0 0.0
        %3177 = vmatpush.msra.mxu0 %v3166
        %3178 = vmatpush.msra.mxu0 %v3165
        %3179 = vmatpush.msra.mxu0 %v3164
        %3180 = vmatpush.msra.mxu0 %v3163
        %3181 = vmatpush.msra.mxu0 %v3162
        %3182 = vmatpush.msra.mxu0 %v3161
        %3183 = vmatmul.f32.gmra.mxu0 %v1496
        %v3184 = vpop.f32.mrf.mxu0
        %v3185 = vadd.f32 0.0, %v3184
        %3186 = vmatmul.f32.gmra.mxu0 %v1499
        %v3187 = vpop.f32.mrf.mxu0
        %v3188 = vadd.f32 0.0, %v3187
        %3189 = vdwg.mxu0
        %3191 = vset.pattern.permute.xlu0 0
        %3192 = vperm.xlu0 %3191, %v1542
        %v3193 = vpop.permute.xlu0 %3192
        %3196 = vset.pattern.permute.xlu0 0
        %3197 = vperm.xlu0 %3196, %v1557
        %v3198 = vpop.permute.xlu0 %3197
        %v3200 = vmul.f32 %v3185, %v3193
        %v3201 = vmul.f32 %v3188, %v3198
        %v3202 = vmul.f32 %v3161, %v3161
        %v3203 = vmul.f32 %v3162, %v3162
        %v3204 = vmul.f32 %v3163, %v3163
        %v3205 = vmul.f32 %v3164, %v3164
        %v3206 = vmul.f32 %v3165, %v3165
        %v3207 = vmul.f32 %v3166, %v3166
        %3208 = vmatpush.msra.mxu0 0.0
        %3209 = vmatpush.msra.mxu0 0.0
        %3210 = vmatpush.msra.mxu0 0.0
        %3211 = vmatpush.msra.mxu0 0.0
        %3212 = vmatpush.msra.mxu0 0.0
        %3213 = vmatpush.msra.mxu0 0.0
        %3214 = vmatpush.msra.mxu0 0.0
        %3215 = vmatpush.msra.mxu0 0.0
        %3216 = vmatpush.msra.mxu0 0.0
        %3217 = vmatpush.msra.mxu0 0.0
        %3218 = vmatpush.msra.mxu0 %v3207
        %3219 = vmatpush.msra.mxu0 %v3206
        %3220 = vmatpush.msra.mxu0 %v3205
        %3221 = vmatpush.msra.mxu0 %v3204
        %3222 = vmatpush.msra.mxu0 %v3203
        %3223 = vmatpush.msra.mxu0 %v3202
        %3224 = vmatmul.f32.gmra.mxu0 %v1496
        %v3225 = vpop.f32.mrf.mxu0
        %v3226 = vadd.f32 0.0, %v3225
        %3227 = vmatmul.f32.gmra.mxu0 %v1499
        %v3228 = vpop.f32.mrf.mxu0
        %v3229 = vadd.f32 0.0, %v3228
        %3230 = vdwg.mxu0
        %v3231 = vmul.f32 %v3226, %v3193
        %v3232 = vmul.f32 %v3229, %v3198
        %v3233 = vmul.f32 %v3200, %v3200
        %v3234 = vmul.f32 %v3201, %v3201
        %v3235 = vsub.f32 %v3231, %v3233
        %v3236 = vsub.f32 %v3232, %v3234
        %v3237 = vmax.f32 %v3235, 0.0
        %v3238 = vmax.f32 %v3236, 0.0
        %v3239 = vadd.f32 %v3237, 1e-05
        %v3240 = vadd.f32 %v3238, 1e-05
        %v3241 = vrsqrt.pop %v3239
        %v3242 = vmul.f32 %v3241, %v3239
        %v3243 = vmul.f32 %v3242, %v3241
        %v3244 = vmul.f32 0.5, %v3243
        %v3245 = vsub.f32 1.5, %v3244
        %v3246 = vmul.f32 %v3241, %v3245
        %v3247 = vmul.f32 %v3239, %v3246
        %vm3248 = vcmp.eq.f32.partialorder %v3239, inf
        %v3249 = vsel %vm3248, %v3239, %v3247
        %vm3250 = vcmp.eq.f32.partialorder %v3239, 0.0
        %v3251 = vand.u32 %v3239, 2147483648
        %v3252 = vsel %vm3250, %v3251, %v3249
        %v3253 = vrsqrt.pop %v3240
        %v3254 = vmul.f32 %v3253, %v3240
        %v3255 = vmul.f32 %v3254, %v3253
        %v3256 = vmul.f32 0.5, %v3255
        %v3257 = vsub.f32 1.5, %v3256
        %v3258 = vmul.f32 %v3253, %v3257
        %v3259 = vmul.f32 %v3240, %v3258
        %vm3260 = vcmp.eq.f32.partialorder %v3240, inf
        %v3261 = vsel %vm3260, %v3240, %v3259
        %vm3262 = vcmp.eq.f32.partialorder %v3240, 0.0
        %v3263 = vand.u32 %v3240, 2147483648
        %v3264 = vsel %vm3262, %v3263, %v3261
        %v3265 = vsel %vm1524, 1, 0
        %v3266 = vsel %vm1525, 1, 0
        %3267 = vset.pattern.permute.xlu0 0
        %3268 = vperm.xlu0 %3267, %v3265
        %v3269 = vpop.permute.xlu0 %3268
        %3270 = vset.pattern.permute.xlu0 0
        %3271 = vperm.xlu0 %3270, %v3266
        %v3272 = vpop.permute.xlu0 %3271
        %vm3273 = vcmp.eq.s32.totalorder %v3269, 1
        %vm3274 = vcmp.eq.s32.totalorder %v3272, 1
        %v3275 = vsel %vm3273, %v3252, 0.0
        %v3276 = vsel %vm3274, %v3264, 0.0
        %v3283 = vrot.slane %v3161, 1
        %v3284 = vrot.slane %v3161, 2
        %v3285 = vrot.slane %v3161, 3
        %v3286 = vrot.slane %v3161, 4
        %v3287 = vrot.slane %v3161, 5
        %v3288 = vrot.slane %v3161, 6
        %v3289 = vrot.slane %v3161, 7
        %v3290 = vrot.slane %v3162, 1
        %v3291 = vrot.slane %v3162, 2
        %v3292 = vrot.slane %v3162, 3
        %v3293 = vrot.slane %v3162, 4
        %v3294 = vrot.slane %v3162, 5
        %v3295 = vrot.slane %v3162, 6
        %v3296 = vrot.slane %v3162, 7
        %v3297 = vrot.slane %v3163, 1
        %v3298 = vrot.slane %v3163, 2
        %v3299 = vrot.slane %v3163, 3
        %v3300 = vrot.slane %v3163, 4
        %v3301 = vrot.slane %v3163, 5
        %v3302 = vrot.slane %v3163, 6
        %v3303 = vrot.slane %v3163, 7
        %v3304 = vrot.slane %v3164, 1
        %v3305 = vrot.slane %v3164, 2
        %v3306 = vrot.slane %v3164, 3
        %v3307 = vrot.slane %v3164, 4
        %v3308 = vrot.slane %v3164, 5
        %v3309 = vrot.slane %v3164, 6
        %v3310 = vrot.slane %v3164, 7
        %v3311 = vrot.slane %v3165, 1
        %v3312 = vrot.slane %v3165, 2
        %v3313 = vrot.slane %v3165, 3
        %v3314 = vrot.slane %v3165, 4
        %v3315 = vrot.slane %v3165, 5
        %v3316 = vrot.slane %v3165, 6
        %v3317 = vrot.slane %v3165, 7
        %v3318 = vrot.slane %v3166, 1
        %v3319 = vrot.slane %v3166, 2
        %v3320 = vrot.slane %v3166, 3
        %v3321 = vrot.slane %v3166, 4
        %v3322 = vrot.slane %v3166, 5
        %v3323 = vrot.slane %v3166, 6
        %v3324 = vrot.slane %v3166, 7
        %v3325 = vperm.slane %v3161, 0
        %v3326 = vperm.slane %v3283, 0
        %v3327 = vperm.slane %v3284, 0
        %v3328 = vperm.slane %v3285, 0
        %v3329 = vperm.slane %v3286, 0
        %v3330 = vperm.slane %v3287, 0
        %v3331 = vperm.slane %v3288, 0
        %v3332 = vperm.slane %v3289, 0
        %v3333 = vperm.slane %v3162, 0
        %v3334 = vperm.slane %v3290, 0
        %v3335 = vperm.slane %v3291, 0
        %v3336 = vperm.slane %v3292, 0
        %v3337 = vperm.slane %v3293, 0
        %v3338 = vperm.slane %v3294, 0
        %v3339 = vperm.slane %v3295, 0
        %v3340 = vperm.slane %v3296, 0
        %v3341 = vperm.slane %v3163, 0
        %v3342 = vperm.slane %v3297, 0
        %v3343 = vperm.slane %v3298, 0
        %v3344 = vperm.slane %v3299, 0
        %v3345 = vperm.slane %v3300, 0
        %v3346 = vperm.slane %v3301, 0
        %v3347 = vperm.slane %v3302, 0
        %v3348 = vperm.slane %v3303, 0
        %v3349 = vperm.slane %v3164, 0
        %v3350 = vperm.slane %v3304, 0
        %v3351 = vperm.slane %v3305, 0
        %v3352 = vperm.slane %v3306, 0
        %v3353 = vperm.slane %v3307, 0
        %v3354 = vperm.slane %v3308, 0
        %v3355 = vperm.slane %v3309, 0
        %v3356 = vperm.slane %v3310, 0
        %v3357 = vperm.slane %v3165, 0
        %v3358 = vperm.slane %v3311, 0
        %v3359 = vperm.slane %v3312, 0
        %v3360 = vperm.slane %v3313, 0
        %v3361 = vperm.slane %v3314, 0
        %v3362 = vperm.slane %v3315, 0
        %v3363 = vperm.slane %v3316, 0
        %v3364 = vperm.slane %v3317, 0
        %v3365 = vperm.slane %v3166, 0
        %v3366 = vperm.slane %v3318, 0
        %v3367 = vperm.slane %v3319, 0
        %v3368 = vperm.slane %v3320, 0
        %v3369 = vperm.slane %v3321, 0
        %v3370 = vperm.slane %v3322, 0
        %v3371 = vperm.slane %v3323, 0
        %v3372 = vperm.slane %v3324, 0
        %v3421 = vadd.f32 %v3325, %v1618
        %v3422 = vadd.f32 %v3325, %v1624
        %v3423 = vadd.f32 %v3326, %v1631
        %v3424 = vadd.f32 %v3326, %v1637
        %v3425 = vadd.f32 %v3327, %v1644
        %v3426 = vadd.f32 %v3327, %v1650
        %v3427 = vadd.f32 %v3328, %v1657
        %v3428 = vadd.f32 %v3328, %v1663
        %v3429 = vadd.f32 %v3329, %v1670
        %v3430 = vadd.f32 %v3329, %v1676
        %v3431 = vadd.f32 %v3330, %v1683
        %v3432 = vadd.f32 %v3330, %v1689
        %v3433 = vadd.f32 %v3331, %v1696
        %v3434 = vadd.f32 %v3331, %v1702
        %v3435 = vadd.f32 %v3332, %v1709
        %v3436 = vadd.f32 %v3332, %v1715
        %v3437 = vadd.f32 %v3333, %v1722
        %v3438 = vadd.f32 %v3333, %v1728
        %v3439 = vadd.f32 %v3334, %v1735
        %v3440 = vadd.f32 %v3334, %v1741
        %v3441 = vadd.f32 %v3335, %v1748
        %v3442 = vadd.f32 %v3335, %v1754
        %v3443 = vadd.f32 %v3336, %v1761
        %v3444 = vadd.f32 %v3336, %v1767
        %v3445 = vadd.f32 %v3337, %v1774
        %v3446 = vadd.f32 %v3337, %v1780
        %v3447 = vadd.f32 %v3338, %v1787
        %v3448 = vadd.f32 %v3338, %v1793
        %v3449 = vadd.f32 %v3339, %v1800
        %v3450 = vadd.f32 %v3339, %v1806
        %v3451 = vadd.f32 %v3340, %v1813
        %v3452 = vadd.f32 %v3340, %v1819
        %v3453 = vadd.f32 %v3341, %v1826
        %v3454 = vadd.f32 %v3341, %v1832
        %v3455 = vadd.f32 %v3342, %v1839
        %v3456 = vadd.f32 %v3342, %v1845
        %v3457 = vadd.f32 %v3343, %v1852
        %v3458 = vadd.f32 %v3343, %v1858
        %v3459 = vadd.f32 %v3344, %v1865
        %v3460 = vadd.f32 %v3344, %v1871
        %v3461 = vadd.f32 %v3345, %v1878
        %v3462 = vadd.f32 %v3345, %v1884
        %v3463 = vadd.f32 %v3346, %v1891
        %v3464 = vadd.f32 %v3346, %v1897
        %v3465 = vadd.f32 %v3347, %v1904
        %v3466 = vadd.f32 %v3347, %v1910
        %v3467 = vadd.f32 %v3348, %v1917
        %v3468 = vadd.f32 %v3348, %v1923
        %v3469 = vadd.f32 %v3349, %v1930
        %v3470 = vadd.f32 %v3349, %v1936
        %v3471 = vadd.f32 %v3350, %v1943
        %v3472 = vadd.f32 %v3350, %v1949
        %v3473 = vadd.f32 %v3351, %v1956
        %v3474 = vadd.f32 %v3351, %v1962
        %v3475 = vadd.f32 %v3352, %v1969
        %v3476 = vadd.f32 %v3352, %v1975
        %v3477 = vadd.f32 %v3353, %v1982
        %v3478 = vadd.f32 %v3353, %v1988
        %v3479 = vadd.f32 %v3354, %v1995
        %v3480 = vadd.f32 %v3354, %v2001
        %v3481 = vadd.f32 %v3355, %v2008
        %v3482 = vadd.f32 %v3355, %v2014
        %v3483 = vadd.f32 %v3356, %v2021
        %v3484 = vadd.f32 %v3356, %v2027
        %v3485 = vadd.f32 %v3357, %v2034
        %v3486 = vadd.f32 %v3357, %v2040
        %v3487 = vadd.f32 %v3358, %v2047
        %v3488 = vadd.f32 %v3358, %v2053
        %v3489 = vadd.f32 %v3359, %v2060
        %v3490 = vadd.f32 %v3359, %v2066
        %v3491 = vadd.f32 %v3360, %v2073
        %v3492 = vadd.f32 %v3360, %v2079
        %v3493 = vadd.f32 %v3361, %v2086
        %v3494 = vadd.f32 %v3361, %v2092
        %v3495 = vadd.f32 %v3362, %v2099
        %v3496 = vadd.f32 %v3362, %v2105
        %v3497 = vadd.f32 %v3363, %v2112
        %v3498 = vadd.f32 %v3363, %v2118
        %v3499 = vadd.f32 %v3364, %v2125
        %v3500 = vadd.f32 %v3364, %v2131
        %v3501 = vadd.f32 %v3365, %v2138
        %v3502 = vadd.f32 %v3365, %v2144
        %v3503 = vadd.f32 %v3366, %v2151
        %v3504 = vadd.f32 %v3366, %v2157
        %v3505 = vadd.f32 %v3367, %v2164
        %v3506 = vadd.f32 %v3367, %v2170
        %v3507 = vadd.f32 %v3368, %v2177
        %v3508 = vadd.f32 %v3368, %v2183
        %v3509 = vadd.f32 %v3369, %v2190
        %v3510 = vadd.f32 %v3369, %v2196
        %v3511 = vadd.f32 %v3370, %v2203
        %v3512 = vadd.f32 %v3370, %v2209
        %v3513 = vadd.f32 %v3371, %v2216
        %v3514 = vadd.f32 %v3371, %v2222
        %v3515 = vadd.f32 %v3372, %v2229
        %v3516 = vadd.f32 %v3372, %v2235
        %v3517 = vsel %vm2987, %v3421, -inf
        %v3518 = vsel %vm2987, %v3423, -inf
        %v3519 = vsel %vm2987, %v3425, -inf
        %v3520 = vmax.f32 %v3517, %v3519
        %v3521 = vsel %vm2987, %v3427, -inf
        %v3522 = vmax.f32 %v3518, %v3521
        %v3523 = vsel %vm2987, %v3429, -inf
        %v3524 = vmax.f32 %v3520, %v3523
        %v3525 = vsel %vm2987, %v3431, -inf
        %v3526 = vmax.f32 %v3522, %v3525
        %v3527 = vsel %vm2987, %v3433, -inf
        %v3528 = vmax.f32 %v3524, %v3527
        %v3529 = vsel %vm2987, %v3435, -inf
        %v3530 = vmax.f32 %v3526, %v3529
        %v3531 = vsel %vm2987, %v3437, -inf
        %v3532 = vmax.f32 %v3528, %v3531
        %v3533 = vsel %vm2987, %v3439, -inf
        %v3534 = vmax.f32 %v3530, %v3533
        %v3535 = vsel %vm2987, %v3441, -inf
        %v3536 = vmax.f32 %v3532, %v3535
        %v3537 = vsel %vm2987, %v3443, -inf
        %v3538 = vmax.f32 %v3534, %v3537
        %v3539 = vsel %vm2987, %v3445, -inf
        %v3540 = vmax.f32 %v3536, %v3539
        %v3541 = vsel %vm2987, %v3447, -inf
        %v3542 = vmax.f32 %v3538, %v3541
        %v3543 = vsel %vm2987, %v3449, -inf
        %v3544 = vmax.f32 %v3540, %v3543
        %v3545 = vsel %vm2987, %v3451, -inf
        %v3546 = vmax.f32 %v3542, %v3545
        %v3547 = vsel %vm2987, %v3453, -inf
        %v3548 = vmax.f32 %v3544, %v3547
        %v3549 = vsel %vm2987, %v3455, -inf
        %v3550 = vmax.f32 %v3546, %v3549
        %v3551 = vsel %vm2987, %v3457, -inf
        %v3552 = vmax.f32 %v3548, %v3551
        %v3553 = vsel %vm2987, %v3459, -inf
        %v3554 = vmax.f32 %v3550, %v3553
        %v3555 = vsel %vm2987, %v3461, -inf
        %v3556 = vmax.f32 %v3552, %v3555
        %v3557 = vsel %vm2987, %v3463, -inf
        %v3558 = vmax.f32 %v3554, %v3557
        %v3559 = vsel %vm2987, %v3465, -inf
        %v3560 = vmax.f32 %v3556, %v3559
        %v3561 = vsel %vm2987, %v3467, -inf
        %v3562 = vmax.f32 %v3558, %v3561
        %v3563 = vsel %vm2987, %v3469, -inf
        %v3564 = vmax.f32 %v3560, %v3563
        %v3565 = vsel %vm2987, %v3471, -inf
        %v3566 = vmax.f32 %v3562, %v3565
        %v3567 = vsel %vm2987, %v3473, -inf
        %v3568 = vmax.f32 %v3564, %v3567
        %v3569 = vsel %vm2987, %v3475, -inf
        %v3570 = vmax.f32 %v3566, %v3569
        %v3571 = vsel %vm2987, %v3477, -inf
        %v3572 = vmax.f32 %v3568, %v3571
        %v3573 = vsel %vm2987, %v3479, -inf
        %v3574 = vmax.f32 %v3570, %v3573
        %v3575 = vsel %vm2987, %v3481, -inf
        %v3576 = vmax.f32 %v3572, %v3575
        %v3577 = vsel %vm2987, %v3483, -inf
        %v3578 = vmax.f32 %v3574, %v3577
        %v3579 = vsel %vm2987, %v3485, -inf
        %v3580 = vmax.f32 %v3576, %v3579
        %v3581 = vsel %vm2987, %v3487, -inf
        %v3582 = vmax.f32 %v3578, %v3581
        %v3583 = vsel %vm2987, %v3489, -inf
        %v3584 = vmax.f32 %v3580, %v3583
        %v3585 = vsel %vm2987, %v3491, -inf
        %v3586 = vmax.f32 %v3582, %v3585
        %v3587 = vsel %vm2987, %v3493, -inf
        %v3588 = vmax.f32 %v3584, %v3587
        %v3589 = vsel %vm2987, %v3495, -inf
        %v3590 = vmax.f32 %v3586, %v3589
        %v3591 = vsel %vm2987, %v3497, -inf
        %v3592 = vmax.f32 %v3588, %v3591
        %v3593 = vsel %vm2987, %v3499, -inf
        %v3594 = vmax.f32 %v3590, %v3593
        %v3595 = vsel %vm2987, %v3501, -inf
        %v3596 = vmax.f32 %v3592, %v3595
        %v3597 = vsel %vm2987, %v3503, -inf
        %v3598 = vmax.f32 %v3594, %v3597
        %v3599 = vsel %vm2987, %v3505, -inf
        %v3600 = vmax.f32 %v3596, %v3599
        %v3601 = vsel %vm2987, %v3507, -inf
        %v3602 = vmax.f32 %v3598, %v3601
        %v3603 = vsel %vm2987, %v3509, -inf
        %v3604 = vmax.f32 %v3600, %v3603
        %v3605 = vsel %vm2987, %v3511, -inf
        %v3606 = vmax.f32 %v3602, %v3605
        %v3607 = vsel %vm2987, %v3513, -inf
        %v3608 = vmax.f32 %v3604, %v3607
        %v3609 = vsel %vm2987, %v3515, -inf
        %v3610 = vmax.f32 %v3606, %v3609
        %v3611 = vmax.f32 %v3608, %v3610
        %v3612 = vsel %vm2987, %v3422, -inf
        %v3613 = vsel %vm2987, %v3424, -inf
        %v3614 = vsel %vm2987, %v3426, -inf
        %v3615 = vmax.f32 %v3612, %v3614
        %v3616 = vsel %vm2987, %v3428, -inf
        %v3617 = vmax.f32 %v3613, %v3616
        %v3618 = vsel %vm2987, %v3430, -inf
        %v3619 = vmax.f32 %v3615, %v3618
        %v3620 = vsel %vm2987, %v3432, -inf
        %v3621 = vmax.f32 %v3617, %v3620
        %v3622 = vsel %vm2987, %v3434, -inf
        %v3623 = vmax.f32 %v3619, %v3622
        %v3624 = vsel %vm2987, %v3436, -inf
        %v3625 = vmax.f32 %v3621, %v3624
        %v3626 = vsel %vm2987, %v3438, -inf
        %v3627 = vmax.f32 %v3623, %v3626
        %v3628 = vsel %vm2987, %v3440, -inf
        %v3629 = vmax.f32 %v3625, %v3628
        %v3630 = vsel %vm2987, %v3442, -inf
        %v3631 = vmax.f32 %v3627, %v3630
        %v3632 = vsel %vm2987, %v3444, -inf
        %v3633 = vmax.f32 %v3629, %v3632
        %v3634 = vsel %vm2987, %v3446, -inf
        %v3635 = vmax.f32 %v3631, %v3634
        %v3636 = vsel %vm2987, %v3448, -inf
        %v3637 = vmax.f32 %v3633, %v3636
        %v3638 = vsel %vm2987, %v3450, -inf
        %v3639 = vmax.f32 %v3635, %v3638
        %v3640 = vsel %vm2987, %v3452, -inf
        %v3641 = vmax.f32 %v3637, %v3640
        %v3642 = vsel %vm2987, %v3454, -inf
        %v3643 = vmax.f32 %v3639, %v3642
        %v3644 = vsel %vm2987, %v3456, -inf
        %v3645 = vmax.f32 %v3641, %v3644
        %v3646 = vsel %vm2987, %v3458, -inf
        %v3647 = vmax.f32 %v3643, %v3646
        %v3648 = vsel %vm2987, %v3460, -inf
        %v3649 = vmax.f32 %v3645, %v3648
        %v3650 = vsel %vm2987, %v3462, -inf
        %v3651 = vmax.f32 %v3647, %v3650
        %v3652 = vsel %vm2987, %v3464, -inf
        %v3653 = vmax.f32 %v3649, %v3652
        %v3654 = vsel %vm2987, %v3466, -inf
        %v3655 = vmax.f32 %v3651, %v3654
        %v3656 = vsel %vm2987, %v3468, -inf
        %v3657 = vmax.f32 %v3653, %v3656
        %v3658 = vsel %vm2987, %v3470, -inf
        %v3659 = vmax.f32 %v3655, %v3658
        %v3660 = vsel %vm2987, %v3472, -inf
        %v3661 = vmax.f32 %v3657, %v3660
        %v3662 = vsel %vm2987, %v3474, -inf
        %v3663 = vmax.f32 %v3659, %v3662
        %v3664 = vsel %vm2987, %v3476, -inf
        %v3665 = vmax.f32 %v3661, %v3664
        %v3666 = vsel %vm2987, %v3478, -inf
        %v3667 = vmax.f32 %v3663, %v3666
        %v3668 = vsel %vm2987, %v3480, -inf
        %v3669 = vmax.f32 %v3665, %v3668
        %v3670 = vsel %vm2987, %v3482, -inf
        %v3671 = vmax.f32 %v3667, %v3670
        %v3672 = vsel %vm2987, %v3484, -inf
        %v3673 = vmax.f32 %v3669, %v3672
        %v3674 = vsel %vm2987, %v3486, -inf
        %v3675 = vmax.f32 %v3671, %v3674
        %v3676 = vsel %vm2987, %v3488, -inf
        %v3677 = vmax.f32 %v3673, %v3676
        %v3678 = vsel %vm2987, %v3490, -inf
        %v3679 = vmax.f32 %v3675, %v3678
        %v3680 = vsel %vm2987, %v3492, -inf
        %v3681 = vmax.f32 %v3677, %v3680
        %v3682 = vsel %vm2987, %v3494, -inf
        %v3683 = vmax.f32 %v3679, %v3682
        %v3684 = vsel %vm2987, %v3496, -inf
        %v3685 = vmax.f32 %v3681, %v3684
        %v3686 = vsel %vm2987, %v3498, -inf
        %v3687 = vmax.f32 %v3683, %v3686
        %v3688 = vsel %vm2987, %v3500, -inf
        %v3689 = vmax.f32 %v3685, %v3688
        %v3690 = vsel %vm2987, %v3502, -inf
        %v3691 = vmax.f32 %v3687, %v3690
        %v3692 = vsel %vm2987, %v3504, -inf
        %v3693 = vmax.f32 %v3689, %v3692
        %v3694 = vsel %vm2987, %v3506, -inf
        %v3695 = vmax.f32 %v3691, %v3694
        %v3696 = vsel %vm2987, %v3508, -inf
        %v3697 = vmax.f32 %v3693, %v3696
        %v3698 = vsel %vm2987, %v3510, -inf
        %v3699 = vmax.f32 %v3695, %v3698
        %v3700 = vsel %vm2987, %v3512, -inf
        %v3701 = vmax.f32 %v3697, %v3700
        %v3702 = vsel %vm2987, %v3514, -inf
        %v3703 = vmax.f32 %v3699, %v3702
        %v3704 = vsel %vm2987, %v3516, -inf
        %v3705 = vmax.f32 %v3701, %v3704
        %v3706 = vmax.f32 %v3703, %v3705
        %v3707 = vsel %vm3273, %v3611, 0.0
        %v3708 = vsel %vm3274, %v3706, 0.0
        %v3709 = vadd.f32 %v3325, %v2254
        %v3710 = vadd.f32 %v3325, %v2260
        %v3711 = vadd.f32 %v3326, %v2267
        %v3712 = vadd.f32 %v3326, %v2273
        %v3713 = vadd.f32 %v3327, %v2280
        %v3714 = vadd.f32 %v3327, %v2286
        %v3715 = vadd.f32 %v3328, %v2293
        %v3716 = vadd.f32 %v3328, %v2299
        %v3717 = vadd.f32 %v3329, %v2306
        %v3718 = vadd.f32 %v3329, %v2312
        %v3719 = vadd.f32 %v3330, %v2319
        %v3720 = vadd.f32 %v3330, %v2325
        %v3721 = vadd.f32 %v3331, %v2332
        %v3722 = vadd.f32 %v3331, %v2338
        %v3723 = vadd.f32 %v3332, %v2345
        %v3724 = vadd.f32 %v3332, %v2351
        %v3725 = vadd.f32 %v3333, %v2358
        %v3726 = vadd.f32 %v3333, %v2364
        %v3727 = vadd.f32 %v3334, %v2371
        %v3728 = vadd.f32 %v3334, %v2377
        %v3729 = vadd.f32 %v3335, %v2384
        %v3730 = vadd.f32 %v3335, %v2390
        %v3731 = vadd.f32 %v3336, %v2397
        %v3732 = vadd.f32 %v3336, %v2403
        %v3733 = vadd.f32 %v3337, %v2410
        %v3734 = vadd.f32 %v3337, %v2416
        %v3735 = vadd.f32 %v3338, %v2423
        %v3736 = vadd.f32 %v3338, %v2429
        %v3737 = vadd.f32 %v3339, %v2436
        %v3738 = vadd.f32 %v3339, %v2442
        %v3739 = vadd.f32 %v3340, %v2449
        %v3740 = vadd.f32 %v3340, %v2455
        %v3741 = vadd.f32 %v3341, %v2462
        %v3742 = vadd.f32 %v3341, %v2468
        %v3743 = vadd.f32 %v3342, %v2475
        %v3744 = vadd.f32 %v3342, %v2481
        %v3745 = vadd.f32 %v3343, %v2488
        %v3746 = vadd.f32 %v3343, %v2494
        %v3747 = vadd.f32 %v3344, %v2501
        %v3748 = vadd.f32 %v3344, %v2507
        %v3749 = vadd.f32 %v3345, %v2514
        %v3750 = vadd.f32 %v3345, %v2520
        %v3751 = vadd.f32 %v3346, %v2527
        %v3752 = vadd.f32 %v3346, %v2533
        %v3753 = vadd.f32 %v3347, %v2540
        %v3754 = vadd.f32 %v3347, %v2546
        %v3755 = vadd.f32 %v3348, %v2553
        %v3756 = vadd.f32 %v3348, %v2559
        %v3757 = vadd.f32 %v3349, %v2566
        %v3758 = vadd.f32 %v3349, %v2572
        %v3759 = vadd.f32 %v3350, %v2579
        %v3760 = vadd.f32 %v3350, %v2585
        %v3761 = vadd.f32 %v3351, %v2592
        %v3762 = vadd.f32 %v3351, %v2598
        %v3763 = vadd.f32 %v3352, %v2605
        %v3764 = vadd.f32 %v3352, %v2611
        %v3765 = vadd.f32 %v3353, %v2618
        %v3766 = vadd.f32 %v3353, %v2624
        %v3767 = vadd.f32 %v3354, %v2631
        %v3768 = vadd.f32 %v3354, %v2637
        %v3769 = vadd.f32 %v3355, %v2644
        %v3770 = vadd.f32 %v3355, %v2650
        %v3771 = vadd.f32 %v3356, %v2657
        %v3772 = vadd.f32 %v3356, %v2663
        %v3773 = vadd.f32 %v3357, %v2670
        %v3774 = vadd.f32 %v3357, %v2676
        %v3775 = vadd.f32 %v3358, %v2683
        %v3776 = vadd.f32 %v3358, %v2689
        %v3777 = vadd.f32 %v3359, %v2696
        %v3778 = vadd.f32 %v3359, %v2702
        %v3779 = vadd.f32 %v3360, %v2709
        %v3780 = vadd.f32 %v3360, %v2715
        %v3781 = vadd.f32 %v3361, %v2722
        %v3782 = vadd.f32 %v3361, %v2728
        %v3783 = vadd.f32 %v3362, %v2735
        %v3784 = vadd.f32 %v3362, %v2741
        %v3785 = vadd.f32 %v3363, %v2748
        %v3786 = vadd.f32 %v3363, %v2754
        %v3787 = vadd.f32 %v3364, %v2761
        %v3788 = vadd.f32 %v3364, %v2767
        %v3789 = vadd.f32 %v3365, %v2774
        %v3790 = vadd.f32 %v3365, %v2780
        %v3791 = vadd.f32 %v3366, %v2787
        %v3792 = vadd.f32 %v3366, %v2793
        %v3793 = vadd.f32 %v3367, %v2800
        %v3794 = vadd.f32 %v3367, %v2806
        %v3795 = vadd.f32 %v3368, %v2813
        %v3796 = vadd.f32 %v3368, %v2819
        %v3797 = vadd.f32 %v3369, %v2826
        %v3798 = vadd.f32 %v3369, %v2832
        %v3799 = vadd.f32 %v3370, %v2839
        %v3800 = vadd.f32 %v3370, %v2845
        %v3801 = vadd.f32 %v3371, %v2852
        %v3802 = vadd.f32 %v3371, %v2858
        %v3803 = vadd.f32 %v3372, %v2865
        %v3804 = vadd.f32 %v3372, %v2871
        %v3805 = vsel %vm2987, %v3709, inf
        %v3806 = vsel %vm2987, %v3711, inf
        %v3807 = vsel %vm2987, %v3713, inf
        %v3808 = vmin.f32 %v3805, %v3807
        %v3809 = vsel %vm2987, %v3715, inf
        %v3810 = vmin.f32 %v3806, %v3809
        %v3811 = vsel %vm2987, %v3717, inf
        %v3812 = vmin.f32 %v3808, %v3811
        %v3813 = vsel %vm2987, %v3719, inf
        %v3814 = vmin.f32 %v3810, %v3813
        %v3815 = vsel %vm2987, %v3721, inf
        %v3816 = vmin.f32 %v3812, %v3815
        %v3817 = vsel %vm2987, %v3723, inf
        %v3818 = vmin.f32 %v3814, %v3817
        %v3819 = vsel %vm2987, %v3725, inf
        %v3820 = vmin.f32 %v3816, %v3819
        %v3821 = vsel %vm2987, %v3727, inf
        %v3822 = vmin.f32 %v3818, %v3821
        %v3823 = vsel %vm2987, %v3729, inf
        %v3824 = vmin.f32 %v3820, %v3823
        %v3825 = vsel %vm2987, %v3731, inf
        %v3826 = vmin.f32 %v3822, %v3825
        %v3827 = vsel %vm2987, %v3733, inf
        %v3828 = vmin.f32 %v3824, %v3827
        %v3829 = vsel %vm2987, %v3735, inf
        %v3830 = vmin.f32 %v3826, %v3829
        %v3831 = vsel %vm2987, %v3737, inf
        %v3832 = vmin.f32 %v3828, %v3831
        %v3833 = vsel %vm2987, %v3739, inf
        %v3834 = vmin.f32 %v3830, %v3833
        %v3835 = vsel %vm2987, %v3741, inf
        %v3836 = vmin.f32 %v3832, %v3835
        %v3837 = vsel %vm2987, %v3743, inf
        %v3838 = vmin.f32 %v3834, %v3837
        %v3839 = vsel %vm2987, %v3745, inf
        %v3840 = vmin.f32 %v3836, %v3839
        %v3841 = vsel %vm2987, %v3747, inf
        %v3842 = vmin.f32 %v3838, %v3841
        %v3843 = vsel %vm2987, %v3749, inf
        %v3844 = vmin.f32 %v3840, %v3843
        %v3845 = vsel %vm2987, %v3751, inf
        %v3846 = vmin.f32 %v3842, %v3845
        %v3847 = vsel %vm2987, %v3753, inf
        %v3848 = vmin.f32 %v3844, %v3847
        %v3849 = vsel %vm2987, %v3755, inf
        %v3850 = vmin.f32 %v3846, %v3849
        %v3851 = vsel %vm2987, %v3757, inf
        %v3852 = vmin.f32 %v3848, %v3851
        %v3853 = vsel %vm2987, %v3759, inf
        %v3854 = vmin.f32 %v3850, %v3853
        %v3855 = vsel %vm2987, %v3761, inf
        %v3856 = vmin.f32 %v3852, %v3855
        %v3857 = vsel %vm2987, %v3763, inf
        %v3858 = vmin.f32 %v3854, %v3857
        %v3859 = vsel %vm2987, %v3765, inf
        %v3860 = vmin.f32 %v3856, %v3859
        %v3861 = vsel %vm2987, %v3767, inf
        %v3862 = vmin.f32 %v3858, %v3861
        %v3863 = vsel %vm2987, %v3769, inf
        %v3864 = vmin.f32 %v3860, %v3863
        %v3865 = vsel %vm2987, %v3771, inf
        %v3866 = vmin.f32 %v3862, %v3865
        %v3867 = vsel %vm2987, %v3773, inf
        %v3868 = vmin.f32 %v3864, %v3867
        %v3869 = vsel %vm2987, %v3775, inf
        %v3870 = vmin.f32 %v3866, %v3869
        %v3871 = vsel %vm2987, %v3777, inf
        %v3872 = vmin.f32 %v3868, %v3871
        %v3873 = vsel %vm2987, %v3779, inf
        %v3874 = vmin.f32 %v3870, %v3873
        %v3875 = vsel %vm2987, %v3781, inf
        %v3876 = vmin.f32 %v3872, %v3875
        %v3877 = vsel %vm2987, %v3783, inf
        %v3878 = vmin.f32 %v3874, %v3877
        %v3879 = vsel %vm2987, %v3785, inf
        %v3880 = vmin.f32 %v3876, %v3879
        %v3881 = vsel %vm2987, %v3787, inf
        %v3882 = vmin.f32 %v3878, %v3881
        %v3883 = vsel %vm2987, %v3789, inf
        %v3884 = vmin.f32 %v3880, %v3883
        %v3885 = vsel %vm2987, %v3791, inf
        %v3886 = vmin.f32 %v3882, %v3885
        %v3887 = vsel %vm2987, %v3793, inf
        %v3888 = vmin.f32 %v3884, %v3887
        %v3889 = vsel %vm2987, %v3795, inf
        %v3890 = vmin.f32 %v3886, %v3889
        %v3891 = vsel %vm2987, %v3797, inf
        %v3892 = vmin.f32 %v3888, %v3891
        %v3893 = vsel %vm2987, %v3799, inf
        %v3894 = vmin.f32 %v3890, %v3893
        %v3895 = vsel %vm2987, %v3801, inf
        %v3896 = vmin.f32 %v3892, %v3895
        %v3897 = vsel %vm2987, %v3803, inf
        %v3898 = vmin.f32 %v3894, %v3897
        %v3899 = vmin.f32 %v3896, %v3898
        %v3900 = vsel %vm2987, %v3710, inf
        %v3901 = vsel %vm2987, %v3712, inf
        %v3902 = vsel %vm2987, %v3714, inf
        %v3903 = vmin.f32 %v3900, %v3902
        %v3904 = vsel %vm2987, %v3716, inf
        %v3905 = vmin.f32 %v3901, %v3904
        %v3906 = vsel %vm2987, %v3718, inf
        %v3907 = vmin.f32 %v3903, %v3906
        %v3908 = vsel %vm2987, %v3720, inf
        %v3909 = vmin.f32 %v3905, %v3908
        %v3910 = vsel %vm2987, %v3722, inf
        %v3911 = vmin.f32 %v3907, %v3910
        %v3912 = vsel %vm2987, %v3724, inf
        %v3913 = vmin.f32 %v3909, %v3912
        %v3914 = vsel %vm2987, %v3726, inf
        %v3915 = vmin.f32 %v3911, %v3914
        %v3916 = vsel %vm2987, %v3728, inf
        %v3917 = vmin.f32 %v3913, %v3916
        %v3918 = vsel %vm2987, %v3730, inf
        %v3919 = vmin.f32 %v3915, %v3918
        %v3920 = vsel %vm2987, %v3732, inf
        %v3921 = vmin.f32 %v3917, %v3920
        %v3922 = vsel %vm2987, %v3734, inf
        %v3923 = vmin.f32 %v3919, %v3922
        %v3924 = vsel %vm2987, %v3736, inf
        %v3925 = vmin.f32 %v3921, %v3924
        %v3926 = vsel %vm2987, %v3738, inf
        %v3927 = vmin.f32 %v3923, %v3926
        %v3928 = vsel %vm2987, %v3740, inf
        %v3929 = vmin.f32 %v3925, %v3928
        %v3930 = vsel %vm2987, %v3742, inf
        %v3931 = vmin.f32 %v3927, %v3930
        %v3932 = vsel %vm2987, %v3744, inf
        %v3933 = vmin.f32 %v3929, %v3932
        %v3934 = vsel %vm2987, %v3746, inf
        %v3935 = vmin.f32 %v3931, %v3934
        %v3936 = vsel %vm2987, %v3748, inf
        %v3937 = vmin.f32 %v3933, %v3936
        %v3938 = vsel %vm2987, %v3750, inf
        %v3939 = vmin.f32 %v3935, %v3938
        %v3940 = vsel %vm2987, %v3752, inf
        %v3941 = vmin.f32 %v3937, %v3940
        %v3942 = vsel %vm2987, %v3754, inf
        %v3943 = vmin.f32 %v3939, %v3942
        %v3944 = vsel %vm2987, %v3756, inf
        %v3945 = vmin.f32 %v3941, %v3944
        %v3946 = vsel %vm2987, %v3758, inf
        %v3947 = vmin.f32 %v3943, %v3946
        %v3948 = vsel %vm2987, %v3760, inf
        %v3949 = vmin.f32 %v3945, %v3948
        %v3950 = vsel %vm2987, %v3762, inf
        %v3951 = vmin.f32 %v3947, %v3950
        %v3952 = vsel %vm2987, %v3764, inf
        %v3953 = vmin.f32 %v3949, %v3952
        %v3954 = vsel %vm2987, %v3766, inf
        %v3955 = vmin.f32 %v3951, %v3954
        %v3956 = vsel %vm2987, %v3768, inf
        %v3957 = vmin.f32 %v3953, %v3956
        %v3958 = vsel %vm2987, %v3770, inf
        %v3959 = vmin.f32 %v3955, %v3958
        %v3960 = vsel %vm2987, %v3772, inf
        %v3961 = vmin.f32 %v3957, %v3960
        %v3962 = vsel %vm2987, %v3774, inf
        %v3963 = vmin.f32 %v3959, %v3962
        %v3964 = vsel %vm2987, %v3776, inf
        %v3965 = vmin.f32 %v3961, %v3964
        %v3966 = vsel %vm2987, %v3778, inf
        %v3967 = vmin.f32 %v3963, %v3966
        %v3968 = vsel %vm2987, %v3780, inf
        %v3969 = vmin.f32 %v3965, %v3968
        %v3970 = vsel %vm2987, %v3782, inf
        %v3971 = vmin.f32 %v3967, %v3970
        %v3972 = vsel %vm2987, %v3784, inf
        %v3973 = vmin.f32 %v3969, %v3972
        %v3974 = vsel %vm2987, %v3786, inf
        %v3975 = vmin.f32 %v3971, %v3974
        %v3976 = vsel %vm2987, %v3788, inf
        %v3977 = vmin.f32 %v3973, %v3976
        %v3978 = vsel %vm2987, %v3790, inf
        %v3979 = vmin.f32 %v3975, %v3978
        %v3980 = vsel %vm2987, %v3792, inf
        %v3981 = vmin.f32 %v3977, %v3980
        %v3982 = vsel %vm2987, %v3794, inf
        %v3983 = vmin.f32 %v3979, %v3982
        %v3984 = vsel %vm2987, %v3796, inf
        %v3985 = vmin.f32 %v3981, %v3984
        %v3986 = vsel %vm2987, %v3798, inf
        %v3987 = vmin.f32 %v3983, %v3986
        %v3988 = vsel %vm2987, %v3800, inf
        %v3989 = vmin.f32 %v3985, %v3988
        %v3990 = vsel %vm2987, %v3802, inf
        %v3991 = vmin.f32 %v3987, %v3990
        %v3992 = vsel %vm2987, %v3804, inf
        %v3993 = vmin.f32 %v3989, %v3992
        %v3994 = vmin.f32 %v3991, %v3993
        %v3995 = vsel %vm3273, %v3899, 0.0
        %v3996 = vsel %vm3274, %v3994, 0.0
        %v3997 = vld [vmem:[%s27] sm:$0xff]
        %v3998 = vld [vmem:[%s27 + $0x8] sm:$0xff]
        %v3999 = vld [vmem:[%s27 + $0x10] sm:$0xff]
        %v4000 = vld [vmem:[%s27 + $0x18] sm:$0xff]
        %v4001 = vld [vmem:[%s29] sm:$0x1]
        %v4003 = vperm.slane %v4001, 0
        %v4006 = vsel %vm2987, %v1406, 0
        %v4009 = vsel %vm2987, %v1409, 0
        %4011 = vmatpush.msra.mxu0 0.0
        %4012 = vmatpush.msra.mxu0 0.0
        %4013 = vmatpush.msra.mxu0 0.0
        %4014 = vmatpush.msra.mxu0 0.0
        %4015 = vmatpush.msra.mxu0 0.0
        %4016 = vmatpush.msra.mxu0 0.0
        %4017 = vmatpush.msra.mxu0 0.0
        %4018 = vmatpush.msra.mxu0 0.0
        %4019 = vmatpush.msra.mxu0 0.0
        %4020 = vmatpush.msra.mxu0 0.0
        %4021 = vmatpush.msra.mxu0 0.0
        %4022 = vmatpush.msra.mxu0 0.0
        %4023 = vmatpush.msra.mxu0 %v4000
        %4024 = vmatpush.msra.mxu0 %v3999
        %4025 = vmatpush.msra.mxu0 %v3998
        %4026 = vmatpush.msra.mxu0 %v3997
        %4027 = vmatmul.f32.gmra.mxu0 %v4006
        %v4028 = vpop.f32.mrf.mxu0
        %v4029 = vadd.f32 %v4003, %v4028
        %4030 = vmatmul.f32.gmra.mxu0 %v4009
        %v4031 = vpop.f32.mrf.mxu0
        %v4032 = vadd.f32 %v4003, %v4031
        %4033 = vdwg.mxu0
        %v4034 = vld [vmem:[%s27 + $0x20] sm:$0xff]
        %v4035 = vld [vmem:[%s27 + $0x28] sm:$0xff]
        %v4036 = vld [vmem:[%s27 + $0x30] sm:$0xff]
        %v4037 = vld [vmem:[%s27 + $0x38] sm:$0xff]
        %v4038 = vld [vmem:[%s27 + $0x40] sm:$0xff]
        %v4039 = vld [vmem:[%s27 + $0x48] sm:$0xff]
        %v4040 = vld [vmem:[%s27 + $0x50] sm:$0xff]
        %v4041 = vld [vmem:[%s27 + $0x58] sm:$0xff]
        %v4043 = vsel %vm2987, %v3707, 0
        %v4046 = vsel %vm2987, %v3708, 0
        %4048 = vmatpush.msra.mxu0 0.0
        %4049 = vmatpush.msra.mxu0 0.0
        %4050 = vmatpush.msra.mxu0 0.0
        %4051 = vmatpush.msra.mxu0 0.0
        %4052 = vmatpush.msra.mxu0 0.0
        %4053 = vmatpush.msra.mxu0 0.0
        %4054 = vmatpush.msra.mxu0 0.0
        %4055 = vmatpush.msra.mxu0 0.0
        %4056 = vmatpush.msra.mxu0 0.0
        %4057 = vmatpush.msra.mxu0 0.0
        %4058 = vmatpush.msra.mxu0 0.0
        %4059 = vmatpush.msra.mxu0 0.0
        %4060 = vmatpush.msra.mxu0 %v4041
        %4061 = vmatpush.msra.mxu0 %v4040
        %4062 = vmatpush.msra.mxu0 %v4039
        %4063 = vmatpush.msra.mxu0 %v4038
        %4064 = vmatmul.f32.gmra.mxu0 %v4043
        %v4065 = vpop.f32.mrf.mxu0
        %v4066 = vadd.f32 0.0, %v4065
        %4067 = vmatmul.f32.gmra.mxu0 %v4046
        %v4068 = vpop.f32.mrf.mxu0
        %v4069 = vadd.f32 0.0, %v4068
        %4070 = vdwg.mxu0
        %v4072 = vsel %vm2987, %v3200, 0
        %v4075 = vsel %vm2987, %v3201, 0
        %4077 = vmatpush.msra.mxu0 0.0
        %4078 = vmatpush.msra.mxu0 0.0
        %4079 = vmatpush.msra.mxu0 0.0
        %4080 = vmatpush.msra.mxu0 0.0
        %4081 = vmatpush.msra.mxu0 0.0
        %4082 = vmatpush.msra.mxu0 0.0
        %4083 = vmatpush.msra.mxu0 0.0
        %4084 = vmatpush.msra.mxu0 0.0
        %4085 = vmatpush.msra.mxu0 0.0
        %4086 = vmatpush.msra.mxu0 0.0
        %4087 = vmatpush.msra.mxu0 0.0
        %4088 = vmatpush.msra.mxu0 0.0
        %4089 = vmatpush.msra.mxu0 %v4037
        %4090 = vmatpush.msra.mxu0 %v4036
        %4091 = vmatpush.msra.mxu0 %v4035
        %4092 = vmatpush.msra.mxu0 %v4034
        %4093 = vmatmul.f32.gmra.mxu0 %v4072
        %v4094 = vpop.f32.mrf.mxu0
        %v4095 = vadd.f32 %v4066, %v4094
        %4096 = vmatmul.f32.gmra.mxu0 %v4075
        %v4097 = vpop.f32.mrf.mxu0
        %v4098 = vadd.f32 %v4069, %v4097
        %4099 = vdwg.mxu0
        %v4100 = vld [vmem:[%s27 + $0x60] sm:$0xff]
        %v4101 = vld [vmem:[%s27 + $0x68] sm:$0xff]
        %v4102 = vld [vmem:[%s27 + $0x70] sm:$0xff]
        %v4103 = vld [vmem:[%s27 + $0x78] sm:$0xff]
        %v4105 = vsel %vm2987, %v3995, 0
        %v4108 = vsel %vm2987, %v3996, 0
        %4110 = vmatpush.msra.mxu0 0.0
        %4111 = vmatpush.msra.mxu0 0.0
        %4112 = vmatpush.msra.mxu0 0.0
        %4113 = vmatpush.msra.mxu0 0.0
        %4114 = vmatpush.msra.mxu0 0.0
        %4115 = vmatpush.msra.mxu0 0.0
        %4116 = vmatpush.msra.mxu0 0.0
        %4117 = vmatpush.msra.mxu0 0.0
        %4118 = vmatpush.msra.mxu0 0.0
        %4119 = vmatpush.msra.mxu0 0.0
        %4120 = vmatpush.msra.mxu0 0.0
        %4121 = vmatpush.msra.mxu0 0.0
        %4122 = vmatpush.msra.mxu0 %v4103
        %4123 = vmatpush.msra.mxu0 %v4102
        %4124 = vmatpush.msra.mxu0 %v4101
        %4125 = vmatpush.msra.mxu0 %v4100
        %4126 = vmatmul.f32.gmra.mxu0 %v4105
        %v4127 = vpop.f32.mrf.mxu0
        %v4128 = vadd.f32 0.0, %v4127
        %4129 = vmatmul.f32.gmra.mxu0 %v4108
        %v4130 = vpop.f32.mrf.mxu0
        %v4131 = vadd.f32 0.0, %v4130
        %4132 = vdwg.mxu0
        %v4133 = vadd.f32 %v4095, %v4128
        %v4134 = vadd.f32 %v4098, %v4131
        %v4135 = vld [vmem:[%s27 + $0x80] sm:$0xff]
        %v4136 = vld [vmem:[%s27 + $0x88] sm:$0xff]
        %v4137 = vld [vmem:[%s27 + $0x90] sm:$0xff]
        %v4138 = vld [vmem:[%s27 + $0x98] sm:$0xff]
        %v4140 = vsel %vm2987, %v3275, 0
        %v4143 = vsel %vm2987, %v3276, 0
        %4145 = vmatpush.msra.mxu0 0.0
        %4146 = vmatpush.msra.mxu0 0.0
        %4147 = vmatpush.msra.mxu0 0.0
        %4148 = vmatpush.msra.mxu0 0.0
        %4149 = vmatpush.msra.mxu0 0.0
        %4150 = vmatpush.msra.mxu0 0.0
        %4151 = vmatpush.msra.mxu0 0.0
        %4152 = vmatpush.msra.mxu0 0.0
        %4153 = vmatpush.msra.mxu0 0.0
        %4154 = vmatpush.msra.mxu0 0.0
        %4155 = vmatpush.msra.mxu0 0.0
        %4156 = vmatpush.msra.mxu0 0.0
        %4157 = vmatpush.msra.mxu0 %v4138
        %4158 = vmatpush.msra.mxu0 %v4137
        %4159 = vmatpush.msra.mxu0 %v4136
        %4160 = vmatpush.msra.mxu0 %v4135
        %4161 = vmatmul.f32.gmra.mxu0 %v4140
        %v4162 = vpop.f32.mrf.mxu0
        %v4163 = vadd.f32 0.0, %v4162
        %4164 = vmatmul.f32.gmra.mxu0 %v4143
        %v4165 = vpop.f32.mrf.mxu0
        %v4166 = vadd.f32 0.0, %v4165
        %4167 = vdwg.mxu0
        %v4168 = vadd.f32 %v4133, %v4163
        %v4169 = vadd.f32 %v4134, %v4166
        %v4170 = vadd.f32 %v4029, %v4168
        %v4171 = vadd.f32 %v4032, %v4169
        %v4172 = vld [vmem:[%s27 + $0xa0] sm:$0xff]
        %v4173 = vld [vmem:[%s27 + $0xa8] sm:$0xff]
        %v4174 = vld [vmem:[%s27 + $0xb0] sm:$0xff]
        %v4175 = vld [vmem:[%s27 + $0xb8] sm:$0xff]
        %v4176 = vld [vmem:[%s27 + $0xc0] sm:$0xff]
        %v4177 = vld [vmem:[%s27 + $0xc8] sm:$0xff]
        %v4178 = vld [vmem:[%s27 + $0xd0] sm:$0xff]
        %v4179 = vld [vmem:[%s27 + $0xd8] sm:$0xff]
        %4180 = vmatpush.msra.mxu0 0.0
        %4181 = vmatpush.msra.mxu0 0.0
        %4182 = vmatpush.msra.mxu0 0.0
        %4183 = vmatpush.msra.mxu0 0.0
        %4184 = vmatpush.msra.mxu0 0.0
        %4185 = vmatpush.msra.mxu0 0.0
        %4186 = vmatpush.msra.mxu0 0.0
        %4187 = vmatpush.msra.mxu0 0.0
        %4188 = vmatpush.msra.mxu0 0.0
        %4189 = vmatpush.msra.mxu0 0.0
        %4190 = vmatpush.msra.mxu0 0.0
        %4191 = vmatpush.msra.mxu0 0.0
        %4192 = vmatpush.msra.mxu0 %v4179
        %4193 = vmatpush.msra.mxu0 %v4178
        %4194 = vmatpush.msra.mxu0 %v4177
        %4195 = vmatpush.msra.mxu0 %v4176
        %4196 = vmatmul.f32.gmra.mxu0 %v4043
        %v4197 = vpop.f32.mrf.mxu0
        %v4198 = vadd.f32 0.0, %v4197
        %4199 = vmatmul.f32.gmra.mxu0 %v4046
        %v4200 = vpop.f32.mrf.mxu0
        %v4201 = vadd.f32 0.0, %v4200
        %4202 = vdwg.mxu0
        %4203 = vmatpush.msra.mxu0 0.0
        %4204 = vmatpush.msra.mxu0 0.0
        %4205 = vmatpush.msra.mxu0 0.0
        %4206 = vmatpush.msra.mxu0 0.0
        %4207 = vmatpush.msra.mxu0 0.0
        %4208 = vmatpush.msra.mxu0 0.0
        %4209 = vmatpush.msra.mxu0 0.0
        %4210 = vmatpush.msra.mxu0 0.0
        %4211 = vmatpush.msra.mxu0 0.0
        %4212 = vmatpush.msra.mxu0 0.0
        %4213 = vmatpush.msra.mxu0 0.0
        %4214 = vmatpush.msra.mxu0 0.0
        %4215 = vmatpush.msra.mxu0 %v4175
        %4216 = vmatpush.msra.mxu0 %v4174
        %4217 = vmatpush.msra.mxu0 %v4173
        %4218 = vmatpush.msra.mxu0 %v4172
        %4219 = vmatmul.f32.gmra.mxu0 %v4072
        %v4220 = vpop.f32.mrf.mxu0
        %v4221 = vadd.f32 %v4198, %v4220
        %4222 = vmatmul.f32.gmra.mxu0 %v4075
        %v4223 = vpop.f32.mrf.mxu0
        %v4224 = vadd.f32 %v4201, %v4223
        %4225 = vdwg.mxu0
        %v4226 = vld [vmem:[%s27 + $0xe0] sm:$0xff]
        %v4227 = vld [vmem:[%s27 + $0xe8] sm:$0xff]
        %v4228 = vld [vmem:[%s27 + $0xf0] sm:$0xff]
        %v4229 = vld [vmem:[%s27 + $0xf8] sm:$0xff]
        %4230 = vmatpush.msra.mxu0 0.0
        %4231 = vmatpush.msra.mxu0 0.0
        %4232 = vmatpush.msra.mxu0 0.0
        %4233 = vmatpush.msra.mxu0 0.0
        %4234 = vmatpush.msra.mxu0 0.0
        %4235 = vmatpush.msra.mxu0 0.0
        %4236 = vmatpush.msra.mxu0 0.0
        %4237 = vmatpush.msra.mxu0 0.0
        %4238 = vmatpush.msra.mxu0 0.0
        %4239 = vmatpush.msra.mxu0 0.0
        %4240 = vmatpush.msra.mxu0 0.0
        %4241 = vmatpush.msra.mxu0 0.0
        %4242 = vmatpush.msra.mxu0 %v4229
        %4243 = vmatpush.msra.mxu0 %v4228
        %4244 = vmatpush.msra.mxu0 %v4227
        %4245 = vmatpush.msra.mxu0 %v4226
        %4246 = vmatmul.f32.gmra.mxu0 %v4105
        %v4247 = vpop.f32.mrf.mxu0
        %v4248 = vadd.f32 0.0, %v4247
        %4249 = vmatmul.f32.gmra.mxu0 %v4108
        %v4250 = vpop.f32.mrf.mxu0
        %v4251 = vadd.f32 0.0, %v4250
        %4252 = vdwg.mxu0
        %v4253 = vadd.f32 %v4221, %v4248
        %v4254 = vadd.f32 %v4224, %v4251
        %v4255 = vld [vmem:[%s27 + $0x100] sm:$0xff]
        %v4256 = vld [vmem:[%s27 + $0x108] sm:$0xff]
        %v4257 = vld [vmem:[%s27 + $0x110] sm:$0xff]
        %v4258 = vld [vmem:[%s27 + $0x118] sm:$0xff]
        %4259 = vmatpush.msra.mxu0 0.0
        %4260 = vmatpush.msra.mxu0 0.0
        %4261 = vmatpush.msra.mxu0 0.0
        %4262 = vmatpush.msra.mxu0 0.0
        %4263 = vmatpush.msra.mxu0 0.0
        %4264 = vmatpush.msra.mxu0 0.0
        %4265 = vmatpush.msra.mxu0 0.0
        %4266 = vmatpush.msra.mxu0 0.0
        %4267 = vmatpush.msra.mxu0 0.0
        %4268 = vmatpush.msra.mxu0 0.0
        %4269 = vmatpush.msra.mxu0 0.0
        %4270 = vmatpush.msra.mxu0 0.0
        %4271 = vmatpush.msra.mxu0 %v4258
        %4272 = vmatpush.msra.mxu0 %v4257
        %4273 = vmatpush.msra.mxu0 %v4256
        %4274 = vmatpush.msra.mxu0 %v4255
        %4275 = vmatmul.f32.gmra.mxu0 %v4140
        %v4276 = vpop.f32.mrf.mxu0
        %v4277 = vadd.f32 0.0, %v4276
        %4278 = vmatmul.f32.gmra.mxu0 %v4143
        %v4279 = vpop.f32.mrf.mxu0
        %v4280 = vadd.f32 0.0, %v4279
        %4281 = vdwg.mxu0
        %v4282 = vadd.f32 %v4253, %v4277
        %v4283 = vadd.f32 %v4254, %v4280
        %4285 = vset.pattern.permute.xlu0 0
        %4286 = vperm.xlu0 %4285, %v1564
        %v4287 = vpop.permute.xlu0 %4286
        %4290 = vset.pattern.permute.xlu0 0
        %4291 = vperm.xlu0 %4290, %v1565
        %v4292 = vpop.permute.xlu0 %4291
        %v4294 = vmul.f32 %v4282, %v4287
        %v4295 = vmul.f32 %v4283, %v4292
        %v4296 = vadd.f32 %v4170, %v4294
        %v4297 = vadd.f32 %v4171, %v4295
        %v4298 = vld [vmem:[%s27 + $0x120] sm:$0xff]
        %v4299 = vld [vmem:[%s27 + $0x128] sm:$0xff]
        %v4300 = vld [vmem:[%s27 + $0x130] sm:$0xff]
        %v4301 = vld [vmem:[%s27 + $0x138] sm:$0xff]
        %v4302 = vld [vmem:[%s27 + $0x140] sm:$0xff]
        %v4303 = vld [vmem:[%s27 + $0x148] sm:$0xff]
        %v4304 = vld [vmem:[%s27 + $0x150] sm:$0xff]
        %v4305 = vld [vmem:[%s27 + $0x158] sm:$0xff]
        %4306 = vmatpush.msra.mxu0 0.0
        %4307 = vmatpush.msra.mxu0 0.0
        %4308 = vmatpush.msra.mxu0 0.0
        %4309 = vmatpush.msra.mxu0 0.0
        %4310 = vmatpush.msra.mxu0 0.0
        %4311 = vmatpush.msra.mxu0 0.0
        %4312 = vmatpush.msra.mxu0 0.0
        %4313 = vmatpush.msra.mxu0 0.0
        %4314 = vmatpush.msra.mxu0 0.0
        %4315 = vmatpush.msra.mxu0 0.0
        %4316 = vmatpush.msra.mxu0 0.0
        %4317 = vmatpush.msra.mxu0 0.0
        %4318 = vmatpush.msra.mxu0 %v4305
        %4319 = vmatpush.msra.mxu0 %v4304
        %4320 = vmatpush.msra.mxu0 %v4303
        %4321 = vmatpush.msra.mxu0 %v4302
        %4322 = vmatmul.f32.gmra.mxu0 %v4043
        %v4323 = vpop.f32.mrf.mxu0
        %v4324 = vadd.f32 0.0, %v4323
        %4325 = vmatmul.f32.gmra.mxu0 %v4046
        %v4326 = vpop.f32.mrf.mxu0
        %v4327 = vadd.f32 0.0, %v4326
        %4328 = vdwg.mxu0
        %4329 = vmatpush.msra.mxu0 0.0
        %4330 = vmatpush.msra.mxu0 0.0
        %4331 = vmatpush.msra.mxu0 0.0
        %4332 = vmatpush.msra.mxu0 0.0
        %4333 = vmatpush.msra.mxu0 0.0
        %4334 = vmatpush.msra.mxu0 0.0
        %4335 = vmatpush.msra.mxu0 0.0
        %4336 = vmatpush.msra.mxu0 0.0
        %4337 = vmatpush.msra.mxu0 0.0
        %4338 = vmatpush.msra.mxu0 0.0
        %4339 = vmatpush.msra.mxu0 0.0
        %4340 = vmatpush.msra.mxu0 0.0
        %4341 = vmatpush.msra.mxu0 %v4301
        %4342 = vmatpush.msra.mxu0 %v4300
        %4343 = vmatpush.msra.mxu0 %v4299
        %4344 = vmatpush.msra.mxu0 %v4298
        %4345 = vmatmul.f32.gmra.mxu0 %v4072
        %v4346 = vpop.f32.mrf.mxu0
        %v4347 = vadd.f32 %v4324, %v4346
        %4348 = vmatmul.f32.gmra.mxu0 %v4075
        %v4349 = vpop.f32.mrf.mxu0
        %v4350 = vadd.f32 %v4327, %v4349
        %4351 = vdwg.mxu0
        %v4352 = vld [vmem:[%s27 + $0x160] sm:$0xff]
        %v4353 = vld [vmem:[%s27 + $0x168] sm:$0xff]
        %v4354 = vld [vmem:[%s27 + $0x170] sm:$0xff]
        %v4355 = vld [vmem:[%s27 + $0x178] sm:$0xff]
        %4356 = vmatpush.msra.mxu0 0.0
        %4357 = vmatpush.msra.mxu0 0.0
        %4358 = vmatpush.msra.mxu0 0.0
        %4359 = vmatpush.msra.mxu0 0.0
        %4360 = vmatpush.msra.mxu0 0.0
        %4361 = vmatpush.msra.mxu0 0.0
        %4362 = vmatpush.msra.mxu0 0.0
        %4363 = vmatpush.msra.mxu0 0.0
        %4364 = vmatpush.msra.mxu0 0.0
        %4365 = vmatpush.msra.mxu0 0.0
        %4366 = vmatpush.msra.mxu0 0.0
        %4367 = vmatpush.msra.mxu0 0.0
        %4368 = vmatpush.msra.mxu0 %v4355
        %4369 = vmatpush.msra.mxu0 %v4354
        %4370 = vmatpush.msra.mxu0 %v4353
        %4371 = vmatpush.msra.mxu0 %v4352
        %4372 = vmatmul.f32.gmra.mxu0 %v4105
        %v4373 = vpop.f32.mrf.mxu0
        %v4374 = vadd.f32 0.0, %v4373
        %4375 = vmatmul.f32.gmra.mxu0 %v4108
        %v4376 = vpop.f32.mrf.mxu0
        %v4377 = vadd.f32 0.0, %v4376
        %4378 = vdwg.mxu0
        %v4379 = vadd.f32 %v4347, %v4374
        %v4380 = vadd.f32 %v4350, %v4377
        %v4381 = vld [vmem:[%s27 + $0x180] sm:$0xff]
        %v4382 = vld [vmem:[%s27 + $0x188] sm:$0xff]
        %v4383 = vld [vmem:[%s27 + $0x190] sm:$0xff]
        %v4384 = vld [vmem:[%s27 + $0x198] sm:$0xff]
        %4385 = vmatpush.msra.mxu0 0.0
        %4386 = vmatpush.msra.mxu0 0.0
        %4387 = vmatpush.msra.mxu0 0.0
        %4388 = vmatpush.msra.mxu0 0.0
        %4389 = vmatpush.msra.mxu0 0.0
        %4390 = vmatpush.msra.mxu0 0.0
        %4391 = vmatpush.msra.mxu0 0.0
        %4392 = vmatpush.msra.mxu0 0.0
        %4393 = vmatpush.msra.mxu0 0.0
        %4394 = vmatpush.msra.mxu0 0.0
        %4395 = vmatpush.msra.mxu0 0.0
        %4396 = vmatpush.msra.mxu0 0.0
        %4397 = vmatpush.msra.mxu0 %v4384
        %4398 = vmatpush.msra.mxu0 %v4383
        %4399 = vmatpush.msra.mxu0 %v4382
        %4400 = vmatpush.msra.mxu0 %v4381
        %4401 = vmatmul.f32.gmra.mxu0 %v4140
        %v4402 = vpop.f32.mrf.mxu0
        %v4403 = vadd.f32 0.0, %v4402
        %4404 = vmatmul.f32.gmra.mxu0 %v4143
        %v4405 = vpop.f32.mrf.mxu0
        %v4406 = vadd.f32 0.0, %v4405
        %4407 = vdwg.mxu0
        %v4408 = vadd.f32 %v4379, %v4403
        %v4409 = vadd.f32 %v4380, %v4406
        %4411 = vset.pattern.permute.xlu0 0
        %4412 = vperm.xlu0 %4411, %v1598
        %v4413 = vpop.permute.xlu0 %4412
        %4416 = vset.pattern.permute.xlu0 0
        %4417 = vperm.xlu0 %4416, %v1599
        %v4418 = vpop.permute.xlu0 %4417
        %v4420 = vmul.f32 %v4408, %v4413
        %v4421 = vmul.f32 %v4409, %v4418
        %v4422 = vadd.f32 %v4296, %v4420
        %v4423 = vadd.f32 %v4297, %v4421
        %v4424 = vld [vmem:[%s31] sm:$0x1]
        %v4426 = vperm.slane %v4424, 0
        %v4428 = vmul.f32 %v4422, %v4426
        %v4429 = vmul.f32 %v4423, %v4426
        %v4430 = vld [vmem:[%s33] sm:$0x1]
        %v4432 = vperm.slane %v4430, 0
        %v4434 = vadd.f32 %v4428, %v4432
        %v4435 = vadd.f32 %v4429, %v4432
        %v4436 = vld [vmem:[#allocation10] sm:$0xff]
        %v4437 = vld [vmem:[#allocation10 + $0x8] sm:$0xff]
        %v4438 = vld [vmem:[#allocation10 + $0x10] sm:$0xff]
        %v4439 = vld [vmem:[#allocation10 + $0x18] sm:$0xff]
        %v4440 = vld [vmem:[%s37] sm:$0x1]
        %v4442 = vperm.slane %v4440, 0
        %v4445 = vsel %vm2987, %v4434, 0
        %v4448 = vsel %vm2987, %v4435, 0
        %4450 = vmatpush.msra.mxu0 0.0
        %4451 = vmatpush.msra.mxu0 0.0
        %4452 = vmatpush.msra.mxu0 0.0
        %4453 = vmatpush.msra.mxu0 0.0
        %4454 = vmatpush.msra.mxu0 0.0
        %4455 = vmatpush.msra.mxu0 0.0
        %4456 = vmatpush.msra.mxu0 0.0
        %4457 = vmatpush.msra.mxu0 0.0
        %4458 = vmatpush.msra.mxu0 0.0
        %4459 = vmatpush.msra.mxu0 0.0
        %4460 = vmatpush.msra.mxu0 0.0
        %4461 = vmatpush.msra.mxu0 0.0
        %4462 = vmatpush.msra.mxu0 %v4439
        %4463 = vmatpush.msra.mxu0 %v4438
        %4464 = vmatpush.msra.mxu0 %v4437
        %4465 = vmatpush.msra.mxu0 %v4436
        %4466 = vmatmul.f32.gmra.mxu0 %v4445
        %v4467 = vpop.f32.mrf.mxu0
        %v4468 = vadd.f32 %v4442, %v4467
        %4469 = vmatmul.f32.gmra.mxu0 %v4448
        %v4470 = vpop.f32.mrf.mxu0
        %v4471 = vadd.f32 %v4442, %v4470
        %4472 = vdwg.mxu0
        %vm4473 = vcmp.ge.f32.partialorder %v4468, 0.0
        %vm4474 = vcmp.ge.f32.partialorder %v4471, 0.0
        %v4475 = vmul.f32 %v4468, 0.01
        %v4476 = vmul.f32 %v4471, 0.01
        %v4477 = vsel %vm4473, %v4468, %v4475
        %v4478 = vsel %vm4474, %v4471, %v4476
        %v4479 = vadd.f32 %v4477, %v1406
        %v4480 = vadd.f32 %v4478, %v1409
        %4481 = vmatpush.msra.mxu0 0.0
        %4482 = vmatpush.msra.mxu0 0.0
        %4483 = vmatpush.msra.mxu0 0.0
        %4484 = vmatpush.msra.mxu0 0.0
        %4485 = vmatpush.msra.mxu0 0.0
        %4486 = vmatpush.msra.mxu0 0.0
        %4487 = vmatpush.msra.mxu0 0.0
        %4488 = vmatpush.msra.mxu0 0.0
        %4489 = vmatpush.msra.mxu0 0.0
        %4490 = vmatpush.msra.mxu0 0.0
        %4491 = vmatpush.msra.mxu0 0.0
        %4492 = vmatpush.msra.mxu0 0.0
        %4493 = vmatpush.msra.mxu0 0.0
        %4494 = vmatpush.msra.mxu0 0.0
        %4495 = vmatpush.msra.mxu0 %v4480
        %4496 = vmatpush.msra.mxu0 %v4479
        %4497 = vmatmul.f32.gmra.mxu0 %v2874
        %v4498 = vpop.f32.mrf.mxu0
        %v4499 = vadd.f32 0.0, %v4498
        %4500 = vmatmul.f32.gmra.mxu0 %v2877
        %v4501 = vpop.f32.mrf.mxu0
        %v4502 = vadd.f32 0.0, %v4501
        %4503 = vmatmul.f32.gmra.mxu0 %v2880
        %v4504 = vpop.f32.mrf.mxu0
        %v4505 = vadd.f32 0.0, %v4504
        %4506 = vmatmul.f32.gmra.mxu0 %v2883
        %v4507 = vpop.f32.mrf.mxu0
        %v4508 = vadd.f32 0.0, %v4507
        %4509 = vmatmul.f32.gmra.mxu0 %v2886
        %v4510 = vpop.f32.mrf.mxu0
        %v4511 = vadd.f32 0.0, %v4510
        %4512 = vmatmul.f32.gmra.mxu0 %v2889
        %v4513 = vpop.f32.mrf.mxu0
        %v4514 = vadd.f32 0.0, %v4513
        %4515 = vdwg.mxu0
        %4516 = vmatpush.msra.mxu0 0.0
        %4517 = vmatpush.msra.mxu0 0.0
        %4518 = vmatpush.msra.mxu0 0.0
        %4519 = vmatpush.msra.mxu0 0.0
        %4520 = vmatpush.msra.mxu0 0.0
        %4521 = vmatpush.msra.mxu0 0.0
        %4522 = vmatpush.msra.mxu0 0.0
        %4523 = vmatpush.msra.mxu0 0.0
        %4524 = vmatpush.msra.mxu0 0.0
        %4525 = vmatpush.msra.mxu0 0.0
        %4526 = vmatpush.msra.mxu0 0.0
        %4527 = vmatpush.msra.mxu0 0.0
        %4528 = vmatpush.msra.mxu0 0.0
        %4529 = vmatpush.msra.mxu0 0.0
        %4530 = vmatpush.msra.mxu0 %v4480
        %4531 = vmatpush.msra.mxu0 %v4479
        %4532 = vmatmul.f32.gmra.mxu0 %v2927
        %v4533 = vpop.f32.mrf.mxu0
        %v4534 = vadd.f32 0.0, %v4533
        %4535 = vmatmul.f32.gmra.mxu0 %v2930
        %v4536 = vpop.f32.mrf.mxu0
        %v4537 = vadd.f32 0.0, %v4536
        %4538 = vmatmul.f32.gmra.mxu0 %v2933
        %v4539 = vpop.f32.mrf.mxu0
        %v4540 = vadd.f32 0.0, %v4539
        %4541 = vmatmul.f32.gmra.mxu0 %v2936
        %v4542 = vpop.f32.mrf.mxu0
        %v4543 = vadd.f32 0.0, %v4542
        %4544 = vmatmul.f32.gmra.mxu0 %v2939
        %v4545 = vpop.f32.mrf.mxu0
        %v4546 = vadd.f32 0.0, %v4545
        %4547 = vmatmul.f32.gmra.mxu0 %v2942
        %v4548 = vpop.f32.mrf.mxu0
        %v4549 = vadd.f32 0.0, %v4548
        %4550 = vdwg.mxu0
        %v4551 = vld [vmem:[#allocation12] sm:$0xff]
        %v4552 = vld [vmem:[#allocation12 + $0x8] sm:$0xff]
        %v4553 = vld [vmem:[#allocation12 + $0x10] sm:$0xff]
        %v4554 = vld [vmem:[#allocation12 + $0x18] sm:$0xff]
        %v4555 = vld [vmem:[#allocation13] sm:$0xff]
        %v4556 = vld [vmem:[#allocation13 + $0x8] sm:$0xff]
        %v4557 = vld [vmem:[#allocation13 + $0x10] sm:$0xff]
        %v4558 = vld [vmem:[#allocation13 + $0x18] sm:$0xff]
        %v4560 = vsel %vm2987, %v4534, 0
        %v4563 = vsel %vm2987, %v4537, 0
        %v4566 = vsel %vm2987, %v4540, 0
        %v4569 = vsel %vm2987, %v4543, 0
        %v4572 = vsel %vm2987, %v4546, 0
        %v4575 = vsel %vm2987, %v4549, 0
        %4577 = vmatpush.msra.mxu0 0.0
        %4578 = vmatpush.msra.mxu0 0.0
        %4579 = vmatpush.msra.mxu0 0.0
        %4580 = vmatpush.msra.mxu0 0.0
        %4581 = vmatpush.msra.mxu0 0.0
        %4582 = vmatpush.msra.mxu0 0.0
        %4583 = vmatpush.msra.mxu0 0.0
        %4584 = vmatpush.msra.mxu0 0.0
        %4585 = vmatpush.msra.mxu0 0.0
        %4586 = vmatpush.msra.mxu0 0.0
        %4587 = vmatpush.msra.mxu0 0.0
        %4588 = vmatpush.msra.mxu0 0.0
        %4589 = vmatpush.msra.mxu0 %v4558
        %4590 = vmatpush.msra.mxu0 %v4557
        %4591 = vmatpush.msra.mxu0 %v4556
        %4592 = vmatpush.msra.mxu0 %v4555
        %4593 = vmatmul.f32.gmra.mxu0 %v4560
        %v4594 = vpop.f32.mrf.mxu0
        %v4595 = vadd.f32 0.0, %v4594
        %4596 = vmatmul.f32.gmra.mxu0 %v4563
        %v4597 = vpop.f32.mrf.mxu0
        %v4598 = vadd.f32 0.0, %v4597
        %4599 = vmatmul.f32.gmra.mxu0 %v4566
        %v4600 = vpop.f32.mrf.mxu0
        %v4601 = vadd.f32 0.0, %v4600
        %4602 = vmatmul.f32.gmra.mxu0 %v4569
        %v4603 = vpop.f32.mrf.mxu0
        %v4604 = vadd.f32 0.0, %v4603
        %4605 = vmatmul.f32.gmra.mxu0 %v4572
        %v4606 = vpop.f32.mrf.mxu0
        %v4607 = vadd.f32 0.0, %v4606
        %4608 = vmatmul.f32.gmra.mxu0 %v4575
        %v4609 = vpop.f32.mrf.mxu0
        %v4610 = vadd.f32 0.0, %v4609
        %4611 = vdwg.mxu0
        %v4613 = vsel %vm2987, %v4499, 0
        %v4616 = vsel %vm2987, %v4502, 0
        %v4619 = vsel %vm2987, %v4505, 0
        %v4622 = vsel %vm2987, %v4508, 0
        %v4625 = vsel %vm2987, %v4511, 0
        %v4628 = vsel %vm2987, %v4514, 0
        %4630 = vmatpush.msra.mxu0 0.0
        %4631 = vmatpush.msra.mxu0 0.0
        %4632 = vmatpush.msra.mxu0 0.0
        %4633 = vmatpush.msra.mxu0 0.0
        %4634 = vmatpush.msra.mxu0 0.0
        %4635 = vmatpush.msra.mxu0 0.0
        %4636 = vmatpush.msra.mxu0 0.0
        %4637 = vmatpush.msra.mxu0 0.0
        %4638 = vmatpush.msra.mxu0 0.0
        %4639 = vmatpush.msra.mxu0 0.0
        %4640 = vmatpush.msra.mxu0 0.0
        %4641 = vmatpush.msra.mxu0 0.0
        %4642 = vmatpush.msra.mxu0 %v4554
        %4643 = vmatpush.msra.mxu0 %v4553
        %4644 = vmatpush.msra.mxu0 %v4552
        %4645 = vmatpush.msra.mxu0 %v4551
        %4646 = vmatmul.f32.gmra.mxu0 %v4613
        %v4647 = vpop.f32.mrf.mxu0
        %v4648 = vadd.f32 %v4595, %v4647
        %4649 = vmatmul.f32.gmra.mxu0 %v4616
        %v4650 = vpop.f32.mrf.mxu0
        %v4651 = vadd.f32 %v4598, %v4650
        %4652 = vmatmul.f32.gmra.mxu0 %v4619
        %v4653 = vpop.f32.mrf.mxu0
        %v4654 = vadd.f32 %v4601, %v4653
        %4655 = vmatmul.f32.gmra.mxu0 %v4622
        %v4656 = vpop.f32.mrf.mxu0
        %v4657 = vadd.f32 %v4604, %v4656
        %4658 = vmatmul.f32.gmra.mxu0 %v4625
        %v4659 = vpop.f32.mrf.mxu0
        %v4660 = vadd.f32 %v4607, %v4659
        %4661 = vmatmul.f32.gmra.mxu0 %v4628
        %v4662 = vpop.f32.mrf.mxu0
        %v4663 = vadd.f32 %v4610, %v4662
        %4664 = vdwg.mxu0
        %v4665 = vld [vmem:[#allocation15] sm:$0xff]
        %v4666 = vld [vmem:[#allocation15 + $0x8] sm:$0xff]
        %v4667 = vld [vmem:[#allocation15 + $0x10] sm:$0xff]
        %v4668 = vld [vmem:[#allocation15 + $0x18] sm:$0xff]
        %4669 = vmatpush.msra.mxu0 0.0
        %4670 = vmatpush.msra.mxu0 0.0
        %4671 = vmatpush.msra.mxu0 0.0
        %4672 = vmatpush.msra.mxu0 0.0
        %4673 = vmatpush.msra.mxu0 0.0
        %4674 = vmatpush.msra.mxu0 0.0
        %4675 = vmatpush.msra.mxu0 0.0
        %4676 = vmatpush.msra.mxu0 0.0
        %4677 = vmatpush.msra.mxu0 0.0
        %4678 = vmatpush.msra.mxu0 0.0
        %4679 = vmatpush.msra.mxu0 0.0
        %4680 = vmatpush.msra.mxu0 0.0
        %4681 = vmatpush.msra.mxu0 %v4668
        %4682 = vmatpush.msra.mxu0 %v4667
        %4683 = vmatpush.msra.mxu0 %v4666
        %4684 = vmatpush.msra.mxu0 %v4665
        %4685 = vmatmul.f32.gmra.mxu0 %v3099
        %v4686 = vpop.f32.mrf.mxu0
        %v4687 = vadd.f32 0.0, %v4686
        %4688 = vmatmul.f32.gmra.mxu0 %v3102
        %v4689 = vpop.f32.mrf.mxu0
        %v4690 = vadd.f32 0.0, %v4689
        %4691 = vmatmul.f32.gmra.mxu0 %v3105
        %v4692 = vpop.f32.mrf.mxu0
        %v4693 = vadd.f32 0.0, %v4692
        %4694 = vmatmul.f32.gmra.mxu0 %v3108
        %v4695 = vpop.f32.mrf.mxu0
        %v4696 = vadd.f32 0.0, %v4695
        %4697 = vmatmul.f32.gmra.mxu0 %v3111
        %v4698 = vpop.f32.mrf.mxu0
        %v4699 = vadd.f32 0.0, %v4698
        %4700 = vmatmul.f32.gmra.mxu0 %v3114
        %v4701 = vpop.f32.mrf.mxu0
        %v4702 = vadd.f32 0.0, %v4701
        %4703 = vdwg.mxu0
        %v4704 = vadd.f32 %v4648, %v4687
        %v4705 = vadd.f32 %v4651, %v4690
        %v4706 = vadd.f32 %v4654, %v4693
        %v4707 = vadd.f32 %v4657, %v4696
        %v4708 = vadd.f32 %v4660, %v4699
        %v4709 = vadd.f32 %v4663, %v4702
        %v4710 = vld [vmem:[%s45] sm:$0x1]
        %v4712 = vperm.slane %v4710, 0
        %v4714 = vadd.f32 %v4704, %v4712
        %v4715 = vadd.f32 %v4705, %v4712
        %v4716 = vadd.f32 %v4706, %v4712
        %v4717 = vadd.f32 %v4707, %v4712
        %v4718 = vadd.f32 %v4708, %v4712
        %v4719 = vadd.f32 %v4709, %v4712
        %4720 = vmatpush.msra.mxu0 0.0
        %4721 = vmatpush.msra.mxu0 0.0
        %4722 = vmatpush.msra.mxu0 0.0
        %4723 = vmatpush.msra.mxu0 0.0
        %4724 = vmatpush.msra.mxu0 0.0
        %4725 = vmatpush.msra.mxu0 0.0
        %4726 = vmatpush.msra.mxu0 0.0
        %4727 = vmatpush.msra.mxu0 0.0
        %4728 = vmatpush.msra.mxu0 0.0
        %4729 = vmatpush.msra.mxu0 0.0
        %4730 = vmatpush.msra.mxu0 %v4719
        %4731 = vmatpush.msra.mxu0 %v4718
        %4732 = vmatpush.msra.mxu0 %v4717
        %4733 = vmatpush.msra.mxu0 %v4716
        %4734 = vmatpush.msra.mxu0 %v4715
        %4735 = vmatpush.msra.mxu0 %v4714
        %4736 = vmatmul.f32.gmra.mxu0 %v1496
        %v4737 = vpop.f32.mrf.mxu0
        %v4738 = vadd.f32 0.0, %v4737
        %4739 = vmatmul.f32.gmra.mxu0 %v1499
        %v4740 = vpop.f32.mrf.mxu0
        %v4741 = vadd.f32 0.0, %v4740
        %4742 = vdwg.mxu0
        %v4743 = vmul.f32 %v4738, %v3193
        %v4744 = vmul.f32 %v4741, %v3198
        %v4751 = vrot.slane %v4714, 1
        %v4752 = vrot.slane %v4714, 2
        %v4753 = vrot.slane %v4714, 3
        %v4754 = vrot.slane %v4714, 4
        %v4755 = vrot.slane %v4714, 5
        %v4756 = vrot.slane %v4714, 6
        %v4757 = vrot.slane %v4714, 7
        %v4758 = vrot.slane %v4715, 1
        %v4759 = vrot.slane %v4715, 2
        %v4760 = vrot.slane %v4715, 3
        %v4761 = vrot.slane %v4715, 4
        %v4762 = vrot.slane %v4715, 5
        %v4763 = vrot.slane %v4715, 6
        %v4764 = vrot.slane %v4715, 7
        %v4765 = vrot.slane %v4716, 1
        %v4766 = vrot.slane %v4716, 2
        %v4767 = vrot.slane %v4716, 3
        %v4768 = vrot.slane %v4716, 4
        %v4769 = vrot.slane %v4716, 5
        %v4770 = vrot.slane %v4716, 6
        %v4771 = vrot.slane %v4716, 7
        %v4772 = vrot.slane %v4717, 1
        %v4773 = vrot.slane %v4717, 2
        %v4774 = vrot.slane %v4717, 3
        %v4775 = vrot.slane %v4717, 4
        %v4776 = vrot.slane %v4717, 5
        %v4777 = vrot.slane %v4717, 6
        %v4778 = vrot.slane %v4717, 7
        %v4779 = vrot.slane %v4718, 1
        %v4780 = vrot.slane %v4718, 2
        %v4781 = vrot.slane %v4718, 3
        %v4782 = vrot.slane %v4718, 4
        %v4783 = vrot.slane %v4718, 5
        %v4784 = vrot.slane %v4718, 6
        %v4785 = vrot.slane %v4718, 7
        %v4786 = vrot.slane %v4719, 1
        %v4787 = vrot.slane %v4719, 2
        %v4788 = vrot.slane %v4719, 3
        %v4789 = vrot.slane %v4719, 4
        %v4790 = vrot.slane %v4719, 5
        %v4791 = vrot.slane %v4719, 6
        %v4792 = vrot.slane %v4719, 7
        %v4793 = vperm.slane %v4714, 0
        %v4794 = vperm.slane %v4751, 0
        %v4795 = vperm.slane %v4752, 0
        %v4796 = vperm.slane %v4753, 0
        %v4797 = vperm.slane %v4754, 0
        %v4798 = vperm.slane %v4755, 0
        %v4799 = vperm.slane %v4756, 0
        %v4800 = vperm.slane %v4757, 0
        %v4801 = vperm.slane %v4715, 0
        %v4802 = vperm.slane %v4758, 0
        %v4803 = vperm.slane %v4759, 0
        %v4804 = vperm.slane %v4760, 0
        %v4805 = vperm.slane %v4761, 0
        %v4806 = vperm.slane %v4762, 0
        %v4807 = vperm.slane %v4763, 0
        %v4808 = vperm.slane %v4764, 0
        %v4809 = vperm.slane %v4716, 0
        %v4810 = vperm.slane %v4765, 0
        %v4811 = vperm.slane %v4766, 0
        %v4812 = vperm.slane %v4767, 0
        %v4813 = vperm.slane %v4768, 0
        %v4814 = vperm.slane %v4769, 0
        %v4815 = vperm.slane %v4770, 0
        %v4816 = vperm.slane %v4771, 0
        %v4817 = vperm.slane %v4717, 0
        %v4818 = vperm.slane %v4772, 0
        %v4819 = vperm.slane %v4773, 0
        %v4820 = vperm.slane %v4774, 0
        %v4821 = vperm.slane %v4775, 0
        %v4822 = vperm.slane %v4776, 0
        %v4823 = vperm.slane %v4777, 0
        %v4824 = vperm.slane %v4778, 0
        %v4825 = vperm.slane %v4718, 0
        %v4826 = vperm.slane %v4779, 0
        %v4827 = vperm.slane %v4780, 0
        %v4828 = vperm.slane %v4781, 0
        %v4829 = vperm.slane %v4782, 0
        %v4830 = vperm.slane %v4783, 0
        %v4831 = vperm.slane %v4784, 0
        %v4832 = vperm.slane %v4785, 0
        %v4833 = vperm.slane %v4719, 0
        %v4834 = vperm.slane %v4786, 0
        %v4835 = vperm.slane %v4787, 0
        %v4836 = vperm.slane %v4788, 0
        %v4837 = vperm.slane %v4789, 0
        %v4838 = vperm.slane %v4790, 0
        %v4839 = vperm.slane %v4791, 0
        %v4840 = vperm.slane %v4792, 0
        %v4889 = vadd.f32 %v4793, %v1618
        %v4890 = vadd.f32 %v4793, %v1624
        %v4891 = vadd.f32 %v4794, %v1631
        %v4892 = vadd.f32 %v4794, %v1637
        %v4893 = vadd.f32 %v4795, %v1644
        %v4894 = vadd.f32 %v4795, %v1650
        %v4895 = vadd.f32 %v4796, %v1657
        %v4896 = vadd.f32 %v4796, %v1663
        %v4897 = vadd.f32 %v4797, %v1670
        %v4898 = vadd.f32 %v4797, %v1676
        %v4899 = vadd.f32 %v4798, %v1683
        %v4900 = vadd.f32 %v4798, %v1689
        %v4901 = vadd.f32 %v4799, %v1696
        %v4902 = vadd.f32 %v4799, %v1702
        %v4903 = vadd.f32 %v4800, %v1709
        %v4904 = vadd.f32 %v4800, %v1715
        %v4905 = vadd.f32 %v4801, %v1722
        %v4906 = vadd.f32 %v4801, %v1728
        %v4907 = vadd.f32 %v4802, %v1735
        %v4908 = vadd.f32 %v4802, %v1741
        %v4909 = vadd.f32 %v4803, %v1748
        %v4910 = vadd.f32 %v4803, %v1754
        %v4911 = vadd.f32 %v4804, %v1761
        %v4912 = vadd.f32 %v4804, %v1767
        %v4913 = vadd.f32 %v4805, %v1774
        %v4914 = vadd.f32 %v4805, %v1780
        %v4915 = vadd.f32 %v4806, %v1787
        %v4916 = vadd.f32 %v4806, %v1793
        %v4917 = vadd.f32 %v4807, %v1800
        %v4918 = vadd.f32 %v4807, %v1806
        %v4919 = vadd.f32 %v4808, %v1813
        %v4920 = vadd.f32 %v4808, %v1819
        %v4921 = vadd.f32 %v4809, %v1826
        %v4922 = vadd.f32 %v4809, %v1832
        %v4923 = vadd.f32 %v4810, %v1839
        %v4924 = vadd.f32 %v4810, %v1845
        %v4925 = vadd.f32 %v4811, %v1852
        %v4926 = vadd.f32 %v4811, %v1858
        %v4927 = vadd.f32 %v4812, %v1865
        %v4928 = vadd.f32 %v4812, %v1871
        %v4929 = vadd.f32 %v4813, %v1878
        %v4930 = vadd.f32 %v4813, %v1884
        %v4931 = vadd.f32 %v4814, %v1891
        %v4932 = vadd.f32 %v4814, %v1897
        %v4933 = vadd.f32 %v4815, %v1904
        %v4934 = vadd.f32 %v4815, %v1910
        %v4935 = vadd.f32 %v4816, %v1917
        %v4936 = vadd.f32 %v4816, %v1923
        %v4937 = vadd.f32 %v4817, %v1930
        %v4938 = vadd.f32 %v4817, %v1936
        %v4939 = vadd.f32 %v4818, %v1943
        %v4940 = vadd.f32 %v4818, %v1949
        %v4941 = vadd.f32 %v4819, %v1956
        %v4942 = vadd.f32 %v4819, %v1962
        %v4943 = vadd.f32 %v4820, %v1969
        %v4944 = vadd.f32 %v4820, %v1975
        %v4945 = vadd.f32 %v4821, %v1982
        %v4946 = vadd.f32 %v4821, %v1988
        %v4947 = vadd.f32 %v4822, %v1995
        %v4948 = vadd.f32 %v4822, %v2001
        %v4949 = vadd.f32 %v4823, %v2008
        %v4950 = vadd.f32 %v4823, %v2014
        %v4951 = vadd.f32 %v4824, %v2021
        %v4952 = vadd.f32 %v4824, %v2027
        %v4953 = vadd.f32 %v4825, %v2034
        %v4954 = vadd.f32 %v4825, %v2040
        %v4955 = vadd.f32 %v4826, %v2047
        %v4956 = vadd.f32 %v4826, %v2053
        %v4957 = vadd.f32 %v4827, %v2060
        %v4958 = vadd.f32 %v4827, %v2066
        %v4959 = vadd.f32 %v4828, %v2073
        %v4960 = vadd.f32 %v4828, %v2079
        %v4961 = vadd.f32 %v4829, %v2086
        %v4962 = vadd.f32 %v4829, %v2092
        %v4963 = vadd.f32 %v4830, %v2099
        %v4964 = vadd.f32 %v4830, %v2105
        %v4965 = vadd.f32 %v4831, %v2112
        %v4966 = vadd.f32 %v4831, %v2118
        %v4967 = vadd.f32 %v4832, %v2125
        %v4968 = vadd.f32 %v4832, %v2131
        %v4969 = vadd.f32 %v4833, %v2138
        %v4970 = vadd.f32 %v4833, %v2144
        %v4971 = vadd.f32 %v4834, %v2151
        %v4972 = vadd.f32 %v4834, %v2157
        %v4973 = vadd.f32 %v4835, %v2164
        %v4974 = vadd.f32 %v4835, %v2170
        %v4975 = vadd.f32 %v4836, %v2177
        %v4976 = vadd.f32 %v4836, %v2183
        %v4977 = vadd.f32 %v4837, %v2190
        %v4978 = vadd.f32 %v4837, %v2196
        %v4979 = vadd.f32 %v4838, %v2203
        %v4980 = vadd.f32 %v4838, %v2209
        %v4981 = vadd.f32 %v4839, %v2216
        %v4982 = vadd.f32 %v4839, %v2222
        %v4983 = vadd.f32 %v4840, %v2229
        %v4984 = vadd.f32 %v4840, %v2235
        %v4985 = vsel %vm2987, %v4889, -inf
        %v4986 = vsel %vm2987, %v4891, -inf
        %v4987 = vsel %vm2987, %v4893, -inf
        %v4988 = vmax.f32 %v4985, %v4987
        %v4989 = vsel %vm2987, %v4895, -inf
        %v4990 = vmax.f32 %v4986, %v4989
        %v4991 = vsel %vm2987, %v4897, -inf
        %v4992 = vmax.f32 %v4988, %v4991
        %v4993 = vsel %vm2987, %v4899, -inf
        %v4994 = vmax.f32 %v4990, %v4993
        %v4995 = vsel %vm2987, %v4901, -inf
        %v4996 = vmax.f32 %v4992, %v4995
        %v4997 = vsel %vm2987, %v4903, -inf
        %v4998 = vmax.f32 %v4994, %v4997
        %v4999 = vsel %vm2987, %v4905, -inf
        %v5000 = vmax.f32 %v4996, %v4999
        %v5001 = vsel %vm2987, %v4907, -inf
        %v5002 = vmax.f32 %v4998, %v5001
        %v5003 = vsel %vm2987, %v4909, -inf
        %v5004 = vmax.f32 %v5000, %v5003
        %v5005 = vsel %vm2987, %v4911, -inf
        %v5006 = vmax.f32 %v5002, %v5005
        %v5007 = vsel %vm2987, %v4913, -inf
        %v5008 = vmax.f32 %v5004, %v5007
        %v5009 = vsel %vm2987, %v4915, -inf
        %v5010 = vmax.f32 %v5006, %v5009
        %v5011 = vsel %vm2987, %v4917, -inf
        %v5012 = vmax.f32 %v5008, %v5011
        %v5013 = vsel %vm2987, %v4919, -inf
        %v5014 = vmax.f32 %v5010, %v5013
        %v5015 = vsel %vm2987, %v4921, -inf
        %v5016 = vmax.f32 %v5012, %v5015
        %v5017 = vsel %vm2987, %v4923, -inf
        %v5018 = vmax.f32 %v5014, %v5017
        %v5019 = vsel %vm2987, %v4925, -inf
        %v5020 = vmax.f32 %v5016, %v5019
        %v5021 = vsel %vm2987, %v4927, -inf
        %v5022 = vmax.f32 %v5018, %v5021
        %v5023 = vsel %vm2987, %v4929, -inf
        %v5024 = vmax.f32 %v5020, %v5023
        %v5025 = vsel %vm2987, %v4931, -inf
        %v5026 = vmax.f32 %v5022, %v5025
        %v5027 = vsel %vm2987, %v4933, -inf
        %v5028 = vmax.f32 %v5024, %v5027
        %v5029 = vsel %vm2987, %v4935, -inf
        %v5030 = vmax.f32 %v5026, %v5029
        %v5031 = vsel %vm2987, %v4937, -inf
        %v5032 = vmax.f32 %v5028, %v5031
        %v5033 = vsel %vm2987, %v4939, -inf
        %v5034 = vmax.f32 %v5030, %v5033
        %v5035 = vsel %vm2987, %v4941, -inf
        %v5036 = vmax.f32 %v5032, %v5035
        %v5037 = vsel %vm2987, %v4943, -inf
        %v5038 = vmax.f32 %v5034, %v5037
        %v5039 = vsel %vm2987, %v4945, -inf
        %v5040 = vmax.f32 %v5036, %v5039
        %v5041 = vsel %vm2987, %v4947, -inf
        %v5042 = vmax.f32 %v5038, %v5041
        %v5043 = vsel %vm2987, %v4949, -inf
        %v5044 = vmax.f32 %v5040, %v5043
        %v5045 = vsel %vm2987, %v4951, -inf
        %v5046 = vmax.f32 %v5042, %v5045
        %v5047 = vsel %vm2987, %v4953, -inf
        %v5048 = vmax.f32 %v5044, %v5047
        %v5049 = vsel %vm2987, %v4955, -inf
        %v5050 = vmax.f32 %v5046, %v5049
        %v5051 = vsel %vm2987, %v4957, -inf
        %v5052 = vmax.f32 %v5048, %v5051
        %v5053 = vsel %vm2987, %v4959, -inf
        %v5054 = vmax.f32 %v5050, %v5053
        %v5055 = vsel %vm2987, %v4961, -inf
        %v5056 = vmax.f32 %v5052, %v5055
        %v5057 = vsel %vm2987, %v4963, -inf
        %v5058 = vmax.f32 %v5054, %v5057
        %v5059 = vsel %vm2987, %v4965, -inf
        %v5060 = vmax.f32 %v5056, %v5059
        %v5061 = vsel %vm2987, %v4967, -inf
        %v5062 = vmax.f32 %v5058, %v5061
        %v5063 = vsel %vm2987, %v4969, -inf
        %v5064 = vmax.f32 %v5060, %v5063
        %v5065 = vsel %vm2987, %v4971, -inf
        %v5066 = vmax.f32 %v5062, %v5065
        %v5067 = vsel %vm2987, %v4973, -inf
        %v5068 = vmax.f32 %v5064, %v5067
        %v5069 = vsel %vm2987, %v4975, -inf
        %v5070 = vmax.f32 %v5066, %v5069
        %v5071 = vsel %vm2987, %v4977, -inf
        %v5072 = vmax.f32 %v5068, %v5071
        %v5073 = vsel %vm2987, %v4979, -inf
        %v5074 = vmax.f32 %v5070, %v5073
        %v5075 = vsel %vm2987, %v4981, -inf
        %v5076 = vmax.f32 %v5072, %v5075
        %v5077 = vsel %vm2987, %v4983, -inf
        %v5078 = vmax.f32 %v5074, %v5077
        %v5079 = vmax.f32 %v5076, %v5078
        %v5080 = vsel %vm2987, %v4890, -inf
        %v5081 = vsel %vm2987, %v4892, -inf
        %v5082 = vsel %vm2987, %v4894, -inf
        %v5083 = vmax.f32 %v5080, %v5082
        %v5084 = vsel %vm2987, %v4896, -inf
        %v5085 = vmax.f32 %v5081, %v5084
        %v5086 = vsel %vm2987, %v4898, -inf
        %v5087 = vmax.f32 %v5083, %v5086
        %v5088 = vsel %vm2987, %v4900, -inf
        %v5089 = vmax.f32 %v5085, %v5088
        %v5090 = vsel %vm2987, %v4902, -inf
        %v5091 = vmax.f32 %v5087, %v5090
        %v5092 = vsel %vm2987, %v4904, -inf
        %v5093 = vmax.f32 %v5089, %v5092
        %v5094 = vsel %vm2987, %v4906, -inf
        %v5095 = vmax.f32 %v5091, %v5094
        %v5096 = vsel %vm2987, %v4908, -inf
        %v5097 = vmax.f32 %v5093, %v5096
        %v5098 = vsel %vm2987, %v4910, -inf
        %v5099 = vmax.f32 %v5095, %v5098
        %v5100 = vsel %vm2987, %v4912, -inf
        %v5101 = vmax.f32 %v5097, %v5100
        %v5102 = vsel %vm2987, %v4914, -inf
        %v5103 = vmax.f32 %v5099, %v5102
        %v5104 = vsel %vm2987, %v4916, -inf
        %v5105 = vmax.f32 %v5101, %v5104
        %v5106 = vsel %vm2987, %v4918, -inf
        %v5107 = vmax.f32 %v5103, %v5106
        %v5108 = vsel %vm2987, %v4920, -inf
        %v5109 = vmax.f32 %v5105, %v5108
        %v5110 = vsel %vm2987, %v4922, -inf
        %v5111 = vmax.f32 %v5107, %v5110
        %v5112 = vsel %vm2987, %v4924, -inf
        %v5113 = vmax.f32 %v5109, %v5112
        %v5114 = vsel %vm2987, %v4926, -inf
        %v5115 = vmax.f32 %v5111, %v5114
        %v5116 = vsel %vm2987, %v4928, -inf
        %v5117 = vmax.f32 %v5113, %v5116
        %v5118 = vsel %vm2987, %v4930, -inf
        %v5119 = vmax.f32 %v5115, %v5118
        %v5120 = vsel %vm2987, %v4932, -inf
        %v5121 = vmax.f32 %v5117, %v5120
        %v5122 = vsel %vm2987, %v4934, -inf
        %v5123 = vmax.f32 %v5119, %v5122
        %v5124 = vsel %vm2987, %v4936, -inf
        %v5125 = vmax.f32 %v5121, %v5124
        %v5126 = vsel %vm2987, %v4938, -inf
        %v5127 = vmax.f32 %v5123, %v5126
        %v5128 = vsel %vm2987, %v4940, -inf
        %v5129 = vmax.f32 %v5125, %v5128
        %v5130 = vsel %vm2987, %v4942, -inf
        %v5131 = vmax.f32 %v5127, %v5130
        %v5132 = vsel %vm2987, %v4944, -inf
        %v5133 = vmax.f32 %v5129, %v5132
        %v5134 = vsel %vm2987, %v4946, -inf
        %v5135 = vmax.f32 %v5131, %v5134
        %v5136 = vsel %vm2987, %v4948, -inf
        %v5137 = vmax.f32 %v5133, %v5136
        %v5138 = vsel %vm2987, %v4950, -inf
        %v5139 = vmax.f32 %v5135, %v5138
        %v5140 = vsel %vm2987, %v4952, -inf
        %v5141 = vmax.f32 %v5137, %v5140
        %v5142 = vsel %vm2987, %v4954, -inf
        %v5143 = vmax.f32 %v5139, %v5142
        %v5144 = vsel %vm2987, %v4956, -inf
        %v5145 = vmax.f32 %v5141, %v5144
        %v5146 = vsel %vm2987, %v4958, -inf
        %v5147 = vmax.f32 %v5143, %v5146
        %v5148 = vsel %vm2987, %v4960, -inf
        %v5149 = vmax.f32 %v5145, %v5148
        %v5150 = vsel %vm2987, %v4962, -inf
        %v5151 = vmax.f32 %v5147, %v5150
        %v5152 = vsel %vm2987, %v4964, -inf
        %v5153 = vmax.f32 %v5149, %v5152
        %v5154 = vsel %vm2987, %v4966, -inf
        %v5155 = vmax.f32 %v5151, %v5154
        %v5156 = vsel %vm2987, %v4968, -inf
        %v5157 = vmax.f32 %v5153, %v5156
        %v5158 = vsel %vm2987, %v4970, -inf
        %v5159 = vmax.f32 %v5155, %v5158
        %v5160 = vsel %vm2987, %v4972, -inf
        %v5161 = vmax.f32 %v5157, %v5160
        %v5162 = vsel %vm2987, %v4974, -inf
        %v5163 = vmax.f32 %v5159, %v5162
        %v5164 = vsel %vm2987, %v4976, -inf
        %v5165 = vmax.f32 %v5161, %v5164
        %v5166 = vsel %vm2987, %v4978, -inf
        %v5167 = vmax.f32 %v5163, %v5166
        %v5168 = vsel %vm2987, %v4980, -inf
        %v5169 = vmax.f32 %v5165, %v5168
        %v5170 = vsel %vm2987, %v4982, -inf
        %v5171 = vmax.f32 %v5167, %v5170
        %v5172 = vsel %vm2987, %v4984, -inf
        %v5173 = vmax.f32 %v5169, %v5172
        %v5174 = vmax.f32 %v5171, %v5173
        %v5175 = vsel %vm3273, %v5079, 0.0
        %v5176 = vsel %vm3274, %v5174, 0.0
        %v5177 = vld [vmem:[%s47] sm:$0xff]
        %v5178 = vld [vmem:[%s47 + $0x8] sm:$0xff]
        %v5179 = vld [vmem:[%s47 + $0x10] sm:$0xff]
        %v5180 = vld [vmem:[%s47 + $0x18] sm:$0xff]
        %v5181 = vld [vmem:[%s49] sm:$0x1]
        %v5183 = vperm.slane %v5181, 0
        %v5186 = vsel %vm2987, %v4479, 0
        %v5189 = vsel %vm2987, %v4480, 0
        %5191 = vmatpush.msra.mxu0 0.0
        %5192 = vmatpush.msra.mxu0 0.0
        %5193 = vmatpush.msra.mxu0 0.0
        %5194 = vmatpush.msra.mxu0 0.0
        %5195 = vmatpush.msra.mxu0 0.0
        %5196 = vmatpush.msra.mxu0 0.0
        %5197 = vmatpush.msra.mxu0 0.0
        %5198 = vmatpush.msra.mxu0 0.0
        %5199 = vmatpush.msra.mxu0 0.0
        %5200 = vmatpush.msra.mxu0 0.0
        %5201 = vmatpush.msra.mxu0 0.0
        %5202 = vmatpush.msra.mxu0 0.0
        %5203 = vmatpush.msra.mxu0 %v5180
        %5204 = vmatpush.msra.mxu0 %v5179
        %5205 = vmatpush.msra.mxu0 %v5178
        %5206 = vmatpush.msra.mxu0 %v5177
        %5207 = vmatmul.f32.gmra.mxu0 %v5186
        %v5208 = vpop.f32.mrf.mxu0
        %v5209 = vadd.f32 %v5183, %v5208
        %5210 = vmatmul.f32.gmra.mxu0 %v5189
        %v5211 = vpop.f32.mrf.mxu0
        %v5212 = vadd.f32 %v5183, %v5211
        %5213 = vdwg.mxu0
        %v5214 = vld [vmem:[%s47 + $0x20] sm:$0xff]
        %v5215 = vld [vmem:[%s47 + $0x28] sm:$0xff]
        %v5216 = vld [vmem:[%s47 + $0x30] sm:$0xff]
        %v5217 = vld [vmem:[%s47 + $0x38] sm:$0xff]
        %v5218 = vld [vmem:[%s47 + $0x40] sm:$0xff]
        %v5219 = vld [vmem:[%s47 + $0x48] sm:$0xff]
        %v5220 = vld [vmem:[%s47 + $0x50] sm:$0xff]
        %v5221 = vld [vmem:[%s47 + $0x58] sm:$0xff]
        %v5223 = vsel %vm2987, %v5175, 0
        %v5226 = vsel %vm2987, %v5176, 0
        %5228 = vmatpush.msra.mxu0 0.0
        %5229 = vmatpush.msra.mxu0 0.0
        %5230 = vmatpush.msra.mxu0 0.0
        %5231 = vmatpush.msra.mxu0 0.0
        %5232 = vmatpush.msra.mxu0 0.0
        %5233 = vmatpush.msra.mxu0 0.0
        %5234 = vmatpush.msra.mxu0 0.0
        %5235 = vmatpush.msra.mxu0 0.0
        %5236 = vmatpush.msra.mxu0 0.0
        %5237 = vmatpush.msra.mxu0 0.0
        %5238 = vmatpush.msra.mxu0 0.0
        %5239 = vmatpush.msra.mxu0 0.0
        %5240 = vmatpush.msra.mxu0 %v5221
        %5241 = vmatpush.msra.mxu0 %v5220
        %5242 = vmatpush.msra.mxu0 %v5219
        %5243 = vmatpush.msra.mxu0 %v5218
        %5244 = vmatmul.f32.gmra.mxu0 %v5223
        %v5245 = vpop.f32.mrf.mxu0
        %v5246 = vadd.f32 0.0, %v5245
        %5247 = vmatmul.f32.gmra.mxu0 %v5226
        %v5248 = vpop.f32.mrf.mxu0
        %v5249 = vadd.f32 0.0, %v5248
        %5250 = vdwg.mxu0
        %v5252 = vsel %vm2987, %v4743, 0
        %v5255 = vsel %vm2987, %v4744, 0
        %5257 = vmatpush.msra.mxu0 0.0
        %5258 = vmatpush.msra.mxu0 0.0
        %5259 = vmatpush.msra.mxu0 0.0
        %5260 = vmatpush.msra.mxu0 0.0
        %5261 = vmatpush.msra.mxu0 0.0
        %5262 = vmatpush.msra.mxu0 0.0
        %5263 = vmatpush.msra.mxu0 0.0
        %5264 = vmatpush.msra.mxu0 0.0
        %5265 = vmatpush.msra.mxu0 0.0
        %5266 = vmatpush.msra.mxu0 0.0
        %5267 = vmatpush.msra.mxu0 0.0
        %5268 = vmatpush.msra.mxu0 0.0
        %5269 = vmatpush.msra.mxu0 %v5217
        %5270 = vmatpush.msra.mxu0 %v5216
        %5271 = vmatpush.msra.mxu0 %v5215
        %5272 = vmatpush.msra.mxu0 %v5214
        %5273 = vmatmul.f32.gmra.mxu0 %v5252
        %v5274 = vpop.f32.mrf.mxu0
        %v5275 = vadd.f32 %v5246, %v5274
        %5276 = vmatmul.f32.gmra.mxu0 %v5255
        %v5277 = vpop.f32.mrf.mxu0
        %v5278 = vadd.f32 %v5249, %v5277
        %5279 = vdwg.mxu0
        %v5280 = vld [vmem:[%s47 + $0x60] sm:$0xff]
        %v5281 = vld [vmem:[%s47 + $0x68] sm:$0xff]
        %v5282 = vld [vmem:[%s47 + $0x70] sm:$0xff]
        %v5283 = vld [vmem:[%s47 + $0x78] sm:$0xff]
        %v5285 = vsel %vm2987, %v4738, 0
        %v5288 = vsel %vm2987, %v4741, 0
        %5290 = vmatpush.msra.mxu0 0.0
        %5291 = vmatpush.msra.mxu0 0.0
        %5292 = vmatpush.msra.mxu0 0.0
        %5293 = vmatpush.msra.mxu0 0.0
        %5294 = vmatpush.msra.mxu0 0.0
        %5295 = vmatpush.msra.mxu0 0.0
        %5296 = vmatpush.msra.mxu0 0.0
        %5297 = vmatpush.msra.mxu0 0.0
        %5298 = vmatpush.msra.mxu0 0.0
        %5299 = vmatpush.msra.mxu0 0.0
        %5300 = vmatpush.msra.mxu0 0.0
        %5301 = vmatpush.msra.mxu0 0.0
        %5302 = vmatpush.msra.mxu0 %v5283
        %5303 = vmatpush.msra.mxu0 %v5282
        %5304 = vmatpush.msra.mxu0 %v5281
        %5305 = vmatpush.msra.mxu0 %v5280
        %5306 = vmatmul.f32.gmra.mxu0 %v5285
        %v5307 = vpop.f32.mrf.mxu0
        %v5308 = vadd.f32 0.0, %v5307
        %5309 = vmatmul.f32.gmra.mxu0 %v5288
        %v5310 = vpop.f32.mrf.mxu0
        %v5311 = vadd.f32 0.0, %v5310
        %5312 = vdwg.mxu0
        %v5313 = vadd.f32 %v5275, %v5308
        %v5314 = vadd.f32 %v5278, %v5311
        %v5315 = vadd.f32 %v5209, %v5313
        %v5316 = vadd.f32 %v5212, %v5314
        %v5317 = vld [vmem:[%s47 + $0x80] sm:$0xff]
        %v5318 = vld [vmem:[%s47 + $0x88] sm:$0xff]
        %v5319 = vld [vmem:[%s47 + $0x90] sm:$0xff]
        %v5320 = vld [vmem:[%s47 + $0x98] sm:$0xff]
        %v5321 = vld [vmem:[%s47 + $0xa0] sm:$0xff]
        %v5322 = vld [vmem:[%s47 + $0xa8] sm:$0xff]
        %v5323 = vld [vmem:[%s47 + $0xb0] sm:$0xff]
        %v5324 = vld [vmem:[%s47 + $0xb8] sm:$0xff]
        %5325 = vmatpush.msra.mxu0 0.0
        %5326 = vmatpush.msra.mxu0 0.0
        %5327 = vmatpush.msra.mxu0 0.0
        %5328 = vmatpush.msra.mxu0 0.0
        %5329 = vmatpush.msra.mxu0 0.0
        %5330 = vmatpush.msra.mxu0 0.0
        %5331 = vmatpush.msra.mxu0 0.0
        %5332 = vmatpush.msra.mxu0 0.0
        %5333 = vmatpush.msra.mxu0 0.0
        %5334 = vmatpush.msra.mxu0 0.0
        %5335 = vmatpush.msra.mxu0 0.0
        %5336 = vmatpush.msra.mxu0 0.0
        %5337 = vmatpush.msra.mxu0 %v5324
        %5338 = vmatpush.msra.mxu0 %v5323
        %5339 = vmatpush.msra.mxu0 %v5322
        %5340 = vmatpush.msra.mxu0 %v5321
        %5341 = vmatmul.f32.gmra.mxu0 %v5223
        %v5342 = vpop.f32.mrf.mxu0
        %v5343 = vadd.f32 0.0, %v5342
        %5344 = vmatmul.f32.gmra.mxu0 %v5226
        %v5345 = vpop.f32.mrf.mxu0
        %v5346 = vadd.f32 0.0, %v5345
        %5347 = vdwg.mxu0
        %5348 = vmatpush.msra.mxu0 0.0
        %5349 = vmatpush.msra.mxu0 0.0
        %5350 = vmatpush.msra.mxu0 0.0
        %5351 = vmatpush.msra.mxu0 0.0
        %5352 = vmatpush.msra.mxu0 0.0
        %5353 = vmatpush.msra.mxu0 0.0
        %5354 = vmatpush.msra.mxu0 0.0
        %5355 = vmatpush.msra.mxu0 0.0
        %5356 = vmatpush.msra.mxu0 0.0
        %5357 = vmatpush.msra.mxu0 0.0
        %5358 = vmatpush.msra.mxu0 0.0
        %5359 = vmatpush.msra.mxu0 0.0
        %5360 = vmatpush.msra.mxu0 %v5320
        %5361 = vmatpush.msra.mxu0 %v5319
        %5362 = vmatpush.msra.mxu0 %v5318
        %5363 = vmatpush.msra.mxu0 %v5317
        %5364 = vmatmul.f32.gmra.mxu0 %v5252
        %v5365 = vpop.f32.mrf.mxu0
        %v5366 = vadd.f32 %v5343, %v5365
        %5367 = vmatmul.f32.gmra.mxu0 %v5255
        %v5368 = vpop.f32.mrf.mxu0
        %v5369 = vadd.f32 %v5346, %v5368
        %5370 = vdwg.mxu0
        %v5371 = vld [vmem:[%s47 + $0xc0] sm:$0xff]
        %v5372 = vld [vmem:[%s47 + $0xc8] sm:$0xff]
        %v5373 = vld [vmem:[%s47 + $0xd0] sm:$0xff]
        %v5374 = vld [vmem:[%s47 + $0xd8] sm:$0xff]
        %5375 = vmatpush.msra.mxu0 0.0
        %5376 = vmatpush.msra.mxu0 0.0
        %5377 = vmatpush.msra.mxu0 0.0
        %5378 = vmatpush.msra.mxu0 0.0
        %5379 = vmatpush.msra.mxu0 0.0
        %5380 = vmatpush.msra.mxu0 0.0
        %5381 = vmatpush.msra.mxu0 0.0
        %5382 = vmatpush.msra.mxu0 0.0
        %5383 = vmatpush.msra.mxu0 0.0
        %5384 = vmatpush.msra.mxu0 0.0
        %5385 = vmatpush.msra.mxu0 0.0
        %5386 = vmatpush.msra.mxu0 0.0
        %5387 = vmatpush.msra.mxu0 %v5374
        %5388 = vmatpush.msra.mxu0 %v5373
        %5389 = vmatpush.msra.mxu0 %v5372
        %5390 = vmatpush.msra.mxu0 %v5371
        %5391 = vmatmul.f32.gmra.mxu0 %v5285
        %v5392 = vpop.f32.mrf.mxu0
        %v5393 = vadd.f32 0.0, %v5392
        %5394 = vmatmul.f32.gmra.mxu0 %v5288
        %v5395 = vpop.f32.mrf.mxu0
        %v5396 = vadd.f32 0.0, %v5395
        %5397 = vdwg.mxu0
        %v5398 = vadd.f32 %v5366, %v5393
        %v5399 = vadd.f32 %v5369, %v5396
        %v5400 = vmul.f32 %v5398, %v4287
        %v5401 = vmul.f32 %v5399, %v4292
        %v5402 = vadd.f32 %v5315, %v5400
        %v5403 = vadd.f32 %v5316, %v5401
        %v5404 = vld [vmem:[%s51] sm:$0x1]
        %v5406 = vperm.slane %v5404, 0
        %v5408 = vmul.f32 %v5402, %v5406
        %v5409 = vmul.f32 %v5403, %v5406
        %v5410 = vld [vmem:[%s53] sm:$0x1]
        %v5412 = vperm.slane %v5410, 0
        %v5414 = vadd.f32 %v5408, %v5412
        %v5415 = vadd.f32 %v5409, %v5412
        %v5416 = vld [vmem:[%s55] sm:$0xff]
        %v5417 = vld [vmem:[%s55 + $0x8] sm:$0xff]
        %v5418 = vld [vmem:[%s55 + $0x10] sm:$0xff]
        %v5419 = vld [vmem:[%s55 + $0x18] sm:$0xff]
        %v5420 = vld [vmem:[#allocation16] sm:$0x1]
        %v5422 = vperm.slane %v5420, 0
        %v5425 = vsel %vm2987, %v5414, 0
        %v5428 = vsel %vm2987, %v5415, 0
        %5430 = vmatpush.msra.mxu0 0.0
        %5431 = vmatpush.msra.mxu0 0.0
        %5432 = vmatpush.msra.mxu0 0.0
        %5433 = vmatpush.msra.mxu0 0.0
        %5434 = vmatpush.msra.mxu0 0.0
        %5435 = vmatpush.msra.mxu0 0.0
        %5436 = vmatpush.msra.mxu0 0.0
        %5437 = vmatpush.msra.mxu0 0.0
        %5438 = vmatpush.msra.mxu0 0.0
        %5439 = vmatpush.msra.mxu0 0.0
        %5440 = vmatpush.msra.mxu0 0.0
        %5441 = vmatpush.msra.mxu0 0.0
        %5442 = vmatpush.msra.mxu0 %v5419
        %5443 = vmatpush.msra.mxu0 %v5418
        %5444 = vmatpush.msra.mxu0 %v5417
        %5445 = vmatpush.msra.mxu0 %v5416
        %5446 = vmatmul.f32.gmra.mxu0 %v5425
        %v5447 = vpop.f32.mrf.mxu0
        %v5448 = vadd.f32 %v5422, %v5447
        %5449 = vmatmul.f32.gmra.mxu0 %v5428
        %v5450 = vpop.f32.mrf.mxu0
        %v5451 = vadd.f32 %v5422, %v5450
        %5452 = vdwg.mxu0
        %vm5453 = vcmp.ge.f32.partialorder %v5448, 0.0
        %vm5454 = vcmp.ge.f32.partialorder %v5451, 0.0
        %v5455 = vmul.f32 %v5448, 0.01
        %v5456 = vmul.f32 %v5451, 0.01
        %v5457 = vsel %vm5453, %v5448, %v5455
        %v5458 = vsel %vm5454, %v5451, %v5456
        %v5459 = vadd.f32 %v5457, %v4479
        %v5460 = vadd.f32 %v5458, %v4480
        %v5461 = vsel %vm2987, %v5459, 0.0
        %v5462 = vsel %vm2987, %v5460, 0.0
        %v5463 = vadd.f32 %v5461, %v5462
        %v5464 = vrot.slane %v5463, 4
        %v5465 = vadd.f32 %v5463, %v5464
        %v5466 = vrot.slane %v5465, 2
        %v5467 = vadd.f32 %v5465, %v5466
        %v5468 = vrot.slane %v5467, 1
        %v5469 = vadd.f32 %v5467, %v5468
        %v5470 = vmul.f32 %v5469, 0.0625
        %v5471 = vld [vmem:[%s59] sm:$0xff]
        %v5472 = vld [vmem:[%s59 + $0x8] sm:$0xff]
        %v5473 = vld [vmem:[%s59 + $0x10] sm:$0xff]
        %v5474 = vld [vmem:[%s59 + $0x18] sm:$0xff]
        %v5475 = vld [vmem:[#allocation18] sm:$0x1]
        %v5477 = vsel %vm2987, %v5470, 0
        %5479 = vmatpush.msra.mxu0 0.0
        %5480 = vmatpush.msra.mxu0 0.0
        %5481 = vmatpush.msra.mxu0 0.0
        %5482 = vmatpush.msra.mxu0 0.0
        %5483 = vmatpush.msra.mxu0 0.0
        %5484 = vmatpush.msra.mxu0 0.0
        %5485 = vmatpush.msra.mxu0 0.0
        %5486 = vmatpush.msra.mxu0 0.0
        %5487 = vmatpush.msra.mxu0 0.0
        %5488 = vmatpush.msra.mxu0 0.0
        %5489 = vmatpush.msra.mxu0 0.0
        %5490 = vmatpush.msra.mxu0 0.0
        %5491 = vmatpush.msra.mxu0 %v5474
        %5492 = vmatpush.msra.mxu0 %v5473
        %5493 = vmatpush.msra.mxu0 %v5472
        %5494 = vmatpush.msra.mxu0 %v5471
        %5495 = vmatmul.f32.gmra.mxu0 %v5477
        %v5496 = vpop.f32.mrf.mxu0
        %v5497 = vadd.f32 %v5475, %v5496
        %5498 = vdwg.mxu0
        %v5499 = vmax.f32 %v5497, 0.0
        %v5500 = vld [vmem:[#allocation19] sm:$0xff]
        %v5501 = vld [vmem:[#allocation19 + $0x8] sm:$0xff]
        %v5502 = vld [vmem:[#allocation21] sm:$0x1]
        %v5504 = vsel %vm2872, %v5499, 0
        %5506 = vmatpush.msra.mxu0 0.0
        %5507 = vmatpush.msra.mxu0 0.0
        %5508 = vmatpush.msra.mxu0 0.0
        %5509 = vmatpush.msra.mxu0 0.0
        %5510 = vmatpush.msra.mxu0 0.0
        %5511 = vmatpush.msra.mxu0 0.0
        %5512 = vmatpush.msra.mxu0 0.0
        %5513 = vmatpush.msra.mxu0 0.0
        %5514 = vmatpush.msra.mxu0 0.0
        %5515 = vmatpush.msra.mxu0 0.0
        %5516 = vmatpush.msra.mxu0 0.0
        %5517 = vmatpush.msra.mxu0 0.0
        %5518 = vmatpush.msra.mxu0 0.0
        %5519 = vmatpush.msra.mxu0 0.0
        %5520 = vmatpush.msra.mxu0 %v5501
        %5521 = vmatpush.msra.mxu0 %v5500
        %5522 = vmatmul.f32.gmra.mxu0 %v5504
        %v5523 = vpop.f32.mrf.mxu0
        %v5524 = vadd.f32 %v5502, %v5523
        %5525 = vdwg.mxu0
        %v5526 = vmax.f32 %v5524, 0.0
        %v5527 = vld [vmem:[%s67] sm:$0xff]
        %v5528 = vld [vmem:[#allocation22] sm:$0x1]
        %vm5529 = vcmask 64512
        %v5531 = vsel %vm5529, %v5526, 0
        %5533 = vmatpush.msra.mxu0 0.0
        %5534 = vmatpush.msra.mxu0 0.0
        %5535 = vmatpush.msra.mxu0 0.0
        %5536 = vmatpush.msra.mxu0 0.0
        %5537 = vmatpush.msra.mxu0 0.0
        %5538 = vmatpush.msra.mxu0 0.0
        %5539 = vmatpush.msra.mxu0 0.0
        %5540 = vmatpush.msra.mxu0 0.0
        %5541 = vmatpush.msra.mxu0 0.0
        %5542 = vmatpush.msra.mxu0 0.0
        %5543 = vmatpush.msra.mxu0 0.0
        %5544 = vmatpush.msra.mxu0 0.0
        %5545 = vmatpush.msra.mxu0 0.0
        %5546 = vmatpush.msra.mxu0 0.0
        %5547 = vmatpush.msra.mxu0 0.0
        %5548 = vmatpush.msra.mxu0 %v5527
        %5549 = vmatmul.f32.gmra.mxu0 %v5531
        %v5550 = vpop.f32.mrf.mxu0
        %v5551 = vadd.f32 %v5528, %v5550
        %5552 = vdwg.mxu0
        %vm5553 = vcmask 8192
        %5554 = vst.msk [vmem:[%s1368] sm:$0x1] %vm5553, %v5551
        %p5555 = scmp.lt.s32.totalorder %s90, 3
        %s5556 = scalar_select %p5555, %s90, 3
        %s5557 = scalar_lea.vmem %s71, %s5556
        // Predicated region
        $region217: #{_lambda_.1} parent=159 // pred_check
          %p5558 = pneg %p868
        $region218: #{_lambda_.1} parent=159 // pred_check_branch
          %5560 = sbr.rel (%p5558) target = $region220
        $region219: #{_lambda_.1} parent=159 // pred_region
          _
        $region220: #{_lambda_.1} parent=159 // pred_fallthru
          _
      $region160: #{_lambda_.1} parent=5 // pred_fallthru
        _
      %p5561 = scmp.le.s32.totalorder 2, %s85
      // Predicated region
      $region221: #{_lambda_.1} parent=5 // pred_check
        %p5562 = pneg %p5561
      $region222: #{_lambda_.1} parent=5 // pred_check_branch
        %5564 = sbr.rel (%p5562) target = $region224
      $region223: #{_lambda_.1} parent=5 // pred_region
        %s5565 = ssub.s32 %s85, 2
        // Predicated region
        $region225: #{_lambda_.1} parent=223 // pred_check
          %p5566 = pneg %p874
        $region226: #{_lambda_.1} parent=223 // pred_check_branch
          %5568 = sbr.rel (%p5566) target = $region228
        $region227: #{_lambda_.1} parent=223 // pred_region
          %p5569 = scmp.lt.s32.totalorder %s91, 3
          %s5570 = scalar_select %p5569, %s91, 3
          %s5571 = scalar_lea.vmem %s71, %s5570
        $region228: #{_lambda_.1} parent=223 // pred_fallthru
          _
      $region224: #{_lambda_.1} parent=5 // pred_fallthru
        _
    $region6: #{_lambda_.1} parent=1 // loop_footer
      %s89 = sadd.s32 1, %s85
    $region7: #{_lambda_.1} parent=1 // loop_footer_branch
      %84 = sbr.rel target = $region3
    $region8: #{_lambda_.1} parent=1 // loop_exit
      _
    %5572 = vsyncpa [#allocation3], 1
    %s5573 = scalar_lea.sflag [#allocation3], 1
    %5574 = vsyncpa %s5573, 1
    %5575 = vsyncpa [#allocation5], 1
    %5576 = vsyncpa [#allocation8], 1
    %5577 = vsyncpa [#allocation11], 1
    %5578 = vsyncpa [#allocation14], 1
    %5579 = vsyncpa [#allocation17], 1
    %5580 = vsyncpa [#allocation20], 1
    %5581 = vsyncpa [#allocation23], 1

</llo_original>
